<compile_context>
chip_gen: v5e
topology: v5e:2x2
jax: 0.10.0
libtpu: 0.0.40
codegen_flags: <defaults>
</compile_context>

<pallas_src>
import functools

import jax
import jax.numpy as jnp
from jax import lax
from jax.experimental import pallas as pl
from jax.experimental.pallas import tpu as pltpu

EPS = 1e-3


# --------------------------------------------------------------------------- #
# Kernels
# --------------------------------------------------------------------------- #
def _bn_kernel_2d(x_ref, gamma_ref, beta_ref, o_ref, *, channel_tile, inv_count):
    """N == 1 fast path.  x_ref: (TC, HW) block of a (C, HW) array.

    gamma_ref / beta_ref are the full (C, 1) parameter arrays, resident in VMEM
    across the whole grid (constant index_map); slice out the TC rows we need.
    """
    i = pl.program_id(0)
    start = pl.multiple_of(i * channel_tile, channel_tile)

    x = x_ref[...].astype(jnp.float32)                              # (TC, HW)
    mean = jnp.sum(x, axis=1, keepdims=True) * inv_count            # (TC, 1)
    d = x - mean
    var = jnp.sum(d * d, axis=1, keepdims=True) * inv_count         # (TC, 1)

    gamma = gamma_ref[pl.ds(start, channel_tile), :].astype(jnp.float32)
    beta = beta_ref[pl.ds(start, channel_tile), :].astype(jnp.float32)
    scale = gamma * lax.rsqrt(var + EPS)                            # (TC, 1)
    shift = beta - mean * scale                                     # (TC, 1)

    # 2 VALU ops/element; no `centered` temporary is reused for the store.
    o_ref[...] = (x * scale + shift).astype(o_ref.dtype)


def _bn_kernel_3d(x_ref, gamma_ref, beta_ref, o_ref, *, channel_tile, inv_count):
    """General N path.  x_ref: (N, TC, HW) block; reduce over axes (0, 2)."""
    i = pl.program_id(0)
    start = pl.multiple_of(i * channel_tile, channel_tile)

    x = x_ref[...].astype(jnp.float32)                              # (N, TC, HW)
    mean = jnp.sum(jnp.sum(x, axis=2, keepdims=True),
                   axis=0, keepdims=True) * inv_count               # (1, TC, 1)
    d = x - mean
    var = jnp.sum(jnp.sum(d * d, axis=2, keepdims=True),
                  axis=0, keepdims=True) * inv_count                # (1, TC, 1)

    gamma = gamma_ref[pl.ds(start, channel_tile), :].astype(jnp.float32)[None]
    beta = beta_ref[pl.ds(start, channel_tile), :].astype(jnp.float32)[None]
    scale = gamma * lax.rsqrt(var + EPS)                            # (1, TC, 1)
    shift = beta - mean * scale                                     # (1, TC, 1)

    o_ref[...] = (x * scale + shift).astype(o_ref.dtype)


# --------------------------------------------------------------------------- #
# Tiling heuristics
# --------------------------------------------------------------------------- #
def _tensorcores_per_chip():
    """v7x packs 2 TensorCores per chip; v5e/v6e have 1."""
    try:
        kind = jax.devices()[0].device_kind.lower()
    except Exception:  # pragma: no cover - defensive
        return 1
    return 2 if "v7" in kind else 1


def _pick_channel_tile(C, N, HW, itemsize, *, tc_per_chip=1, vmem_budget=8 << 20):
    """Largest divisor of C (multiple of 8) fitting the VMEM budget while giving
    every TensorCore at least 2 grid steps (so DMA can pipeline behind compute)
    and keeping the grid balanced across TensorCores."""
    # Fixed cost: gamma/beta resident as (C, 1) blocks, lane-padded to 128,
    # conservatively counted at 2 buffers each.
    fixed = 2 * 2 * C * 128 * 4
    budget = max(vmem_budget - fixed, 0)
    # Per-channel cost: x in + out double-buffered at the I/O dtype, plus ~2
    # f32-sized in-kernel temporaries (the f32 upcast and (x-mean)^2 term).
    per_channel = 4 * N * HW * itemsize + 2 * N * HW * 4

    candidates = [tc for tc in range(8, C + 1, 8) if C % tc == 0]
    if not candidates:
        return C  # block dim == full array dim is always layout-legal

    min_grid = 2 * tc_per_chip
    fits = lambda tc: tc * per_channel <= budget

    def best(pred):
        ok = [tc for tc in candidates if pred(tc)]
        return max(ok) if ok else None

    # Prefer: fits VMEM, >= min_grid steps, grid evenly divisible across TCs.
    pick = best(lambda tc: fits(tc) and (C // tc) >= min_grid
                and (C // tc) % tc_per_chip == 0)
    if pick is None:  # relax the TC-balance constraint
        pick = best(lambda tc: fits(tc) and (C // tc) >= min_grid)
    if pick is None:  # relax the pipelining constraint
        pick = best(fits)
    if pick is None:  # nothing fits the budget: single full block fallback
        pick = C
    return pick


# --------------------------------------------------------------------------- #
# Wrapper
# --------------------------------------------------------------------------- #
def batchnorm2d_pallas(x_nchw, gamma, beta, *, channel_tile=None):
    """x_nchw: (N, C, H, W); gamma, beta: (C,). Returns (N, C, H, W)."""
    N, C, H, W = x_nchw.shape
    HW = H * W
    itemsize = jnp.dtype(x_nchw.dtype).itemsize

    if channel_tile is None:
        channel_tile = _pick_channel_tile(
            C, N, HW, itemsize, tc_per_chip=_tensorcores_per_chip())
    assert C % channel_tile == 0, "channel_tile must divide C"
    # TODO(synk): for very large N*H*W a single channel-tile block would blow
    # VMEM; that case needs an extra 'arbitrary' spatial grid axis with
    # sum/sumsq scratch accumulators plus a normalize pass.

    grid = (C // channel_tile,)
    inv_count = 1.0 / float(N * HW)
    kwargs = dict(channel_tile=channel_tile, inv_count=inv_count)

    gamma2 = gamma.reshape(C, 1)
    beta2 = beta.reshape(C, 1)
    # Constant index_map -> loaded once, resident across the whole grid.
    param_spec = pl.BlockSpec((C, 1), lambda i: (0, 0))
    cparams = pltpu.CompilerParams(dimension_semantics=("parallel",))

    if N == 1:
        # Squeezed 2-D layout: no dead batch axis in the kernel.
        x2 = x_nchw.reshape(C, HW)                      # free reshape
        out2 = pl.pallas_call(
            functools.partial(_bn_kernel_2d, **kwargs),
            out_shape=jax.ShapeDtypeStruct((C, HW), x_nchw.dtype),
            grid_spec=pltpu.PrefetchScalarGridSpec(
                num_scalar_prefetch=0,
                grid=grid,
                in_specs=[
                    pl.BlockSpec((channel_tile, HW), lambda i: (i, 0)),
                    param_spec,
                    param_spec,
                ],
                out_specs=pl.BlockSpec((channel_tile, HW), lambda i: (i, 0)),
            ),
            compiler_params=cparams,
        )(x2, gamma2, beta2)
        return out2.reshape(N, C, H, W)                 # free reshape back

    # General N > 1 path (reduce over batch and spatial axes).
    x3 = x_nchw.reshape(N, C, HW)                       # free reshape
    out3 = pl.pallas_call(
        functools.partial(_bn_kernel_3d, **kwargs),
        out_shape=jax.ShapeDtypeStruct((N, C, HW), x_nchw.dtype),
        grid_spec=pltpu.PrefetchScalarGridSpec(
            num_scalar_prefetch=0,
            grid=grid,
            in_specs=[
                pl.BlockSpec((N, channel_tile, HW), lambda i: (0, i, 0)),
                param_spec,
                param_spec,
            ],
            out_specs=pl.BlockSpec((N, channel_tile, HW), lambda i: (0, i, 0)),
        ),
        compiler_params=cparams,
    )(x3, gamma2, beta2)
    return out3.reshape(N, C, H, W)


# --------------------------------------------------------------------------- #
# Test
# --------------------------------------------------------------------------- #
def _reference_bn(x, gamma, beta):
    C = x.shape[1]
    mean = jnp.mean(x, axis=(0, 2, 3), keepdims=True)
    var = jnp.mean((x - mean) ** 2, axis=(0, 2, 3), keepdims=True)  # biased
    return (x - mean) / jnp.sqrt(var + EPS) * gamma.reshape(1, C, 1, 1) \
        + beta.reshape(1, C, 1, 1)


if __name__ == "__main__":
    key = jax.random.PRNGKey(0)

    # Spec shape from the PyTorch module: x402 = torch.randn([1, 1344, 14, 14]).
    N, C, H, W = 1, 1344, 14, 14
    k0, k1 = jax.random.split(key)
    x = jax.random.normal(k0, (N, C, H, W), dtype=jnp.float32)
    # nn.BatchNorm2d default parameter init: weight = ones, bias = zeros.
    gamma = jnp.ones((C,), dtype=jnp.float32)
    beta = jnp.zeros((C,), dtype=jnp.float32)
    # TODO(synk): running_mean/running_var buffer updates (momentum=0.1,
    # unbiased var for running_var) are training-time side effects not returned
    # by forward; not implemented.

    out = jax.block_until_ready(batchnorm2d_pallas(x, gamma, beta))
    ref = _reference_bn(x, gamma, beta)
    assert out.shape == x.shape and out.dtype == x.dtype
    assert jnp.allclose(out, ref, atol=1e-4, rtol=1e-4)

    # Small N > 1 sanity check of the generic 3-D path.
    N2, C2, H2, W2 = 2, 32, 8, 8
    x2 = jax.random.normal(k1, (N2, C2, H2, W2), dtype=jnp.float32)
    g2 = jnp.ones((C2,), dtype=jnp.float32)
    b2 = jnp.zeros((C2,), dtype=jnp.float32)
    out2 = jax.block_until_ready(batchnorm2d_pallas(x2, g2, b2))
    ref2 = _reference_bn(x2, g2, b2)
    assert jnp.allclose(out2, ref2, atol=1e-4, rtol=1e-4)

    print("KERNEL_OK")
</pallas_src>

<mosaic_0001>
module attributes {stable_mosaic.version = 11 : i64} {
  func.func @_bn_kernel_2d(%arg0: i32, %arg1: memref<672x196xf32, #tpu.memory_space<vmem>>, %arg2: memref<1344x1xf32, #tpu.memory_space<vmem>>, %arg3: memref<1344x1xf32, #tpu.memory_space<vmem>>, %arg4: memref<672x196xf32, #tpu.memory_space<vmem>>) attributes {dimension_semantics = [#tpu.dimension_semantics<parallel>], iteration_bounds = array<i64: 2>, scalar_prefetch = 0 : i64, scratch_operands = 0 : i64, tpu.core_type = #tpu.core_type<tc>, window_params = [{transform_indices = @transform_0, window_bounds = array<i64: 672, 196>}, {pipeline_mode = #tpu.pipeline_mode<synchronous>, transform_indices = @transform_1, window_bounds = array<i64: 1344, 1>}, {pipeline_mode = #tpu.pipeline_mode<synchronous>, transform_indices = @transform_2, window_bounds = array<i64: 1344, 1>}, {transform_indices = @transform_3, window_bounds = array<i64: 672, 196>}]} {
    %c672_i32 = arith.constant 672 : i32
    %0 = arith.muli %arg0, %c672_i32 : i32
    %1 = tpu.assume_multiple %0, 672 : i32
    %c0 = arith.constant 0 : index
    %c0_0 = arith.constant 0 : index
    %2 = vector.load %arg1[%c0, %c0_0] : memref<672x196xf32, #tpu.memory_space<vmem>>, vector<672x196xf32>
    %cst = arith.constant dense<0.000000e+00> : vector<672xf32>
    %3 = vector.multi_reduction <add>, %2, %cst [1] : vector<672x196xf32> to vector<672xf32>
    %4 = vector.shape_cast %3 : vector<672xf32> to vector<672x1xf32>
    %cst_1 = arith.constant 0.00510204071 : f32
    %5 = vector.broadcast %cst_1 : f32 to vector<672x1xf32>
    %6 = arith.mulf %4, %5 : vector<672x1xf32>
    %7 = vector.broadcast %6 : vector<672x1xf32> to vector<672x196xf32>
    %8 = arith.subf %2, %7 : vector<672x196xf32>
    %9 = arith.mulf %8, %8 : vector<672x196xf32>
    %cst_2 = arith.constant dense<0.000000e+00> : vector<672xf32>
    %10 = vector.multi_reduction <add>, %9, %cst_2 [1] : vector<672x196xf32> to vector<672xf32>
    %11 = vector.shape_cast %10 : vector<672xf32> to vector<672x1xf32>
    %cst_3 = arith.constant 0.00510204071 : f32
    %12 = vector.broadcast %cst_3 : f32 to vector<672x1xf32>
    %13 = arith.mulf %11, %12 : vector<672x1xf32>
    %14 = arith.index_cast %1 : i32 to index
    %c0_4 = arith.constant 0 : index
    %15 = vector.load %arg2[%14, %c0_4] : memref<1344x1xf32, #tpu.memory_space<vmem>>, vector<672x1xf32>
    %16 = arith.index_cast %1 : i32 to index
    %c0_5 = arith.constant 0 : index
    %17 = vector.load %arg3[%16, %c0_5] : memref<1344x1xf32, #tpu.memory_space<vmem>>, vector<672x1xf32>
    %cst_6 = arith.constant 1.000000e-03 : f32
    %18 = vector.broadcast %cst_6 : f32 to vector<672x1xf32>
    %19 = arith.addf %13, %18 : vector<672x1xf32>
    %20 = math.rsqrt %19 : vector<672x1xf32>
    %21 = arith.mulf %15, %20 : vector<672x1xf32>
    %22 = arith.mulf %6, %21 : vector<672x1xf32>
    %23 = arith.subf %17, %22 : vector<672x1xf32>
    %24 = vector.broadcast %21 : vector<672x1xf32> to vector<672x196xf32>
    %25 = arith.mulf %2, %24 : vector<672x196xf32>
    %26 = vector.broadcast %23 : vector<672x1xf32> to vector<672x196xf32>
    %27 = arith.addf %25, %26 : vector<672x196xf32>
    %c0_7 = arith.constant 0 : index
    %c0_8 = arith.constant 0 : index
    %28 = vector.load %arg4[%c0_7, %c0_8] : memref<672x196xf32, #tpu.memory_space<vmem>>, vector<672x196xf32>
    tpu.vector_store %arg4[%c0_7, %c0_8], %27 {strides = array<i32>} : memref<672x196xf32, #tpu.memory_space<vmem>>, vector<672x196xf32>,
    return
  }
  func.func @transform_0(%arg0: i32) -> (i32, i32) {
    %c0_i32 = arith.constant 0 : i32
    %c0_i32_0 = arith.constant 0 : i32
    return %arg0, %c0_i32 : i32, i32
  }
  func.func @transform_1(%arg0: i32) -> (i32, i32) {
    %c0_i32 = arith.constant 0 : i32
    %c0_i32_0 = arith.constant 0 : i32
    %c0_i32_1 = arith.constant 0 : i32
    return %c0_i32, %c0_i32_0 : i32, i32
  }
  func.func @transform_2(%arg0: i32) -> (i32, i32) {
    %c0_i32 = arith.constant 0 : i32
    %c0_i32_0 = arith.constant 0 : i32
    %c0_i32_1 = arith.constant 0 : i32
    return %c0_i32, %c0_i32_0 : i32, i32
  }
  func.func @transform_3(%arg0: i32) -> (i32, i32) {
    %c0_i32 = arith.constant 0 : i32
    %c0_i32_0 = arith.constant 0 : i32
    return %arg0, %c0_i32 : i32, i32
  }
}

</mosaic_0001>

<llo_original>
// kernel: tpu_custom_call.1
$region0: #{tpu_custom_call.1}
  #allocation0 [shape = 'u32[]', space=smem, size = 0x4, offset = 0x4, fixed_abs, tag = 'smem constant byte address 0x4 - core index']
  #allocation1 [shape = 'u32[72,128]{1,0:T(1,128)}', space=vmem, size = 0x9000, scoped, tag = 'internal scratch']
  %s0 = inlined_call_operand.vmem [shape: f32[1344,196], index: 0, kind: input, shape index: {}]
  %s1 = inlined_call_operand.vmem [shape: f32[1344,1], index: 1, kind: input, shape index: {}]
  %s2 = inlined_call_operand.vmem [shape: f32[1344,1], index: 2, kind: input, shape index: {}]
  %s3 = inlined_call_operand.vmem [shape: f32[1344,196], index: 3, kind: output, shape index: {}]
  %s4 = sld [smem:[#allocation0]]
  $region45: #{tpu_custom_call.1} parent=0
    _
  %s6 = ssub.s32 1, %s4
  %s7 = scalar_select 0, %s6, %s4
  loop: start=0, step=1, limit=4
  $region2: #{tpu_custom_call.1} parent=0 // loop_pre_header
    _
  $region3: #{tpu_custom_call.1} parent=0 // loop_header
    %s9 = sphi 0, %s13
    %p10 = scmp.ge.s32.totalorder %s9, 4
    %s19 = sphi 0, %s21
    %s22 = sphi 0, %s19
    %s23 = sphi 0, %s22
    %s39 = sphi 0, %s23
    %s43 = sphi 0, %s43
    %s45 = sphi 0, %s43
    %s46 = sphi 0, %s45
    %s60 = sphi 0, %s46
    %s64 = sphi 0, %s64
    %s66 = sphi 0, %s64
    %s67 = sphi 0, %s66
    %s81 = sphi 0, %s67
    %s87 = sphi 0, %s89
    %s90 = sphi 0, %s87
    %s91 = sphi 0, %s90
    %s107 = sphi 0, %s91
  $region4: #{tpu_custom_call.1} parent=0 // loop_header_branch
    %12 = sbr.rel (%p10) target = $region8
  $region5: #{tpu_custom_call.1} parent=0 // loop_body
    %s14 = ssub.s32 %s9, 1
    %s15 = ssub.s32 %s9, 2
    %s16 = sadd.s32 %s9, 1
    %s17 = ssub.s32 %s9, %s16
    %p18 = scmp.eq.s32.totalorder %s17, 0
    %s20 = sadd.s32 %s19, 1
    %s21 = scalar_select %p18, %s19, %s20
    %p24 = pneg %p18
    %p25 = scmp.eq.s32.totalorder %s9, 1
    %p26 = por %p24, %p25
    %p27 = scmp.ne.s32.totalorder %s19, %s22
    %p28 = scmp.eq.s32.totalorder %s9, 0
    %p29 = por %p27, %p28
    %p30 = scmp.ne.s32.totalorder %s19, %s22
    %p31 = scmp.eq.s32.totalorder %s14, 1
    %p32 = por %p30, %p31
    %p33 = scmp.ne.s32.totalorder %s22, %s23
    %p34 = scmp.eq.s32.totalorder %s14, 0
    %p35 = por %p33, %p34
    %p36 = scmp.ne.s32.totalorder %s22, %s23
    %p37 = scmp.eq.s32.totalorder %s15, 1
    %p38 = por %p36, %p37
    %p40 = scmp.ne.s32.totalorder %s23, %s39
    %p41 = scmp.eq.s32.totalorder %s15, 0
    %p42 = por %p40, %p41
    %s44 = sadd.s32 %s43, 1
    %p47 = scmp.eq.s32.totalorder %s9, 1
    %p48 = scmp.ne.s32.totalorder %s43, %s45
    %p49 = scmp.eq.s32.totalorder %s9, 0
    %p50 = por %p48, %p49
    %p51 = scmp.ne.s32.totalorder %s43, %s45
    %p52 = scmp.eq.s32.totalorder %s14, 1
    %p53 = por %p51, %p52
    %p54 = scmp.ne.s32.totalorder %s45, %s46
    %p55 = scmp.eq.s32.totalorder %s14, 0
    %p56 = por %p54, %p55
    %p57 = scmp.ne.s32.totalorder %s45, %s46
    %p58 = scmp.eq.s32.totalorder %s15, 1
    %p59 = por %p57, %p58
    %p61 = scmp.ne.s32.totalorder %s46, %s60
    %p62 = scmp.eq.s32.totalorder %s15, 0
    %p63 = por %p61, %p62
    %s65 = sadd.s32 %s64, 1
    %p68 = scmp.eq.s32.totalorder %s9, 1
    %p69 = scmp.ne.s32.totalorder %s64, %s66
    %p70 = scmp.eq.s32.totalorder %s9, 0
    %p71 = por %p69, %p70
    %p72 = scmp.ne.s32.totalorder %s64, %s66
    %p73 = scmp.eq.s32.totalorder %s14, 1
    %p74 = por %p72, %p73
    %p75 = scmp.ne.s32.totalorder %s66, %s67
    %p76 = scmp.eq.s32.totalorder %s14, 0
    %p77 = por %p75, %p76
    %p78 = scmp.ne.s32.totalorder %s66, %s67
    %p79 = scmp.eq.s32.totalorder %s15, 1
    %p80 = por %p78, %p79
    %p82 = scmp.ne.s32.totalorder %s67, %s81
    %p83 = scmp.eq.s32.totalorder %s15, 0
    %p84 = por %p82, %p83
    %s85 = ssub.s32 %s9, %s16
    %p86 = scmp.eq.s32.totalorder %s85, 0
    %s88 = sadd.s32 %s87, 1
    %s89 = scalar_select %p86, %s87, %s88
    %p92 = pneg %p86
    %p93 = scmp.eq.s32.totalorder %s9, 1
    %p94 = por %p92, %p93
    %p95 = scmp.ne.s32.totalorder %s87, %s90
    %p96 = scmp.eq.s32.totalorder %s9, 0
    %p97 = por %p95, %p96
    %p98 = scmp.ne.s32.totalorder %s87, %s90
    %p99 = scmp.eq.s32.totalorder %s14, 1
    %p100 = por %p98, %p99
    %p101 = scmp.ne.s32.totalorder %s90, %s91
    %p102 = scmp.eq.s32.totalorder %s14, 0
    %p103 = por %p101, %p102
    %p104 = scmp.ne.s32.totalorder %s90, %s91
    %p105 = scmp.eq.s32.totalorder %s15, 1
    %p106 = por %p104, %p105
    %p108 = scmp.ne.s32.totalorder %s91, %s107
    %p109 = scmp.eq.s32.totalorder %s15, 0
    %p110 = por %p108, %p109
    %p111 = scmp.le.s32.totalorder 1, %s9
    %p112 = scmp.lt.s32.totalorder %s9, 3
    %p113 = pnand %p111, %p112
    %p114 = pneg %p113
    // Predicated region
    $region9: #{tpu_custom_call.1} parent=5 // pred_check
      _
    $region10: #{tpu_custom_call.1} parent=5 // pred_check_branch
      %116 = sbr.rel (%p113) target = $region12
    $region11: #{tpu_custom_call.1} parent=5 // pred_region
      %s117 = ssub.s32 %s9, 1
      // Predicated region
      $region13: #{tpu_custom_call.1} parent=11 // pred_check
        %p118 = pneg %p56
      $region14: #{tpu_custom_call.1} parent=11 // pred_check_branch
        %120 = sbr.rel (%p118) target = $region16
      $region15: #{tpu_custom_call.1} parent=11 // pred_region
        _
      $region16: #{tpu_custom_call.1} parent=11 // pred_fallthru
        _
      // Predicated region
      $region17: #{tpu_custom_call.1} parent=11 // pred_check
        %p121 = pneg %p77
      $region18: #{tpu_custom_call.1} parent=11 // pred_check_branch
        %123 = sbr.rel (%p121) target = $region20
      $region19: #{tpu_custom_call.1} parent=11 // pred_region
        _
      $region20: #{tpu_custom_call.1} parent=11 // pred_fallthru
        _
    $region12: #{tpu_custom_call.1} parent=5 // pred_fallthru
      _
    %p124 = scmp.lt.s32.totalorder %s9, 2
    // Predicated region
    $region21: #{tpu_custom_call.1} parent=5 // pred_check
      %p125 = pneg %p124
    $region22: #{tpu_custom_call.1} parent=5 // pred_check_branch
      %127 = sbr.rel (%p125) target = $region24
    $region23: #{tpu_custom_call.1} parent=5 // pred_region
      // Predicated region
      $region25: #{tpu_custom_call.1} parent=23 // pred_check
        %p128 = pneg %p29
      $region26: #{tpu_custom_call.1} parent=23 // pred_check_branch
        %130 = sbr.rel (%p128) target = $region28
      $region27: #{tpu_custom_call.1} parent=23 // pred_region
        %s131 = smul.u32 84, %s9
        %p132 = scmp.lt.s32.totalorder %s131, 167
        %s133 = scalar_select %p132, %s131, 167
        %s134 = smul.addr %s133, 2
        %s135 = smul.addr %s134, 8
        %s136 = scalar_lea.vmem %s0, %s135
        %s137 = smul.u32 84, %s9
      $region28: #{tpu_custom_call.1} parent=23 // pred_fallthru
        _
    $region24: #{tpu_custom_call.1} parent=5 // pred_fallthru
      _
    %p138 = scmp.le.s32.totalorder 1, %s9
    %p139 = scmp.lt.s32.totalorder %s9, 3
    %p140 = pnand %p138, %p139
    %p141 = pneg %p140
    // Predicated region
    $region29: #{tpu_custom_call.1} parent=5 // pred_check
      _
    $region30: #{tpu_custom_call.1} parent=5 // pred_check_branch
      %143 = sbr.rel (%p140) target = $region32
    $region31: #{tpu_custom_call.1} parent=5 // pred_region
      %s144 = ssub.s32 %s9, 1
      %s145 = smul.u32 84, %s14
      %p146 = scmp.lt.s32.totalorder %s145, 167
      %s147 = scalar_select %p146, %s145, 167
      %s148 = smul.addr %s147, 2
      %s149 = smul.addr %s148, 8
      %s150 = scalar_lea.vmem %s0, %s149
      %p151 = pneg %p35
      %p152 = pneg %p32
      %p153 = pneg %p56
      %p154 = pneg %p53
      %p155 = pneg %p77
      %p156 = pneg %p74
      %p157 = pneg %p103
      %p158 = pneg %p100
      %s159 = smul.u32 84, %s14
      %p160 = scmp.lt.s32.totalorder %s159, 167
      %s161 = scalar_select %p160, %s159, 167
      %s162 = smul.addr %s161, 2
      %s163 = smul.addr %s162, 8
      %s164 = scalar_lea.vmem %s3, %s163
      %s165 = smul.u32 84, %s14
      %p166 = scmp.lt.s32.totalorder %s165, 167
      %s167 = scalar_select %p166, %s165, 167
      %s168 = smul.addr %s167, 2
      %s169 = smul.addr %s168, 8
      %s170 = scalar_lea.vmem %s0, %s169
      %s171 = smul.u32 84, %s14
      %s172 = smul.u32 84, %s14
      %p173 = scmp.lt.s32.totalorder %s172, 167
      %s174 = scalar_select %p173, %s172, 167
      %s175 = smul.addr %s174, 2
      %s176 = smul.addr %s175, 8
      %s177 = scalar_lea.vmem %s3, %s176
      %s178 = smul.u32 84, %s14
      %s179 = smul.u32 %s14, 672
      %v180 = vld [vmem:[%s170] sm:$0xff]
      %v181 = vld [vmem:[%s170 + $0x8] sm:$0xff]
      %v182 = vld [vmem:[%s170 + $0x10] sm:$0xff]
      %v183 = vld [vmem:[%s170 + $0x18] sm:$0xff]
      %v184 = vld [vmem:[%s170 + $0x20] sm:$0xff]
      %v185 = vld [vmem:[%s170 + $0x28] sm:$0xff]
      %v186 = vld [vmem:[%s170 + $0x30] sm:$0xff]
      %v187 = vld [vmem:[%s170 + $0x38] sm:$0xff]
      %v188 = vld [vmem:[%s170 + $0x40] sm:$0xff]
      %v189 = vld [vmem:[%s170 + $0x48] sm:$0xff]
      %v190 = vld [vmem:[%s170 + $0x50] sm:$0xff]
      %v191 = vld [vmem:[%s170 + $0x58] sm:$0xff]
      %v192 = vld [vmem:[%s170 + $0x60] sm:$0xff]
      %v193 = vld [vmem:[%s170 + $0x68] sm:$0xff]
      %v194 = vld [vmem:[%s170 + $0x70] sm:$0xff]
      %v195 = vld [vmem:[%s170 + $0x78] sm:$0xff]
      %v196 = vld [vmem:[%s170 + $0x80] sm:$0xff]
      %v197 = vld [vmem:[%s170 + $0x88] sm:$0xff]
      %v198 = vld [vmem:[%s170 + $0x90] sm:$0xff]
      %v199 = vld [vmem:[%s170 + $0x98] sm:$0xff]
      %v200 = vld [vmem:[%s170 + $0xa0] sm:$0xff]
      %v201 = vld [vmem:[%s170 + $0xa8] sm:$0xff]
      %v202 = vld [vmem:[%s170 + $0xb0] sm:$0xff]
      %v203 = vld [vmem:[%s170 + $0xb8] sm:$0xff]
      %v204 = vld [vmem:[%s170 + $0xc0] sm:$0xff]
      %v205 = vld [vmem:[%s170 + $0xc8] sm:$0xff]
      %v206 = vld [vmem:[%s170 + $0xd0] sm:$0xff]
      %v207 = vld [vmem:[%s170 + $0xd8] sm:$0xff]
      %v208 = vld [vmem:[%s170 + $0xe0] sm:$0xff]
      %v209 = vld [vmem:[%s170 + $0xe8] sm:$0xff]
      %v210 = vld [vmem:[%s170 + $0xf0] sm:$0xff]
      %v211 = vld [vmem:[%s170 + $0xf8] sm:$0xff]
      %v212 = vld [vmem:[%s170 + $0x100] sm:$0xff]
      %v213 = vld [vmem:[%s170 + $0x108] sm:$0xff]
      %v214 = vld [vmem:[%s170 + $0x110] sm:$0xff]
      %v215 = vld [vmem:[%s170 + $0x118] sm:$0xff]
      %v216 = vld [vmem:[%s170 + $0x120] sm:$0xff]
      %v217 = vld [vmem:[%s170 + $0x128] sm:$0xff]
      %v218 = vld [vmem:[%s170 + $0x130] sm:$0xff]
      %v219 = vld [vmem:[%s170 + $0x138] sm:$0xff]
      %v220 = vld [vmem:[%s170 + $0x140] sm:$0xff]
      %v221 = vld [vmem:[%s170 + $0x148] sm:$0xff]
      %v222 = vld [vmem:[%s170 + $0x150] sm:$0xff]
      %v223 = vld [vmem:[%s170 + $0x158] sm:$0xff]
      %v224 = vld [vmem:[%s170 + $0x160] sm:$0xff]
      %v225 = vld [vmem:[%s170 + $0x168] sm:$0xff]
      %v226 = vld [vmem:[%s170 + $0x170] sm:$0xff]
      %v227 = vld [vmem:[%s170 + $0x178] sm:$0xff]
      %v228 = vld [vmem:[%s170 + $0x180] sm:$0xff]
      %v229 = vld [vmem:[%s170 + $0x188] sm:$0xff]
      %v230 = vld [vmem:[%s170 + $0x190] sm:$0xff]
      %v231 = vld [vmem:[%s170 + $0x198] sm:$0xff]
      %v232 = vld [vmem:[%s170 + $0x1a0] sm:$0xff]
      %v233 = vld [vmem:[%s170 + $0x1a8] sm:$0xff]
      %v234 = vld [vmem:[%s170 + $0x1b0] sm:$0xff]
      %v235 = vld [vmem:[%s170 + $0x1b8] sm:$0xff]
      %v236 = vld [vmem:[%s170 + $0x1c0] sm:$0xff]
      %v237 = vld [vmem:[%s170 + $0x1c8] sm:$0xff]
      %v238 = vld [vmem:[%s170 + $0x1d0] sm:$0xff]
      %v239 = vld [vmem:[%s170 + $0x1d8] sm:$0xff]
      %v240 = vld [vmem:[%s170 + $0x1e0] sm:$0xff]
      %v241 = vld [vmem:[%s170 + $0x1e8] sm:$0xff]
      %v242 = vld [vmem:[%s170 + $0x1f0] sm:$0xff]
      %v243 = vld [vmem:[%s170 + $0x1f8] sm:$0xff]
      %v244 = vld [vmem:[%s170 + $0x200] sm:$0xff]
      %v245 = vld [vmem:[%s170 + $0x208] sm:$0xff]
      %v246 = vld [vmem:[%s170 + $0x210] sm:$0xff]
      %v247 = vld [vmem:[%s170 + $0x218] sm:$0xff]
      %v248 = vld [vmem:[%s170 + $0x220] sm:$0xff]
      %v249 = vld [vmem:[%s170 + $0x228] sm:$0xff]
      %v250 = vld [vmem:[%s170 + $0x230] sm:$0xff]
      %v251 = vld [vmem:[%s170 + $0x238] sm:$0xff]
      %v252 = vld [vmem:[%s170 + $0x240] sm:$0xff]
      %v253 = vld [vmem:[%s170 + $0x248] sm:$0xff]
      %v254 = vld [vmem:[%s170 + $0x250] sm:$0xff]
      %v255 = vld [vmem:[%s170 + $0x258] sm:$0xff]
      %v256 = vld [vmem:[%s170 + $0x260] sm:$0xff]
      %v257 = vld [vmem:[%s170 + $0x268] sm:$0xff]
      %v258 = vld [vmem:[%s170 + $0x270] sm:$0xff]
      %v259 = vld [vmem:[%s170 + $0x278] sm:$0xff]
      %v260 = vld [vmem:[%s170 + $0x280] sm:$0xff]
      %v261 = vld [vmem:[%s170 + $0x288] sm:$0xff]
      %v262 = vld [vmem:[%s170 + $0x290] sm:$0xff]
      %v263 = vld [vmem:[%s170 + $0x298] sm:$0xff]
      %v264 = vld [vmem:[%s170 + $0x2a0] sm:$0xff]
      %v265 = vld [vmem:[%s170 + $0x2a8] sm:$0xff]
      %v266 = vld [vmem:[%s170 + $0x2b0] sm:$0xff]
      %v267 = vld [vmem:[%s170 + $0x2b8] sm:$0xff]
      %v268 = vld [vmem:[%s170 + $0x2c0] sm:$0xff]
      %v269 = vld [vmem:[%s170 + $0x2c8] sm:$0xff]
      %v270 = vld [vmem:[%s170 + $0x2d0] sm:$0xff]
      %v271 = vld [vmem:[%s170 + $0x2d8] sm:$0xff]
      %v272 = vld [vmem:[%s170 + $0x2e0] sm:$0xff]
      %v273 = vld [vmem:[%s170 + $0x2e8] sm:$0xff]
      %v274 = vld [vmem:[%s170 + $0x2f0] sm:$0xff]
      %v275 = vld [vmem:[%s170 + $0x2f8] sm:$0xff]
      %v276 = vld [vmem:[%s170 + $0x300] sm:$0xff]
      %v277 = vld [vmem:[%s170 + $0x308] sm:$0xff]
      %v278 = vld [vmem:[%s170 + $0x310] sm:$0xff]
      %v279 = vld [vmem:[%s170 + $0x318] sm:$0xff]
      %v280 = vld [vmem:[%s170 + $0x320] sm:$0xff]
      %v281 = vld [vmem:[%s170 + $0x328] sm:$0xff]
      %v282 = vld [vmem:[%s170 + $0x330] sm:$0xff]
      %v283 = vld [vmem:[%s170 + $0x338] sm:$0xff]
      %v284 = vld [vmem:[%s170 + $0x340] sm:$0xff]
      %v285 = vld [vmem:[%s170 + $0x348] sm:$0xff]
      %v286 = vld [vmem:[%s170 + $0x350] sm:$0xff]
      %v287 = vld [vmem:[%s170 + $0x358] sm:$0xff]
      %v288 = vld [vmem:[%s170 + $0x360] sm:$0xff]
      %v289 = vld [vmem:[%s170 + $0x368] sm:$0xff]
      %v290 = vld [vmem:[%s170 + $0x370] sm:$0xff]
      %v291 = vld [vmem:[%s170 + $0x378] sm:$0xff]
      %v292 = vld [vmem:[%s170 + $0x380] sm:$0xff]
      %v293 = vld [vmem:[%s170 + $0x388] sm:$0xff]
      %v294 = vld [vmem:[%s170 + $0x390] sm:$0xff]
      %v295 = vld [vmem:[%s170 + $0x398] sm:$0xff]
      %v296 = vld [vmem:[%s170 + $0x3a0] sm:$0xff]
      %v297 = vld [vmem:[%s170 + $0x3a8] sm:$0xff]
      %v298 = vld [vmem:[%s170 + $0x3b0] sm:$0xff]
      %v299 = vld [vmem:[%s170 + $0x3b8] sm:$0xff]
      %v300 = vld [vmem:[%s170 + $0x3c0] sm:$0xff]
      %v301 = vld [vmem:[%s170 + $0x3c8] sm:$0xff]
      %v302 = vld [vmem:[%s170 + $0x3d0] sm:$0xff]
      %v303 = vld [vmem:[%s170 + $0x3d8] sm:$0xff]
      %v304 = vld [vmem:[%s170 + $0x3e0] sm:$0xff]
      %v305 = vld [vmem:[%s170 + $0x3e8] sm:$0xff]
      %v306 = vld [vmem:[%s170 + $0x3f0] sm:$0xff]
      %v307 = vld [vmem:[%s170 + $0x3f8] sm:$0xff]
      %v308 = vld [vmem:[%s170 + $0x400] sm:$0xff]
      %v309 = vld [vmem:[%s170 + $0x408] sm:$0xff]
      %v310 = vld [vmem:[%s170 + $0x410] sm:$0xff]
      %v311 = vld [vmem:[%s170 + $0x418] sm:$0xff]
      %v312 = vld [vmem:[%s170 + $0x420] sm:$0xff]
      %v313 = vld [vmem:[%s170 + $0x428] sm:$0xff]
      %v314 = vld [vmem:[%s170 + $0x430] sm:$0xff]
      %v315 = vld [vmem:[%s170 + $0x438] sm:$0xff]
      %v316 = vld [vmem:[%s170 + $0x440] sm:$0xff]
      %v317 = vld [vmem:[%s170 + $0x448] sm:$0xff]
      %v318 = vld [vmem:[%s170 + $0x450] sm:$0xff]
      %v319 = vld [vmem:[%s170 + $0x458] sm:$0xff]
      %v320 = vld [vmem:[%s170 + $0x460] sm:$0xff]
      %v321 = vld [vmem:[%s170 + $0x468] sm:$0xff]
      %v322 = vld [vmem:[%s170 + $0x470] sm:$0xff]
      %v323 = vld [vmem:[%s170 + $0x478] sm:$0xff]
      %v324 = vld [vmem:[%s170 + $0x480] sm:$0xff]
      %v325 = vld [vmem:[%s170 + $0x488] sm:$0xff]
      %v326 = vld [vmem:[%s170 + $0x490] sm:$0xff]
      %v327 = vld [vmem:[%s170 + $0x498] sm:$0xff]
      %v328 = vld [vmem:[%s170 + $0x4a0] sm:$0xff]
      %v329 = vld [vmem:[%s170 + $0x4a8] sm:$0xff]
      %v330 = vld [vmem:[%s170 + $0x4b0] sm:$0xff]
      %v331 = vld [vmem:[%s170 + $0x4b8] sm:$0xff]
      %v332 = vld [vmem:[%s170 + $0x4c0] sm:$0xff]
      %v333 = vld [vmem:[%s170 + $0x4c8] sm:$0xff]
      %v334 = vld [vmem:[%s170 + $0x4d0] sm:$0xff]
      %v335 = vld [vmem:[%s170 + $0x4d8] sm:$0xff]
      %v336 = vld [vmem:[%s170 + $0x4e0] sm:$0xff]
      %v337 = vld [vmem:[%s170 + $0x4e8] sm:$0xff]
      %v338 = vld [vmem:[%s170 + $0x4f0] sm:$0xff]
      %v339 = vld [vmem:[%s170 + $0x4f8] sm:$0xff]
      %v340 = vld [vmem:[%s170 + $0x500] sm:$0xff]
      %v341 = vld [vmem:[%s170 + $0x508] sm:$0xff]
      %v342 = vld [vmem:[%s170 + $0x510] sm:$0xff]
      %v343 = vld [vmem:[%s170 + $0x518] sm:$0xff]
      %v344 = vld [vmem:[%s170 + $0x520] sm:$0xff]
      %v345 = vld [vmem:[%s170 + $0x528] sm:$0xff]
      %v346 = vld [vmem:[%s170 + $0x530] sm:$0xff]
      %v347 = vld [vmem:[%s170 + $0x538] sm:$0xff]
      %vm348 = vcmask 556032
      %v349 = vsel %vm348, %v181, 0.0
      %v350 = vadd.f32 %v180, %v349
      %351 = vadd.xlane.f32.xlu0 %v350
      %v352 = vpop.xlane.xlu0 %351
      %v353 = vsel %vm348, %v183, 0.0
      %v354 = vadd.f32 %v182, %v353
      %355 = vadd.xlane.f32.xlu0 %v354
      %v356 = vpop.xlane.xlu0 %355
      %v357 = vsel %vm348, %v185, 0.0
      %v358 = vadd.f32 %v184, %v357
      %359 = vadd.xlane.f32.xlu0 %v358
      %v360 = vpop.xlane.xlu0 %359
      %v361 = vsel %vm348, %v187, 0.0
      %v362 = vadd.f32 %v186, %v361
      %363 = vadd.xlane.f32.xlu0 %v362
      %v364 = vpop.xlane.xlu0 %363
      %v365 = vsel %vm348, %v189, 0.0
      %v366 = vadd.f32 %v188, %v365
      %367 = vadd.xlane.f32.xlu0 %v366
      %v368 = vpop.xlane.xlu0 %367
      %v369 = vsel %vm348, %v191, 0.0
      %v370 = vadd.f32 %v190, %v369
      %371 = vadd.xlane.f32.xlu0 %v370
      %v372 = vpop.xlane.xlu0 %371
      %v373 = vsel %vm348, %v193, 0.0
      %v374 = vadd.f32 %v192, %v373
      %375 = vadd.xlane.f32.xlu0 %v374
      %v376 = vpop.xlane.xlu0 %375
      %v377 = vsel %vm348, %v195, 0.0
      %v378 = vadd.f32 %v194, %v377
      %379 = vadd.xlane.f32.xlu0 %v378
      %v380 = vpop.xlane.xlu0 %379
      %v381 = vsel %vm348, %v197, 0.0
      %v382 = vadd.f32 %v196, %v381
      %383 = vadd.xlane.f32.xlu0 %v382
      %v384 = vpop.xlane.xlu0 %383
      %v385 = vsel %vm348, %v199, 0.0
      %v386 = vadd.f32 %v198, %v385
      %387 = vadd.xlane.f32.xlu0 %v386
      %v388 = vpop.xlane.xlu0 %387
      %v389 = vsel %vm348, %v201, 0.0
      %v390 = vadd.f32 %v200, %v389
      %391 = vadd.xlane.f32.xlu0 %v390
      %v392 = vpop.xlane.xlu0 %391
      %v393 = vsel %vm348, %v203, 0.0
      %v394 = vadd.f32 %v202, %v393
      %395 = vadd.xlane.f32.xlu0 %v394
      %v396 = vpop.xlane.xlu0 %395
      %v397 = vsel %vm348, %v205, 0.0
      %v398 = vadd.f32 %v204, %v397
      %399 = vadd.xlane.f32.xlu0 %v398
      %v400 = vpop.xlane.xlu0 %399
      %v401 = vsel %vm348, %v207, 0.0
      %v402 = vadd.f32 %v206, %v401
      %403 = vadd.xlane.f32.xlu0 %v402
      %v404 = vpop.xlane.xlu0 %403
      %v405 = vsel %vm348, %v209, 0.0
      %v406 = vadd.f32 %v208, %v405
      %407 = vadd.xlane.f32.xlu0 %v406
      %v408 = vpop.xlane.xlu0 %407
      %v409 = vsel %vm348, %v211, 0.0
      %v410 = vadd.f32 %v210, %v409
      %411 = vadd.xlane.f32.xlu0 %v410
      %v412 = vpop.xlane.xlu0 %411
      %v413 = vsel %vm348, %v213, 0.0
      %v414 = vadd.f32 %v212, %v413
      %415 = vadd.xlane.f32.xlu0 %v414
      %v416 = vpop.xlane.xlu0 %415
      %v417 = vsel %vm348, %v215, 0.0
      %v418 = vadd.f32 %v214, %v417
      %419 = vadd.xlane.f32.xlu0 %v418
      %v420 = vpop.xlane.xlu0 %419
      %v421 = vsel %vm348, %v217, 0.0
      %v422 = vadd.f32 %v216, %v421
      %423 = vadd.xlane.f32.xlu0 %v422
      %v424 = vpop.xlane.xlu0 %423
      %v425 = vsel %vm348, %v219, 0.0
      %v426 = vadd.f32 %v218, %v425
      %427 = vadd.xlane.f32.xlu0 %v426
      %v428 = vpop.xlane.xlu0 %427
      %v429 = vsel %vm348, %v221, 0.0
      %v430 = vadd.f32 %v220, %v429
      %431 = vadd.xlane.f32.xlu0 %v430
      %v432 = vpop.xlane.xlu0 %431
      %v433 = vsel %vm348, %v223, 0.0
      %v434 = vadd.f32 %v222, %v433
      %435 = vadd.xlane.f32.xlu0 %v434
      %v436 = vpop.xlane.xlu0 %435
      %v437 = vsel %vm348, %v225, 0.0
      %v438 = vadd.f32 %v224, %v437
      %439 = vadd.xlane.f32.xlu0 %v438
      %v440 = vpop.xlane.xlu0 %439
      %v441 = vsel %vm348, %v227, 0.0
      %v442 = vadd.f32 %v226, %v441
      %443 = vadd.xlane.f32.xlu0 %v442
      %v444 = vpop.xlane.xlu0 %443
      %v445 = vsel %vm348, %v229, 0.0
      %v446 = vadd.f32 %v228, %v445
      %447 = vadd.xlane.f32.xlu0 %v446
      %v448 = vpop.xlane.xlu0 %447
      %v449 = vsel %vm348, %v231, 0.0
      %v450 = vadd.f32 %v230, %v449
      %451 = vadd.xlane.f32.xlu0 %v450
      %v452 = vpop.xlane.xlu0 %451
      %v453 = vsel %vm348, %v233, 0.0
      %v454 = vadd.f32 %v232, %v453
      %455 = vadd.xlane.f32.xlu0 %v454
      %v456 = vpop.xlane.xlu0 %455
      %v457 = vsel %vm348, %v235, 0.0
      %v458 = vadd.f32 %v234, %v457
      %459 = vadd.xlane.f32.xlu0 %v458
      %v460 = vpop.xlane.xlu0 %459
      %v461 = vsel %vm348, %v237, 0.0
      %v462 = vadd.f32 %v236, %v461
      %463 = vadd.xlane.f32.xlu0 %v462
      %v464 = vpop.xlane.xlu0 %463
      %v465 = vsel %vm348, %v239, 0.0
      %v466 = vadd.f32 %v238, %v465
      %467 = vadd.xlane.f32.xlu0 %v466
      %v468 = vpop.xlane.xlu0 %467
      %v469 = vsel %vm348, %v241, 0.0
      %v470 = vadd.f32 %v240, %v469
      %471 = vadd.xlane.f32.xlu0 %v470
      %v472 = vpop.xlane.xlu0 %471
      %v473 = vsel %vm348, %v243, 0.0
      %v474 = vadd.f32 %v242, %v473
      %475 = vadd.xlane.f32.xlu0 %v474
      %v476 = vpop.xlane.xlu0 %475
      %v477 = vsel %vm348, %v245, 0.0
      %v478 = vadd.f32 %v244, %v477
      %479 = vadd.xlane.f32.xlu0 %v478
      %v480 = vpop.xlane.xlu0 %479
      %v481 = vsel %vm348, %v247, 0.0
      %v482 = vadd.f32 %v246, %v481
      %483 = vadd.xlane.f32.xlu0 %v482
      %v484 = vpop.xlane.xlu0 %483
      %v485 = vsel %vm348, %v249, 0.0
      %v486 = vadd.f32 %v248, %v485
      %487 = vadd.xlane.f32.xlu0 %v486
      %v488 = vpop.xlane.xlu0 %487
      %v489 = vsel %vm348, %v251, 0.0
      %v490 = vadd.f32 %v250, %v489
      %491 = vadd.xlane.f32.xlu0 %v490
      %v492 = vpop.xlane.xlu0 %491
      %v493 = vsel %vm348, %v253, 0.0
      %v494 = vadd.f32 %v252, %v493
      %495 = vadd.xlane.f32.xlu0 %v494
      %v496 = vpop.xlane.xlu0 %495
      %v497 = vsel %vm348, %v255, 0.0
      %v498 = vadd.f32 %v254, %v497
      %499 = vadd.xlane.f32.xlu0 %v498
      %v500 = vpop.xlane.xlu0 %499
      %v501 = vsel %vm348, %v257, 0.0
      %v502 = vadd.f32 %v256, %v501
      %503 = vadd.xlane.f32.xlu0 %v502
      %v504 = vpop.xlane.xlu0 %503
      %v505 = vsel %vm348, %v259, 0.0
      %v506 = vadd.f32 %v258, %v505
      %507 = vadd.xlane.f32.xlu0 %v506
      %v508 = vpop.xlane.xlu0 %507
      %v509 = vsel %vm348, %v261, 0.0
      %v510 = vadd.f32 %v260, %v509
      %511 = vadd.xlane.f32.xlu0 %v510
      %v512 = vpop.xlane.xlu0 %511
      %v513 = vsel %vm348, %v263, 0.0
      %v514 = vadd.f32 %v262, %v513
      %515 = vadd.xlane.f32.xlu0 %v514
      %v516 = vpop.xlane.xlu0 %515
      %v517 = vsel %vm348, %v265, 0.0
      %v518 = vadd.f32 %v264, %v517
      %519 = vadd.xlane.f32.xlu0 %v518
      %v520 = vpop.xlane.xlu0 %519
      %v521 = vsel %vm348, %v267, 0.0
      %v522 = vadd.f32 %v266, %v521
      %523 = vadd.xlane.f32.xlu0 %v522
      %v524 = vpop.xlane.xlu0 %523
      %v525 = vsel %vm348, %v269, 0.0
      %v526 = vadd.f32 %v268, %v525
      %527 = vadd.xlane.f32.xlu0 %v526
      %v528 = vpop.xlane.xlu0 %527
      %v529 = vsel %vm348, %v271, 0.0
      %v530 = vadd.f32 %v270, %v529
      %531 = vadd.xlane.f32.xlu0 %v530
      %v532 = vpop.xlane.xlu0 %531
      %v533 = vsel %vm348, %v273, 0.0
      %v534 = vadd.f32 %v272, %v533
      %535 = vadd.xlane.f32.xlu0 %v534
      %v536 = vpop.xlane.xlu0 %535
      %v537 = vsel %vm348, %v275, 0.0
      %v538 = vadd.f32 %v274, %v537
      %539 = vadd.xlane.f32.xlu0 %v538
      %v540 = vpop.xlane.xlu0 %539
      %v541 = vsel %vm348, %v277, 0.0
      %v542 = vadd.f32 %v276, %v541
      %543 = vadd.xlane.f32.xlu0 %v542
      %v544 = vpop.xlane.xlu0 %543
      %v545 = vsel %vm348, %v279, 0.0
      %v546 = vadd.f32 %v278, %v545
      %547 = vadd.xlane.f32.xlu0 %v546
      %v548 = vpop.xlane.xlu0 %547
      %v549 = vsel %vm348, %v281, 0.0
      %v550 = vadd.f32 %v280, %v549
      %551 = vadd.xlane.f32.xlu0 %v550
      %v552 = vpop.xlane.xlu0 %551
      %v553 = vsel %vm348, %v283, 0.0
      %v554 = vadd.f32 %v282, %v553
      %555 = vadd.xlane.f32.xlu0 %v554
      %v556 = vpop.xlane.xlu0 %555
      %v557 = vsel %vm348, %v285, 0.0
      %v558 = vadd.f32 %v284, %v557
      %559 = vadd.xlane.f32.xlu0 %v558
      %v560 = vpop.xlane.xlu0 %559
      %v561 = vsel %vm348, %v287, 0.0
      %v562 = vadd.f32 %v286, %v561
      %563 = vadd.xlane.f32.xlu0 %v562
      %v564 = vpop.xlane.xlu0 %563
      %v565 = vsel %vm348, %v289, 0.0
      %v566 = vadd.f32 %v288, %v565
      %567 = vadd.xlane.f32.xlu0 %v566
      %v568 = vpop.xlane.xlu0 %567
      %v569 = vsel %vm348, %v291, 0.0
      %v570 = vadd.f32 %v290, %v569
      %571 = vadd.xlane.f32.xlu0 %v570
      %v572 = vpop.xlane.xlu0 %571
      %v573 = vsel %vm348, %v293, 0.0
      %v574 = vadd.f32 %v292, %v573
      %575 = vadd.xlane.f32.xlu0 %v574
      %v576 = vpop.xlane.xlu0 %575
      %v577 = vsel %vm348, %v295, 0.0
      %v578 = vadd.f32 %v294, %v577
      %579 = vadd.xlane.f32.xlu0 %v578
      %v580 = vpop.xlane.xlu0 %579
      %v581 = vsel %vm348, %v297, 0.0
      %v582 = vadd.f32 %v296, %v581
      %583 = vadd.xlane.f32.xlu0 %v582
      %v584 = vpop.xlane.xlu0 %583
      %v585 = vsel %vm348, %v299, 0.0
      %v586 = vadd.f32 %v298, %v585
      %587 = vadd.xlane.f32.xlu0 %v586
      %v588 = vpop.xlane.xlu0 %587
      %v589 = vsel %vm348, %v301, 0.0
      %v590 = vadd.f32 %v300, %v589
      %591 = vadd.xlane.f32.xlu0 %v590
      %v592 = vpop.xlane.xlu0 %591
      %v593 = vsel %vm348, %v303, 0.0
      %v594 = vadd.f32 %v302, %v593
      %595 = vadd.xlane.f32.xlu0 %v594
      %v596 = vpop.xlane.xlu0 %595
      %v597 = vsel %vm348, %v305, 0.0
      %v598 = vadd.f32 %v304, %v597
      %599 = vadd.xlane.f32.xlu0 %v598
      %v600 = vpop.xlane.xlu0 %599
      %v601 = vsel %vm348, %v307, 0.0
      %v602 = vadd.f32 %v306, %v601
      %603 = vadd.xlane.f32.xlu0 %v602
      %v604 = vpop.xlane.xlu0 %603
      %v605 = vsel %vm348, %v309, 0.0
      %v606 = vadd.f32 %v308, %v605
      %607 = vadd.xlane.f32.xlu0 %v606
      %v608 = vpop.xlane.xlu0 %607
      %v609 = vsel %vm348, %v311, 0.0
      %v610 = vadd.f32 %v310, %v609
      %611 = vadd.xlane.f32.xlu0 %v610
      %v612 = vpop.xlane.xlu0 %611
      %v613 = vsel %vm348, %v313, 0.0
      %v614 = vadd.f32 %v312, %v613
      %615 = vadd.xlane.f32.xlu0 %v614
      %v616 = vpop.xlane.xlu0 %615
      %v617 = vsel %vm348, %v315, 0.0
      %v618 = vadd.f32 %v314, %v617
      %619 = vadd.xlane.f32.xlu0 %v618
      %v620 = vpop.xlane.xlu0 %619
      %v621 = vsel %vm348, %v317, 0.0
      %v622 = vadd.f32 %v316, %v621
      %623 = vadd.xlane.f32.xlu0 %v622
      %v624 = vpop.xlane.xlu0 %623
      %v625 = vsel %vm348, %v319, 0.0
      %v626 = vadd.f32 %v318, %v625
      %627 = vadd.xlane.f32.xlu0 %v626
      %v628 = vpop.xlane.xlu0 %627
      %v629 = vsel %vm348, %v321, 0.0
      %v630 = vadd.f32 %v320, %v629
      %631 = vadd.xlane.f32.xlu0 %v630
      %v632 = vpop.xlane.xlu0 %631
      %v633 = vsel %vm348, %v323, 0.0
      %v634 = vadd.f32 %v322, %v633
      %635 = vadd.xlane.f32.xlu0 %v634
      %v636 = vpop.xlane.xlu0 %635
      %v637 = vsel %vm348, %v325, 0.0
      %v638 = vadd.f32 %v324, %v637
      %639 = vadd.xlane.f32.xlu0 %v638
      %v640 = vpop.xlane.xlu0 %639
      %v641 = vsel %vm348, %v327, 0.0
      %v642 = vadd.f32 %v326, %v641
      %643 = vadd.xlane.f32.xlu0 %v642
      %v644 = vpop.xlane.xlu0 %643
      %v645 = vsel %vm348, %v329, 0.0
      %v646 = vadd.f32 %v328, %v645
      %647 = vadd.xlane.f32.xlu0 %v646
      %v648 = vpop.xlane.xlu0 %647
      %v649 = vsel %vm348, %v331, 0.0
      %v650 = vadd.f32 %v330, %v649
      %651 = vadd.xlane.f32.xlu0 %v650
      %v652 = vpop.xlane.xlu0 %651
      %v653 = vsel %vm348, %v333, 0.0
      %v654 = vadd.f32 %v332, %v653
      %655 = vadd.xlane.f32.xlu0 %v654
      %v656 = vpop.xlane.xlu0 %655
      %v657 = vsel %vm348, %v335, 0.0
      %v658 = vadd.f32 %v334, %v657
      %659 = vadd.xlane.f32.xlu0 %v658
      %v660 = vpop.xlane.xlu0 %659
      %v661 = vsel %vm348, %v337, 0.0
      %v662 = vadd.f32 %v336, %v661
      %663 = vadd.xlane.f32.xlu0 %v662
      %v664 = vpop.xlane.xlu0 %663
      %v665 = vsel %vm348, %v339, 0.0
      %v666 = vadd.f32 %v338, %v665
      %667 = vadd.xlane.f32.xlu0 %v666
      %v668 = vpop.xlane.xlu0 %667
      %v669 = vsel %vm348, %v341, 0.0
      %v670 = vadd.f32 %v340, %v669
      %671 = vadd.xlane.f32.xlu0 %v670
      %v672 = vpop.xlane.xlu0 %671
      %v673 = vsel %vm348, %v343, 0.0
      %v674 = vadd.f32 %v342, %v673
      %675 = vadd.xlane.f32.xlu0 %v674
      %v676 = vpop.xlane.xlu0 %675
      %v677 = vsel %vm348, %v345, 0.0
      %v678 = vadd.f32 %v344, %v677
      %679 = vadd.xlane.f32.xlu0 %v678
      %v680 = vpop.xlane.xlu0 %679
      %v681 = vsel %vm348, %v347, 0.0
      %v682 = vadd.f32 %v346, %v681
      %683 = vadd.xlane.f32.xlu0 %v682
      %v684 = vpop.xlane.xlu0 %683
      %v685 = vmul.f32 %v352, 0.0051020407
      %v686 = vmul.f32 %v356, 0.0051020407
      %v687 = vmul.f32 %v360, 0.0051020407
      %v688 = vmul.f32 %v364, 0.0051020407
      %v689 = vmul.f32 %v368, 0.0051020407
      %v690 = vmul.f32 %v372, 0.0051020407
      %v691 = vmul.f32 %v376, 0.0051020407
      %v692 = vmul.f32 %v380, 0.0051020407
      %v693 = vmul.f32 %v384, 0.0051020407
      %v694 = vmul.f32 %v388, 0.0051020407
      %v695 = vmul.f32 %v392, 0.0051020407
      %v696 = vmul.f32 %v396, 0.0051020407
      %v697 = vmul.f32 %v400, 0.0051020407
      %v698 = vmul.f32 %v404, 0.0051020407
      %v699 = vmul.f32 %v408, 0.0051020407
      %v700 = vmul.f32 %v412, 0.0051020407
      %v701 = vmul.f32 %v416, 0.0051020407
      %v702 = vmul.f32 %v420, 0.0051020407
      %v703 = vmul.f32 %v424, 0.0051020407
      %v704 = vmul.f32 %v428, 0.0051020407
      %v705 = vmul.f32 %v432, 0.0051020407
      %v706 = vmul.f32 %v436, 0.0051020407
      %v707 = vmul.f32 %v440, 0.0051020407
      %v708 = vmul.f32 %v444, 0.0051020407
      %v709 = vmul.f32 %v448, 0.0051020407
      %v710 = vmul.f32 %v452, 0.0051020407
      %v711 = vmul.f32 %v456, 0.0051020407
      %v712 = vmul.f32 %v460, 0.0051020407
      %v713 = vmul.f32 %v464, 0.0051020407
      %v714 = vmul.f32 %v468, 0.0051020407
      %v715 = vmul.f32 %v472, 0.0051020407
      %v716 = vmul.f32 %v476, 0.0051020407
      %v717 = vmul.f32 %v480, 0.0051020407
      %v718 = vmul.f32 %v484, 0.0051020407
      %v719 = vmul.f32 %v488, 0.0051020407
      %v720 = vmul.f32 %v492, 0.0051020407
      %v721 = vmul.f32 %v496, 0.0051020407
      %v722 = vmul.f32 %v500, 0.0051020407
      %v723 = vmul.f32 %v504, 0.0051020407
      %v724 = vmul.f32 %v508, 0.0051020407
      %v725 = vmul.f32 %v512, 0.0051020407
      %v726 = vmul.f32 %v516, 0.0051020407
      %v727 = vmul.f32 %v520, 0.0051020407
      %v728 = vmul.f32 %v524, 0.0051020407
      %v729 = vmul.f32 %v528, 0.0051020407
      %v730 = vmul.f32 %v532, 0.0051020407
      %v731 = vmul.f32 %v536, 0.0051020407
      %v732 = vmul.f32 %v540, 0.0051020407
      %v733 = vmul.f32 %v544, 0.0051020407
      %v734 = vmul.f32 %v548, 0.0051020407
      %v735 = vmul.f32 %v552, 0.0051020407
      %v736 = vmul.f32 %v556, 0.0051020407
      %v737 = vmul.f32 %v560, 0.0051020407
      %v738 = vmul.f32 %v564, 0.0051020407
      %v739 = vmul.f32 %v568, 0.0051020407
      %v740 = vmul.f32 %v572, 0.0051020407
      %v741 = vmul.f32 %v576, 0.0051020407
      %v742 = vmul.f32 %v580, 0.0051020407
      %v743 = vmul.f32 %v584, 0.0051020407
      %v744 = vmul.f32 %v588, 0.0051020407
      %v745 = vmul.f32 %v592, 0.0051020407
      %v746 = vmul.f32 %v596, 0.0051020407
      %v747 = vmul.f32 %v600, 0.0051020407
      %v748 = vmul.f32 %v604, 0.0051020407
      %v749 = vmul.f32 %v608, 0.0051020407
      %v750 = vmul.f32 %v612, 0.0051020407
      %v751 = vmul.f32 %v616, 0.0051020407
      %v752 = vmul.f32 %v620, 0.0051020407
      %v753 = vmul.f32 %v624, 0.0051020407
      %v754 = vmul.f32 %v628, 0.0051020407
      %v755 = vmul.f32 %v632, 0.0051020407
      %v756 = vmul.f32 %v636, 0.0051020407
      %v757 = vmul.f32 %v640, 0.0051020407
      %v758 = vmul.f32 %v644, 0.0051020407
      %v759 = vmul.f32 %v648, 0.0051020407
      %v760 = vmul.f32 %v652, 0.0051020407
      %v761 = vmul.f32 %v656, 0.0051020407
      %v762 = vmul.f32 %v660, 0.0051020407
      %v763 = vmul.f32 %v664, 0.0051020407
      %v764 = vmul.f32 %v668, 0.0051020407
      %v765 = vmul.f32 %v672, 0.0051020407
      %v766 = vmul.f32 %v676, 0.0051020407
      %v767 = vmul.f32 %v680, 0.0051020407
      %v768 = vmul.f32 %v684, 0.0051020407
      %v769 = vsub.f32 %v180, %v685
      %v770 = vsub.f32 %v181, %v685
      %v771 = vsub.f32 %v182, %v686
      %v772 = vsub.f32 %v183, %v686
      %v773 = vsub.f32 %v184, %v687
      %v774 = vsub.f32 %v185, %v687
      %v775 = vsub.f32 %v186, %v688
      %v776 = vsub.f32 %v187, %v688
      %v777 = vsub.f32 %v188, %v689
      %v778 = vsub.f32 %v189, %v689
      %v779 = vsub.f32 %v190, %v690
      %v780 = vsub.f32 %v191, %v690
      %v781 = vsub.f32 %v192, %v691
      %v782 = vsub.f32 %v193, %v691
      %v783 = vsub.f32 %v194, %v692
      %v784 = vsub.f32 %v195, %v692
      %v785 = vsub.f32 %v196, %v693
      %v786 = vsub.f32 %v197, %v693
      %v787 = vsub.f32 %v198, %v694
      %v788 = vsub.f32 %v199, %v694
      %v789 = vsub.f32 %v200, %v695
      %v790 = vsub.f32 %v201, %v695
      %v791 = vsub.f32 %v202, %v696
      %v792 = vsub.f32 %v203, %v696
      %v793 = vsub.f32 %v204, %v697
      %v794 = vsub.f32 %v205, %v697
      %v795 = vsub.f32 %v206, %v698
      %v796 = vsub.f32 %v207, %v698
      %v797 = vsub.f32 %v208, %v699
      %v798 = vsub.f32 %v209, %v699
      %v799 = vsub.f32 %v210, %v700
      %v800 = vsub.f32 %v211, %v700
      %v801 = vsub.f32 %v212, %v701
      %v802 = vsub.f32 %v213, %v701
      %v803 = vsub.f32 %v214, %v702
      %v804 = vsub.f32 %v215, %v702
      %v805 = vsub.f32 %v216, %v703
      %v806 = vsub.f32 %v217, %v703
      %v807 = vsub.f32 %v218, %v704
      %v808 = vsub.f32 %v219, %v704
      %v809 = vsub.f32 %v220, %v705
      %v810 = vsub.f32 %v221, %v705
      %v811 = vsub.f32 %v222, %v706
      %v812 = vsub.f32 %v223, %v706
      %v813 = vsub.f32 %v224, %v707
      %v814 = vsub.f32 %v225, %v707
      %v815 = vsub.f32 %v226, %v708
      %v816 = vsub.f32 %v227, %v708
      %v817 = vsub.f32 %v228, %v709
      %v818 = vsub.f32 %v229, %v709
      %v819 = vsub.f32 %v230, %v710
      %v820 = vsub.f32 %v231, %v710
      %v821 = vsub.f32 %v232, %v711
      %v822 = vsub.f32 %v233, %v711
      %v823 = vsub.f32 %v234, %v712
      %v824 = vsub.f32 %v235, %v712
      %v825 = vsub.f32 %v236, %v713
      %v826 = vsub.f32 %v237, %v713
      %v827 = vsub.f32 %v238, %v714
      %v828 = vsub.f32 %v239, %v714
      %v829 = vsub.f32 %v240, %v715
      %v830 = vsub.f32 %v241, %v715
      %v831 = vsub.f32 %v242, %v716
      %v832 = vsub.f32 %v243, %v716
      %v833 = vsub.f32 %v244, %v717
      %v834 = vsub.f32 %v245, %v717
      %v835 = vsub.f32 %v246, %v718
      %v836 = vsub.f32 %v247, %v718
      %v837 = vsub.f32 %v248, %v719
      %v838 = vsub.f32 %v249, %v719
      %v839 = vsub.f32 %v250, %v720
      %v840 = vsub.f32 %v251, %v720
      %v841 = vsub.f32 %v252, %v721
      %v842 = vsub.f32 %v253, %v721
      %v843 = vsub.f32 %v254, %v722
      %v844 = vsub.f32 %v255, %v722
      %v845 = vsub.f32 %v256, %v723
      %v846 = vsub.f32 %v257, %v723
      %v847 = vsub.f32 %v258, %v724
      %v848 = vsub.f32 %v259, %v724
      %v849 = vsub.f32 %v260, %v725
      %v850 = vsub.f32 %v261, %v725
      %v851 = vsub.f32 %v262, %v726
      %v852 = vsub.f32 %v263, %v726
      %v853 = vsub.f32 %v264, %v727
      %v854 = vsub.f32 %v265, %v727
      %v855 = vsub.f32 %v266, %v728
      %v856 = vsub.f32 %v267, %v728
      %v857 = vsub.f32 %v268, %v729
      %v858 = vsub.f32 %v269, %v729
      %v859 = vsub.f32 %v270, %v730
      %v860 = vsub.f32 %v271, %v730
      %v861 = vsub.f32 %v272, %v731
      %v862 = vsub.f32 %v273, %v731
      %v863 = vsub.f32 %v274, %v732
      %v864 = vsub.f32 %v275, %v732
      %v865 = vsub.f32 %v276, %v733
      %v866 = vsub.f32 %v277, %v733
      %v867 = vsub.f32 %v278, %v734
      %v868 = vsub.f32 %v279, %v734
      %v869 = vsub.f32 %v280, %v735
      %v870 = vsub.f32 %v281, %v735
      %v871 = vsub.f32 %v282, %v736
      %v872 = vsub.f32 %v283, %v736
      %v873 = vsub.f32 %v284, %v737
      %v874 = vsub.f32 %v285, %v737
      %v875 = vsub.f32 %v286, %v738
      %v876 = vsub.f32 %v287, %v738
      %v877 = vsub.f32 %v288, %v739
      %v878 = vsub.f32 %v289, %v739
      %v879 = vsub.f32 %v290, %v740
      %v880 = vsub.f32 %v291, %v740
      %v881 = vsub.f32 %v292, %v741
      %v882 = vsub.f32 %v293, %v741
      %v883 = vsub.f32 %v294, %v742
      %v884 = vsub.f32 %v295, %v742
      %v885 = vsub.f32 %v296, %v743
      %v886 = vsub.f32 %v297, %v743
      %v887 = vsub.f32 %v298, %v744
      %v888 = vsub.f32 %v299, %v744
      %v889 = vsub.f32 %v300, %v745
      %v890 = vsub.f32 %v301, %v745
      %v891 = vsub.f32 %v302, %v746
      %v892 = vsub.f32 %v303, %v746
      %v893 = vsub.f32 %v304, %v747
      %v894 = vsub.f32 %v305, %v747
      %v895 = vsub.f32 %v306, %v748
      %v896 = vsub.f32 %v307, %v748
      %v897 = vsub.f32 %v308, %v749
      %v898 = vsub.f32 %v309, %v749
      %v899 = vsub.f32 %v310, %v750
      %v900 = vsub.f32 %v311, %v750
      %v901 = vsub.f32 %v312, %v751
      %v902 = vsub.f32 %v313, %v751
      %v903 = vsub.f32 %v314, %v752
      %v904 = vsub.f32 %v315, %v752
      %v905 = vsub.f32 %v316, %v753
      %v906 = vsub.f32 %v317, %v753
      %v907 = vsub.f32 %v318, %v754
      %v908 = vsub.f32 %v319, %v754
      %v909 = vsub.f32 %v320, %v755
      %v910 = vsub.f32 %v321, %v755
      %v911 = vsub.f32 %v322, %v756
      %v912 = vsub.f32 %v323, %v756
      %v913 = vsub.f32 %v324, %v757
      %v914 = vsub.f32 %v325, %v757
      %v915 = vsub.f32 %v326, %v758
      %v916 = vsub.f32 %v327, %v758
      %v917 = vsub.f32 %v328, %v759
      %v918 = vsub.f32 %v329, %v759
      %v919 = vsub.f32 %v330, %v760
      %v920 = vsub.f32 %v331, %v760
      %v921 = vsub.f32 %v332, %v761
      %v922 = vsub.f32 %v333, %v761
      %v923 = vsub.f32 %v334, %v762
      %v924 = vsub.f32 %v335, %v762
      %v925 = vsub.f32 %v336, %v763
      %v926 = vsub.f32 %v337, %v763
      %v927 = vsub.f32 %v338, %v764
      %v928 = vsub.f32 %v339, %v764
      %v929 = vsub.f32 %v340, %v765
      %v930 = vsub.f32 %v341, %v765
      %v931 = vsub.f32 %v342, %v766
      %v932 = vsub.f32 %v343, %v766
      %v933 = vsub.f32 %v344, %v767
      %v934 = vsub.f32 %v345, %v767
      %v935 = vsub.f32 %v346, %v768
      %v936 = vsub.f32 %v347, %v768
      %v937 = vmul.f32 %v769, %v769
      %v938 = vmul.f32 %v770, %v770
      %v939 = vmul.f32 %v771, %v771
      %v940 = vmul.f32 %v772, %v772
      %v941 = vmul.f32 %v773, %v773
      %v942 = vmul.f32 %v774, %v774
      %v943 = vmul.f32 %v775, %v775
      %v944 = vmul.f32 %v776, %v776
      %v945 = vmul.f32 %v777, %v777
      %v946 = vmul.f32 %v778, %v778
      %v947 = vmul.f32 %v779, %v779
      %v948 = vmul.f32 %v780, %v780
      %v949 = vmul.f32 %v781, %v781
      %v950 = vmul.f32 %v782, %v782
      %v951 = vmul.f32 %v783, %v783
      %v952 = vmul.f32 %v784, %v784
      %v953 = vmul.f32 %v785, %v785
      %v954 = vmul.f32 %v786, %v786
      %v955 = vmul.f32 %v787, %v787
      %v956 = vmul.f32 %v788, %v788
      %v957 = vmul.f32 %v789, %v789
      %v958 = vmul.f32 %v790, %v790
      %v959 = vmul.f32 %v791, %v791
      %v960 = vmul.f32 %v792, %v792
      %v961 = vmul.f32 %v793, %v793
      %v962 = vmul.f32 %v794, %v794
      %v963 = vmul.f32 %v795, %v795
      %v964 = vmul.f32 %v796, %v796
      %v965 = vmul.f32 %v797, %v797
      %v966 = vmul.f32 %v798, %v798
      %v967 = vmul.f32 %v799, %v799
      %v968 = vmul.f32 %v800, %v800
      %v969 = vmul.f32 %v801, %v801
      %v970 = vmul.f32 %v802, %v802
      %v971 = vmul.f32 %v803, %v803
      %v972 = vmul.f32 %v804, %v804
      %v973 = vmul.f32 %v805, %v805
      %v974 = vmul.f32 %v806, %v806
      %v975 = vmul.f32 %v807, %v807
      %v976 = vmul.f32 %v808, %v808
      %v977 = vmul.f32 %v809, %v809
      %v978 = vmul.f32 %v810, %v810
      %v979 = vmul.f32 %v811, %v811
      %v980 = vmul.f32 %v812, %v812
      %v981 = vmul.f32 %v813, %v813
      %v982 = vmul.f32 %v814, %v814
      %v983 = vmul.f32 %v815, %v815
      %v984 = vmul.f32 %v816, %v816
      %v985 = vmul.f32 %v817, %v817
      %v986 = vmul.f32 %v818, %v818
      %v987 = vmul.f32 %v819, %v819
      %v988 = vmul.f32 %v820, %v820
      %v989 = vmul.f32 %v821, %v821
      %v990 = vmul.f32 %v822, %v822
      %v991 = vmul.f32 %v823, %v823
      %v992 = vmul.f32 %v824, %v824
      %v993 = vmul.f32 %v825, %v825
      %v994 = vmul.f32 %v826, %v826
      %v995 = vmul.f32 %v827, %v827
      %v996 = vmul.f32 %v828, %v828
      %v997 = vmul.f32 %v829, %v829
      %v998 = vmul.f32 %v830, %v830
      %v999 = vmul.f32 %v831, %v831
      %v1000 = vmul.f32 %v832, %v832
      %v1001 = vmul.f32 %v833, %v833
      %v1002 = vmul.f32 %v834, %v834
      %v1003 = vmul.f32 %v835, %v835
      %v1004 = vmul.f32 %v836, %v836
      %v1005 = vmul.f32 %v837, %v837
      %v1006 = vmul.f32 %v838, %v838
      %v1007 = vmul.f32 %v839, %v839
      %v1008 = vmul.f32 %v840, %v840
      %v1009 = vmul.f32 %v841, %v841
      %v1010 = vmul.f32 %v842, %v842
      %v1011 = vmul.f32 %v843, %v843
      %v1012 = vmul.f32 %v844, %v844
      %v1013 = vmul.f32 %v845, %v845
      %v1014 = vmul.f32 %v846, %v846
      %v1015 = vmul.f32 %v847, %v847
      %v1016 = vmul.f32 %v848, %v848
      %v1017 = vmul.f32 %v849, %v849
      %v1018 = vmul.f32 %v850, %v850
      %v1019 = vmul.f32 %v851, %v851
      %v1020 = vmul.f32 %v852, %v852
      %v1021 = vmul.f32 %v853, %v853
      %v1022 = vmul.f32 %v854, %v854
      %v1023 = vmul.f32 %v855, %v855
      %v1024 = vmul.f32 %v856, %v856
      %v1025 = vmul.f32 %v857, %v857
      %v1026 = vmul.f32 %v858, %v858
      %v1027 = vmul.f32 %v859, %v859
      %v1028 = vmul.f32 %v860, %v860
      %v1029 = vmul.f32 %v861, %v861
      %v1030 = vmul.f32 %v862, %v862
      %v1031 = vmul.f32 %v863, %v863
      %v1032 = vmul.f32 %v864, %v864
      %v1033 = vmul.f32 %v865, %v865
      %v1034 = vmul.f32 %v866, %v866
      %v1035 = vmul.f32 %v867, %v867
      %v1036 = vmul.f32 %v868, %v868
      %v1037 = vmul.f32 %v869, %v869
      %v1038 = vmul.f32 %v870, %v870
      %v1039 = vmul.f32 %v871, %v871
      %v1040 = vmul.f32 %v872, %v872
      %v1041 = vmul.f32 %v873, %v873
      %v1042 = vmul.f32 %v874, %v874
      %v1043 = vmul.f32 %v875, %v875
      %v1044 = vmul.f32 %v876, %v876
      %v1045 = vmul.f32 %v877, %v877
      %v1046 = vmul.f32 %v878, %v878
      %v1047 = vmul.f32 %v879, %v879
      %v1048 = vmul.f32 %v880, %v880
      %v1049 = vmul.f32 %v881, %v881
      %v1050 = vmul.f32 %v882, %v882
      %v1051 = vmul.f32 %v883, %v883
      %v1052 = vmul.f32 %v884, %v884
      %v1053 = vmul.f32 %v885, %v885
      %v1054 = vmul.f32 %v886, %v886
      %v1055 = vmul.f32 %v887, %v887
      %v1056 = vmul.f32 %v888, %v888
      %v1057 = vmul.f32 %v889, %v889
      %v1058 = vmul.f32 %v890, %v890
      %v1059 = vmul.f32 %v891, %v891
      %v1060 = vmul.f32 %v892, %v892
      %v1061 = vmul.f32 %v893, %v893
      %v1062 = vmul.f32 %v894, %v894
      %v1063 = vmul.f32 %v895, %v895
      %v1064 = vmul.f32 %v896, %v896
      %v1065 = vmul.f32 %v897, %v897
      %v1066 = vmul.f32 %v898, %v898
      %v1067 = vmul.f32 %v899, %v899
      %v1068 = vmul.f32 %v900, %v900
      %v1069 = vmul.f32 %v901, %v901
      %v1070 = vmul.f32 %v902, %v902
      %v1071 = vmul.f32 %v903, %v903
      %v1072 = vmul.f32 %v904, %v904
      %v1073 = vmul.f32 %v905, %v905
      %v1074 = vmul.f32 %v906, %v906
      %v1075 = vmul.f32 %v907, %v907
      %v1076 = vmul.f32 %v908, %v908
      %v1077 = vmul.f32 %v909, %v909
      %v1078 = vmul.f32 %v910, %v910
      %v1079 = vmul.f32 %v911, %v911
      %v1080 = vmul.f32 %v912, %v912
      %v1081 = vmul.f32 %v913, %v913
      %v1082 = vmul.f32 %v914, %v914
      %v1083 = vmul.f32 %v915, %v915
      %v1084 = vmul.f32 %v916, %v916
      %v1085 = vmul.f32 %v917, %v917
      %v1086 = vmul.f32 %v918, %v918
      %v1087 = vmul.f32 %v919, %v919
      %v1088 = vmul.f32 %v920, %v920
      %v1089 = vmul.f32 %v921, %v921
      %v1090 = vmul.f32 %v922, %v922
      %v1091 = vmul.f32 %v923, %v923
      %v1092 = vmul.f32 %v924, %v924
      %v1093 = vmul.f32 %v925, %v925
      %v1094 = vmul.f32 %v926, %v926
      %v1095 = vmul.f32 %v927, %v927
      %v1096 = vmul.f32 %v928, %v928
      %v1097 = vmul.f32 %v929, %v929
      %v1098 = vmul.f32 %v930, %v930
      %v1099 = vmul.f32 %v931, %v931
      %v1100 = vmul.f32 %v932, %v932
      %v1101 = vmul.f32 %v933, %v933
      %v1102 = vmul.f32 %v934, %v934
      %v1103 = vmul.f32 %v935, %v935
      %v1104 = vmul.f32 %v936, %v936
      %v1105 = vsel %vm348, %v938, 0.0
      %v1106 = vadd.f32 %v937, %v1105
      %1107 = vadd.xlane.f32.xlu0 %v1106
      %v1108 = vpop.xlane.xlu0 %1107
      %v1109 = vsel %vm348, %v940, 0.0
      %v1110 = vadd.f32 %v939, %v1109
      %1111 = vadd.xlane.f32.xlu0 %v1110
      %v1112 = vpop.xlane.xlu0 %1111
      %v1113 = vsel %vm348, %v942, 0.0
      %v1114 = vadd.f32 %v941, %v1113
      %1115 = vadd.xlane.f32.xlu0 %v1114
      %v1116 = vpop.xlane.xlu0 %1115
      %v1117 = vsel %vm348, %v944, 0.0
      %v1118 = vadd.f32 %v943, %v1117
      %1119 = vadd.xlane.f32.xlu0 %v1118
      %v1120 = vpop.xlane.xlu0 %1119
      %v1121 = vsel %vm348, %v946, 0.0
      %v1122 = vadd.f32 %v945, %v1121
      %1123 = vadd.xlane.f32.xlu0 %v1122
      %v1124 = vpop.xlane.xlu0 %1123
      %v1125 = vsel %vm348, %v948, 0.0
      %v1126 = vadd.f32 %v947, %v1125
      %1127 = vadd.xlane.f32.xlu0 %v1126
      %v1128 = vpop.xlane.xlu0 %1127
      %v1129 = vsel %vm348, %v950, 0.0
      %v1130 = vadd.f32 %v949, %v1129
      %1131 = vadd.xlane.f32.xlu0 %v1130
      %v1132 = vpop.xlane.xlu0 %1131
      %v1133 = vsel %vm348, %v952, 0.0
      %v1134 = vadd.f32 %v951, %v1133
      %1135 = vadd.xlane.f32.xlu0 %v1134
      %v1136 = vpop.xlane.xlu0 %1135
      %v1137 = vsel %vm348, %v954, 0.0
      %v1138 = vadd.f32 %v953, %v1137
      %1139 = vadd.xlane.f32.xlu0 %v1138
      %v1140 = vpop.xlane.xlu0 %1139
      %v1141 = vsel %vm348, %v956, 0.0
      %v1142 = vadd.f32 %v955, %v1141
      %1143 = vadd.xlane.f32.xlu0 %v1142
      %v1144 = vpop.xlane.xlu0 %1143
      %v1145 = vsel %vm348, %v958, 0.0
      %v1146 = vadd.f32 %v957, %v1145
      %1147 = vadd.xlane.f32.xlu0 %v1146
      %v1148 = vpop.xlane.xlu0 %1147
      %v1149 = vsel %vm348, %v960, 0.0
      %v1150 = vadd.f32 %v959, %v1149
      %1151 = vadd.xlane.f32.xlu0 %v1150
      %v1152 = vpop.xlane.xlu0 %1151
      %v1153 = vsel %vm348, %v962, 0.0
      %v1154 = vadd.f32 %v961, %v1153
      %1155 = vadd.xlane.f32.xlu0 %v1154
      %v1156 = vpop.xlane.xlu0 %1155
      %v1157 = vsel %vm348, %v964, 0.0
      %v1158 = vadd.f32 %v963, %v1157
      %1159 = vadd.xlane.f32.xlu0 %v1158
      %v1160 = vpop.xlane.xlu0 %1159
      %v1161 = vsel %vm348, %v966, 0.0
      %v1162 = vadd.f32 %v965, %v1161
      %1163 = vadd.xlane.f32.xlu0 %v1162
      %v1164 = vpop.xlane.xlu0 %1163
      %v1165 = vsel %vm348, %v968, 0.0
      %v1166 = vadd.f32 %v967, %v1165
      %1167 = vadd.xlane.f32.xlu0 %v1166
      %v1168 = vpop.xlane.xlu0 %1167
      %v1169 = vsel %vm348, %v970, 0.0
      %v1170 = vadd.f32 %v969, %v1169
      %1171 = vadd.xlane.f32.xlu0 %v1170
      %v1172 = vpop.xlane.xlu0 %1171
      %v1173 = vsel %vm348, %v972, 0.0
      %v1174 = vadd.f32 %v971, %v1173
      %1175 = vadd.xlane.f32.xlu0 %v1174
      %v1176 = vpop.xlane.xlu0 %1175
      %v1177 = vsel %vm348, %v974, 0.0
      %v1178 = vadd.f32 %v973, %v1177
      %1179 = vadd.xlane.f32.xlu0 %v1178
      %v1180 = vpop.xlane.xlu0 %1179
      %v1181 = vsel %vm348, %v976, 0.0
      %v1182 = vadd.f32 %v975, %v1181
      %1183 = vadd.xlane.f32.xlu0 %v1182
      %v1184 = vpop.xlane.xlu0 %1183
      %v1185 = vsel %vm348, %v978, 0.0
      %v1186 = vadd.f32 %v977, %v1185
      %1187 = vadd.xlane.f32.xlu0 %v1186
      %v1188 = vpop.xlane.xlu0 %1187
      %v1189 = vsel %vm348, %v980, 0.0
      %v1190 = vadd.f32 %v979, %v1189
      %1191 = vadd.xlane.f32.xlu0 %v1190
      %v1192 = vpop.xlane.xlu0 %1191
      %v1193 = vsel %vm348, %v982, 0.0
      %v1194 = vadd.f32 %v981, %v1193
      %1195 = vadd.xlane.f32.xlu0 %v1194
      %v1196 = vpop.xlane.xlu0 %1195
      %v1197 = vsel %vm348, %v984, 0.0
      %v1198 = vadd.f32 %v983, %v1197
      %1199 = vadd.xlane.f32.xlu0 %v1198
      %v1200 = vpop.xlane.xlu0 %1199
      %v1201 = vsel %vm348, %v986, 0.0
      %v1202 = vadd.f32 %v985, %v1201
      %1203 = vadd.xlane.f32.xlu0 %v1202
      %v1204 = vpop.xlane.xlu0 %1203
      %v1205 = vsel %vm348, %v988, 0.0
      %v1206 = vadd.f32 %v987, %v1205
      %1207 = vadd.xlane.f32.xlu0 %v1206
      %v1208 = vpop.xlane.xlu0 %1207
      %v1209 = vsel %vm348, %v990, 0.0
      %v1210 = vadd.f32 %v989, %v1209
      %1211 = vadd.xlane.f32.xlu0 %v1210
      %v1212 = vpop.xlane.xlu0 %1211
      %v1213 = vsel %vm348, %v992, 0.0
      %v1214 = vadd.f32 %v991, %v1213
      %1215 = vadd.xlane.f32.xlu0 %v1214
      %v1216 = vpop.xlane.xlu0 %1215
      %v1217 = vsel %vm348, %v994, 0.0
      %v1218 = vadd.f32 %v993, %v1217
      %1219 = vadd.xlane.f32.xlu0 %v1218
      %v1220 = vpop.xlane.xlu0 %1219
      %v1221 = vsel %vm348, %v996, 0.0
      %v1222 = vadd.f32 %v995, %v1221
      %1223 = vadd.xlane.f32.xlu0 %v1222
      %v1224 = vpop.xlane.xlu0 %1223
      %v1225 = vsel %vm348, %v998, 0.0
      %v1226 = vadd.f32 %v997, %v1225
      %1227 = vadd.xlane.f32.xlu0 %v1226
      %v1228 = vpop.xlane.xlu0 %1227
      %v1229 = vsel %vm348, %v1000, 0.0
      %v1230 = vadd.f32 %v999, %v1229
      %1231 = vadd.xlane.f32.xlu0 %v1230
      %v1232 = vpop.xlane.xlu0 %1231
      %v1233 = vsel %vm348, %v1002, 0.0
      %v1234 = vadd.f32 %v1001, %v1233
      %1235 = vadd.xlane.f32.xlu0 %v1234
      %v1236 = vpop.xlane.xlu0 %1235
      %v1237 = vsel %vm348, %v1004, 0.0
      %v1238 = vadd.f32 %v1003, %v1237
      %1239 = vadd.xlane.f32.xlu0 %v1238
      %v1240 = vpop.xlane.xlu0 %1239
      %v1241 = vsel %vm348, %v1006, 0.0
      %v1242 = vadd.f32 %v1005, %v1241
      %1243 = vadd.xlane.f32.xlu0 %v1242
      %v1244 = vpop.xlane.xlu0 %1243
      %v1245 = vsel %vm348, %v1008, 0.0
      %v1246 = vadd.f32 %v1007, %v1245
      %1247 = vadd.xlane.f32.xlu0 %v1246
      %v1248 = vpop.xlane.xlu0 %1247
      %v1249 = vsel %vm348, %v1010, 0.0
      %v1250 = vadd.f32 %v1009, %v1249
      %1251 = vadd.xlane.f32.xlu0 %v1250
      %v1252 = vpop.xlane.xlu0 %1251
      %v1253 = vsel %vm348, %v1012, 0.0
      %v1254 = vadd.f32 %v1011, %v1253
      %1255 = vadd.xlane.f32.xlu0 %v1254
      %v1256 = vpop.xlane.xlu0 %1255
      %v1257 = vsel %vm348, %v1014, 0.0
      %v1258 = vadd.f32 %v1013, %v1257
      %1259 = vadd.xlane.f32.xlu0 %v1258
      %v1260 = vpop.xlane.xlu0 %1259
      %v1261 = vsel %vm348, %v1016, 0.0
      %v1262 = vadd.f32 %v1015, %v1261
      %1263 = vadd.xlane.f32.xlu0 %v1262
      %v1264 = vpop.xlane.xlu0 %1263
      %v1265 = vsel %vm348, %v1018, 0.0
      %v1266 = vadd.f32 %v1017, %v1265
      %1267 = vadd.xlane.f32.xlu0 %v1266
      %v1268 = vpop.xlane.xlu0 %1267
      %v1269 = vsel %vm348, %v1020, 0.0
      %v1270 = vadd.f32 %v1019, %v1269
      %1271 = vadd.xlane.f32.xlu0 %v1270
      %v1272 = vpop.xlane.xlu0 %1271
      %v1273 = vsel %vm348, %v1022, 0.0
      %v1274 = vadd.f32 %v1021, %v1273
      %1275 = vadd.xlane.f32.xlu0 %v1274
      %v1276 = vpop.xlane.xlu0 %1275
      %v1277 = vsel %vm348, %v1024, 0.0
      %v1278 = vadd.f32 %v1023, %v1277
      %1279 = vadd.xlane.f32.xlu0 %v1278
      %v1280 = vpop.xlane.xlu0 %1279
      %v1281 = vsel %vm348, %v1026, 0.0
      %v1282 = vadd.f32 %v1025, %v1281
      %1283 = vadd.xlane.f32.xlu0 %v1282
      %v1284 = vpop.xlane.xlu0 %1283
      %v1285 = vsel %vm348, %v1028, 0.0
      %v1286 = vadd.f32 %v1027, %v1285
      %1287 = vadd.xlane.f32.xlu0 %v1286
      %v1288 = vpop.xlane.xlu0 %1287
      %v1289 = vsel %vm348, %v1030, 0.0
      %v1290 = vadd.f32 %v1029, %v1289
      %1291 = vadd.xlane.f32.xlu0 %v1290
      %v1292 = vpop.xlane.xlu0 %1291
      %v1293 = vsel %vm348, %v1032, 0.0
      %v1294 = vadd.f32 %v1031, %v1293
      %1295 = vadd.xlane.f32.xlu0 %v1294
      %v1296 = vpop.xlane.xlu0 %1295
      %v1297 = vsel %vm348, %v1034, 0.0
      %v1298 = vadd.f32 %v1033, %v1297
      %1299 = vadd.xlane.f32.xlu0 %v1298
      %v1300 = vpop.xlane.xlu0 %1299
      %v1301 = vsel %vm348, %v1036, 0.0
      %v1302 = vadd.f32 %v1035, %v1301
      %1303 = vadd.xlane.f32.xlu0 %v1302
      %v1304 = vpop.xlane.xlu0 %1303
      %v1305 = vsel %vm348, %v1038, 0.0
      %v1306 = vadd.f32 %v1037, %v1305
      %1307 = vadd.xlane.f32.xlu0 %v1306
      %v1308 = vpop.xlane.xlu0 %1307
      %v1309 = vsel %vm348, %v1040, 0.0
      %v1310 = vadd.f32 %v1039, %v1309
      %1311 = vadd.xlane.f32.xlu0 %v1310
      %v1312 = vpop.xlane.xlu0 %1311
      %v1313 = vsel %vm348, %v1042, 0.0
      %v1314 = vadd.f32 %v1041, %v1313
      %1315 = vadd.xlane.f32.xlu0 %v1314
      %v1316 = vpop.xlane.xlu0 %1315
      %v1317 = vsel %vm348, %v1044, 0.0
      %v1318 = vadd.f32 %v1043, %v1317
      %1319 = vadd.xlane.f32.xlu0 %v1318
      %v1320 = vpop.xlane.xlu0 %1319
      %v1321 = vsel %vm348, %v1046, 0.0
      %v1322 = vadd.f32 %v1045, %v1321
      %1323 = vadd.xlane.f32.xlu0 %v1322
      %v1324 = vpop.xlane.xlu0 %1323
      %v1325 = vsel %vm348, %v1048, 0.0
      %v1326 = vadd.f32 %v1047, %v1325
      %1327 = vadd.xlane.f32.xlu0 %v1326
      %v1328 = vpop.xlane.xlu0 %1327
      %v1329 = vsel %vm348, %v1050, 0.0
      %v1330 = vadd.f32 %v1049, %v1329
      %1331 = vadd.xlane.f32.xlu0 %v1330
      %v1332 = vpop.xlane.xlu0 %1331
      %v1333 = vsel %vm348, %v1052, 0.0
      %v1334 = vadd.f32 %v1051, %v1333
      %1335 = vadd.xlane.f32.xlu0 %v1334
      %v1336 = vpop.xlane.xlu0 %1335
      %v1337 = vsel %vm348, %v1054, 0.0
      %v1338 = vadd.f32 %v1053, %v1337
      %1339 = vadd.xlane.f32.xlu0 %v1338
      %v1340 = vpop.xlane.xlu0 %1339
      %v1341 = vsel %vm348, %v1056, 0.0
      %v1342 = vadd.f32 %v1055, %v1341
      %1343 = vadd.xlane.f32.xlu0 %v1342
      %v1344 = vpop.xlane.xlu0 %1343
      %v1345 = vsel %vm348, %v1058, 0.0
      %v1346 = vadd.f32 %v1057, %v1345
      %1347 = vadd.xlane.f32.xlu0 %v1346
      %v1348 = vpop.xlane.xlu0 %1347
      %v1349 = vsel %vm348, %v1060, 0.0
      %v1350 = vadd.f32 %v1059, %v1349
      %1351 = vadd.xlane.f32.xlu0 %v1350
      %v1352 = vpop.xlane.xlu0 %1351
      %v1353 = vsel %vm348, %v1062, 0.0
      %v1354 = vadd.f32 %v1061, %v1353
      %1355 = vadd.xlane.f32.xlu0 %v1354
      %v1356 = vpop.xlane.xlu0 %1355
      %v1357 = vsel %vm348, %v1064, 0.0
      %v1358 = vadd.f32 %v1063, %v1357
      %1359 = vadd.xlane.f32.xlu0 %v1358
      %v1360 = vpop.xlane.xlu0 %1359
      %v1361 = vsel %vm348, %v1066, 0.0
      %v1362 = vadd.f32 %v1065, %v1361
      %1363 = vadd.xlane.f32.xlu0 %v1362
      %v1364 = vpop.xlane.xlu0 %1363
      %v1365 = vsel %vm348, %v1068, 0.0
      %v1366 = vadd.f32 %v1067, %v1365
      %1367 = vadd.xlane.f32.xlu0 %v1366
      %v1368 = vpop.xlane.xlu0 %1367
      %v1369 = vsel %vm348, %v1070, 0.0
      %v1370 = vadd.f32 %v1069, %v1369
      %1371 = vadd.xlane.f32.xlu0 %v1370
      %v1372 = vpop.xlane.xlu0 %1371
      %v1373 = vsel %vm348, %v1072, 0.0
      %v1374 = vadd.f32 %v1071, %v1373
      %1375 = vadd.xlane.f32.xlu0 %v1374
      %v1376 = vpop.xlane.xlu0 %1375
      %v1377 = vsel %vm348, %v1074, 0.0
      %v1378 = vadd.f32 %v1073, %v1377
      %1379 = vadd.xlane.f32.xlu0 %v1378
      %v1380 = vpop.xlane.xlu0 %1379
      %v1381 = vsel %vm348, %v1076, 0.0
      %v1382 = vadd.f32 %v1075, %v1381
      %1383 = vadd.xlane.f32.xlu0 %v1382
      %v1384 = vpop.xlane.xlu0 %1383
      %v1385 = vsel %vm348, %v1078, 0.0
      %v1386 = vadd.f32 %v1077, %v1385
      %1387 = vadd.xlane.f32.xlu0 %v1386
      %v1388 = vpop.xlane.xlu0 %1387
      %v1389 = vsel %vm348, %v1080, 0.0
      %v1390 = vadd.f32 %v1079, %v1389
      %1391 = vadd.xlane.f32.xlu0 %v1390
      %v1392 = vpop.xlane.xlu0 %1391
      %v1393 = vsel %vm348, %v1082, 0.0
      %v1394 = vadd.f32 %v1081, %v1393
      %1395 = vadd.xlane.f32.xlu0 %v1394
      %v1396 = vpop.xlane.xlu0 %1395
      %v1397 = vsel %vm348, %v1084, 0.0
      %v1398 = vadd.f32 %v1083, %v1397
      %1399 = vadd.xlane.f32.xlu0 %v1398
      %v1400 = vpop.xlane.xlu0 %1399
      %v1401 = vsel %vm348, %v1086, 0.0
      %v1402 = vadd.f32 %v1085, %v1401
      %1403 = vadd.xlane.f32.xlu0 %v1402
      %v1404 = vpop.xlane.xlu0 %1403
      %v1405 = vsel %vm348, %v1088, 0.0
      %v1406 = vadd.f32 %v1087, %v1405
      %1407 = vadd.xlane.f32.xlu0 %v1406
      %v1408 = vpop.xlane.xlu0 %1407
      %v1409 = vsel %vm348, %v1090, 0.0
      %v1410 = vadd.f32 %v1089, %v1409
      %1411 = vadd.xlane.f32.xlu0 %v1410
      %v1412 = vpop.xlane.xlu0 %1411
      %v1413 = vsel %vm348, %v1092, 0.0
      %v1414 = vadd.f32 %v1091, %v1413
      %1415 = vadd.xlane.f32.xlu0 %v1414
      %v1416 = vpop.xlane.xlu0 %1415
      %v1417 = vsel %vm348, %v1094, 0.0
      %v1418 = vadd.f32 %v1093, %v1417
      %1419 = vadd.xlane.f32.xlu0 %v1418
      %v1420 = vpop.xlane.xlu0 %1419
      %v1421 = vsel %vm348, %v1096, 0.0
      %v1422 = vadd.f32 %v1095, %v1421
      %1423 = vadd.xlane.f32.xlu0 %v1422
      %v1424 = vpop.xlane.xlu0 %1423
      %v1425 = vsel %vm348, %v1098, 0.0
      %v1426 = vadd.f32 %v1097, %v1425
      %1427 = vadd.xlane.f32.xlu0 %v1426
      %v1428 = vpop.xlane.xlu0 %1427
      %v1429 = vsel %vm348, %v1100, 0.0
      %v1430 = vadd.f32 %v1099, %v1429
      %1431 = vadd.xlane.f32.xlu0 %v1430
      %v1432 = vpop.xlane.xlu0 %1431
      %v1433 = vsel %vm348, %v1102, 0.0
      %v1434 = vadd.f32 %v1101, %v1433
      %1435 = vadd.xlane.f32.xlu0 %v1434
      %v1436 = vpop.xlane.xlu0 %1435
      %v1437 = vsel %vm348, %v1104, 0.0
      %v1438 = vadd.f32 %v1103, %v1437
      %1439 = vadd.xlane.f32.xlu0 %v1438
      %v1440 = vpop.xlane.xlu0 %1439
      %v1441 = vmul.f32 %v1108, 0.0051020407
      %v1442 = vmul.f32 %v1112, 0.0051020407
      %v1443 = vmul.f32 %v1116, 0.0051020407
      %v1444 = vmul.f32 %v1120, 0.0051020407
      %v1445 = vmul.f32 %v1124, 0.0051020407
      %v1446 = vmul.f32 %v1128, 0.0051020407
      %v1447 = vmul.f32 %v1132, 0.0051020407
      %v1448 = vmul.f32 %v1136, 0.0051020407
      %v1449 = vmul.f32 %v1140, 0.0051020407
      %v1450 = vmul.f32 %v1144, 0.0051020407
      %v1451 = vmul.f32 %v1148, 0.0051020407
      %v1452 = vmul.f32 %v1152, 0.0051020407
      %v1453 = vmul.f32 %v1156, 0.0051020407
      %v1454 = vmul.f32 %v1160, 0.0051020407
      %v1455 = vmul.f32 %v1164, 0.0051020407
      %v1456 = vmul.f32 %v1168, 0.0051020407
      %v1457 = vmul.f32 %v1172, 0.0051020407
      %v1458 = vmul.f32 %v1176, 0.0051020407
      %v1459 = vmul.f32 %v1180, 0.0051020407
      %v1460 = vmul.f32 %v1184, 0.0051020407
      %v1461 = vmul.f32 %v1188, 0.0051020407
      %v1462 = vmul.f32 %v1192, 0.0051020407
      %v1463 = vmul.f32 %v1196, 0.0051020407
      %v1464 = vmul.f32 %v1200, 0.0051020407
      %v1465 = vmul.f32 %v1204, 0.0051020407
      %v1466 = vmul.f32 %v1208, 0.0051020407
      %v1467 = vmul.f32 %v1212, 0.0051020407
      %v1468 = vmul.f32 %v1216, 0.0051020407
      %v1469 = vmul.f32 %v1220, 0.0051020407
      %v1470 = vmul.f32 %v1224, 0.0051020407
      %v1471 = vmul.f32 %v1228, 0.0051020407
      %v1472 = vmul.f32 %v1232, 0.0051020407
      %v1473 = vmul.f32 %v1236, 0.0051020407
      %v1474 = vmul.f32 %v1240, 0.0051020407
      %v1475 = vmul.f32 %v1244, 0.0051020407
      %v1476 = vmul.f32 %v1248, 0.0051020407
      %v1477 = vmul.f32 %v1252, 0.0051020407
      %v1478 = vmul.f32 %v1256, 0.0051020407
      %v1479 = vmul.f32 %v1260, 0.0051020407
      %v1480 = vmul.f32 %v1264, 0.0051020407
      %v1481 = vmul.f32 %v1268, 0.0051020407
      %v1482 = vmul.f32 %v1272, 0.0051020407
      %v1483 = vmul.f32 %v1276, 0.0051020407
      %v1484 = vmul.f32 %v1280, 0.0051020407
      %v1485 = vmul.f32 %v1284, 0.0051020407
      %v1486 = vmul.f32 %v1288, 0.0051020407
      %v1487 = vmul.f32 %v1292, 0.0051020407
      %v1488 = vmul.f32 %v1296, 0.0051020407
      %v1489 = vmul.f32 %v1300, 0.0051020407
      %v1490 = vmul.f32 %v1304, 0.0051020407
      %v1491 = vmul.f32 %v1308, 0.0051020407
      %v1492 = vmul.f32 %v1312, 0.0051020407
      %v1493 = vmul.f32 %v1316, 0.0051020407
      %v1494 = vmul.f32 %v1320, 0.0051020407
      %v1495 = vmul.f32 %v1324, 0.0051020407
      %v1496 = vmul.f32 %v1328, 0.0051020407
      %v1497 = vmul.f32 %v1332, 0.0051020407
      %v1498 = vmul.f32 %v1336, 0.0051020407
      %v1499 = vmul.f32 %v1340, 0.0051020407
      %v1500 = vmul.f32 %v1344, 0.0051020407
      %v1501 = vmul.f32 %v1348, 0.0051020407
      %v1502 = vmul.f32 %v1352, 0.0051020407
      %v1503 = vmul.f32 %v1356, 0.0051020407
      %v1504 = vmul.f32 %v1360, 0.0051020407
      %v1505 = vmul.f32 %v1364, 0.0051020407
      %v1506 = vmul.f32 %v1368, 0.0051020407
      %v1507 = vmul.f32 %v1372, 0.0051020407
      %v1508 = vmul.f32 %v1376, 0.0051020407
      %v1509 = vmul.f32 %v1380, 0.0051020407
      %v1510 = vmul.f32 %v1384, 0.0051020407
      %v1511 = vmul.f32 %v1388, 0.0051020407
      %v1512 = vmul.f32 %v1392, 0.0051020407
      %v1513 = vmul.f32 %v1396, 0.0051020407
      %v1514 = vmul.f32 %v1400, 0.0051020407
      %v1515 = vmul.f32 %v1404, 0.0051020407
      %v1516 = vmul.f32 %v1408, 0.0051020407
      %v1517 = vmul.f32 %v1412, 0.0051020407
      %v1518 = vmul.f32 %v1416, 0.0051020407
      %v1519 = vmul.f32 %v1420, 0.0051020407
      %v1520 = vmul.f32 %v1424, 0.0051020407
      %v1521 = vmul.f32 %v1428, 0.0051020407
      %v1522 = vmul.f32 %v1432, 0.0051020407
      %v1523 = vmul.f32 %v1436, 0.0051020407
      %v1524 = vmul.f32 %v1440, 0.0051020407
      %s1525 = scalar_lea.vmem %s1, %s179
      %v1526 = vld [vmem:[%s1525] sm:$0xff]
      %v1527 = vld [vmem:[%s1525 + $0x8] sm:$0xff]
      %v1528 = vld [vmem:[%s1525 + $0x10] sm:$0xff]
      %v1529 = vld [vmem:[%s1525 + $0x18] sm:$0xff]
      %v1530 = vld [vmem:[%s1525 + $0x20] sm:$0xff]
      %v1531 = vld [vmem:[%s1525 + $0x28] sm:$0xff]
      %v1532 = vld [vmem:[%s1525 + $0x30] sm:$0xff]
      %v1533 = vld [vmem:[%s1525 + $0x38] sm:$0xff]
      %v1534 = vld [vmem:[%s1525 + $0x40] sm:$0xff]
      %v1535 = vld [vmem:[%s1525 + $0x48] sm:$0xff]
      %v1536 = vld [vmem:[%s1525 + $0x50] sm:$0xff]
      %v1537 = vld [vmem:[%s1525 + $0x58] sm:$0xff]
      %v1538 = vld [vmem:[%s1525 + $0x60] sm:$0xff]
      %v1539 = vld [vmem:[%s1525 + $0x68] sm:$0xff]
      %v1540 = vld [vmem:[%s1525 + $0x70] sm:$0xff]
      %v1541 = vld [vmem:[%s1525 + $0x78] sm:$0xff]
      %v1542 = vld [vmem:[%s1525 + $0x80] sm:$0xff]
      %v1543 = vld [vmem:[%s1525 + $0x88] sm:$0xff]
      %v1544 = vld [vmem:[%s1525 + $0x90] sm:$0xff]
      %v1545 = vld [vmem:[%s1525 + $0x98] sm:$0xff]
      %v1546 = vld [vmem:[%s1525 + $0xa0] sm:$0xff]
      %v1547 = vld [vmem:[%s1525 + $0xa8] sm:$0xff]
      %v1548 = vld [vmem:[%s1525 + $0xb0] sm:$0xff]
      %v1549 = vld [vmem:[%s1525 + $0xb8] sm:$0xff]
      %v1550 = vld [vmem:[%s1525 + $0xc0] sm:$0xff]
      %v1551 = vld [vmem:[%s1525 + $0xc8] sm:$0xff]
      %v1552 = vld [vmem:[%s1525 + $0xd0] sm:$0xff]
      %v1553 = vld [vmem:[%s1525 + $0xd8] sm:$0xff]
      %v1554 = vld [vmem:[%s1525 + $0xe0] sm:$0xff]
      %v1555 = vld [vmem:[%s1525 + $0xe8] sm:$0xff]
      %v1556 = vld [vmem:[%s1525 + $0xf0] sm:$0xff]
      %v1557 = vld [vmem:[%s1525 + $0xf8] sm:$0xff]
      %v1558 = vld [vmem:[%s1525 + $0x100] sm:$0xff]
      %v1559 = vld [vmem:[%s1525 + $0x108] sm:$0xff]
      %v1560 = vld [vmem:[%s1525 + $0x110] sm:$0xff]
      %v1561 = vld [vmem:[%s1525 + $0x118] sm:$0xff]
      %v1562 = vld [vmem:[%s1525 + $0x120] sm:$0xff]
      %v1563 = vld [vmem:[%s1525 + $0x128] sm:$0xff]
      %v1564 = vld [vmem:[%s1525 + $0x130] sm:$0xff]
      %v1565 = vld [vmem:[%s1525 + $0x138] sm:$0xff]
      %v1566 = vld [vmem:[%s1525 + $0x140] sm:$0xff]
      %v1567 = vld [vmem:[%s1525 + $0x148] sm:$0xff]
      %v1568 = vld [vmem:[%s1525 + $0x150] sm:$0xff]
      %v1569 = vld [vmem:[%s1525 + $0x158] sm:$0xff]
      %v1570 = vld [vmem:[%s1525 + $0x160] sm:$0xff]
      %v1571 = vld [vmem:[%s1525 + $0x168] sm:$0xff]
      %v1572 = vld [vmem:[%s1525 + $0x170] sm:$0xff]
      %v1573 = vld [vmem:[%s1525 + $0x178] sm:$0xff]
      %v1574 = vld [vmem:[%s1525 + $0x180] sm:$0xff]
      %v1575 = vld [vmem:[%s1525 + $0x188] sm:$0xff]
      %v1576 = vld [vmem:[%s1525 + $0x190] sm:$0xff]
      %v1577 = vld [vmem:[%s1525 + $0x198] sm:$0xff]
      %v1578 = vld [vmem:[%s1525 + $0x1a0] sm:$0xff]
      %v1579 = vld [vmem:[%s1525 + $0x1a8] sm:$0xff]
      %v1580 = vld [vmem:[%s1525 + $0x1b0] sm:$0xff]
      %v1581 = vld [vmem:[%s1525 + $0x1b8] sm:$0xff]
      %v1582 = vld [vmem:[%s1525 + $0x1c0] sm:$0xff]
      %v1583 = vld [vmem:[%s1525 + $0x1c8] sm:$0xff]
      %v1584 = vld [vmem:[%s1525 + $0x1d0] sm:$0xff]
      %v1585 = vld [vmem:[%s1525 + $0x1d8] sm:$0xff]
      %v1586 = vld [vmem:[%s1525 + $0x1e0] sm:$0xff]
      %v1587 = vld [vmem:[%s1525 + $0x1e8] sm:$0xff]
      %v1588 = vld [vmem:[%s1525 + $0x1f0] sm:$0xff]
      %v1589 = vld [vmem:[%s1525 + $0x1f8] sm:$0xff]
      %v1590 = vld [vmem:[%s1525 + $0x200] sm:$0xff]
      %v1591 = vld [vmem:[%s1525 + $0x208] sm:$0xff]
      %v1592 = vld [vmem:[%s1525 + $0x210] sm:$0xff]
      %v1593 = vld [vmem:[%s1525 + $0x218] sm:$0xff]
      %v1594 = vld [vmem:[%s1525 + $0x220] sm:$0xff]
      %v1595 = vld [vmem:[%s1525 + $0x228] sm:$0xff]
      %v1596 = vld [vmem:[%s1525 + $0x230] sm:$0xff]
      %v1597 = vld [vmem:[%s1525 + $0x238] sm:$0xff]
      %v1598 = vld [vmem:[%s1525 + $0x240] sm:$0xff]
      %v1599 = vld [vmem:[%s1525 + $0x248] sm:$0xff]
      %v1600 = vld [vmem:[%s1525 + $0x250] sm:$0xff]
      %v1601 = vld [vmem:[%s1525 + $0x258] sm:$0xff]
      %v1602 = vld [vmem:[%s1525 + $0x260] sm:$0xff]
      %v1603 = vld [vmem:[%s1525 + $0x268] sm:$0xff]
      %v1604 = vld [vmem:[%s1525 + $0x270] sm:$0xff]
      %v1605 = vld [vmem:[%s1525 + $0x278] sm:$0xff]
      %v1606 = vld [vmem:[%s1525 + $0x280] sm:$0xff]
      %v1607 = vld [vmem:[%s1525 + $0x288] sm:$0xff]
      %v1608 = vld [vmem:[%s1525 + $0x290] sm:$0xff]
      %v1609 = vld [vmem:[%s1525 + $0x298] sm:$0xff]
      %s1610 = scalar_lea.vmem %s2, %s179
      %v1611 = vld [vmem:[%s1610] sm:$0xff]
      %v1612 = vld [vmem:[%s1610 + $0x8] sm:$0xff]
      %v1613 = vld [vmem:[%s1610 + $0x10] sm:$0xff]
      %v1614 = vld [vmem:[%s1610 + $0x18] sm:$0xff]
      %v1615 = vld [vmem:[%s1610 + $0x20] sm:$0xff]
      %v1616 = vld [vmem:[%s1610 + $0x28] sm:$0xff]
      %v1617 = vld [vmem:[%s1610 + $0x30] sm:$0xff]
      %v1618 = vld [vmem:[%s1610 + $0x38] sm:$0xff]
      %v1619 = vld [vmem:[%s1610 + $0x40] sm:$0xff]
      %v1620 = vld [vmem:[%s1610 + $0x48] sm:$0xff]
      %v1621 = vld [vmem:[%s1610 + $0x50] sm:$0xff]
      %v1622 = vld [vmem:[%s1610 + $0x58] sm:$0xff]
      %v1623 = vld [vmem:[%s1610 + $0x60] sm:$0xff]
      %v1624 = vld [vmem:[%s1610 + $0x68] sm:$0xff]
      %v1625 = vld [vmem:[%s1610 + $0x70] sm:$0xff]
      %v1626 = vld [vmem:[%s1610 + $0x78] sm:$0xff]
      %v1627 = vld [vmem:[%s1610 + $0x80] sm:$0xff]
      %v1628 = vld [vmem:[%s1610 + $0x88] sm:$0xff]
      %v1629 = vld [vmem:[%s1610 + $0x90] sm:$0xff]
      %v1630 = vld [vmem:[%s1610 + $0x98] sm:$0xff]
      %v1631 = vld [vmem:[%s1610 + $0xa0] sm:$0xff]
      %v1632 = vld [vmem:[%s1610 + $0xa8] sm:$0xff]
      %v1633 = vld [vmem:[%s1610 + $0xb0] sm:$0xff]
      %v1634 = vld [vmem:[%s1610 + $0xb8] sm:$0xff]
      %v1635 = vld [vmem:[%s1610 + $0xc0] sm:$0xff]
      %v1636 = vld [vmem:[%s1610 + $0xc8] sm:$0xff]
      %v1637 = vld [vmem:[%s1610 + $0xd0] sm:$0xff]
      %v1638 = vld [vmem:[%s1610 + $0xd8] sm:$0xff]
      %v1639 = vld [vmem:[%s1610 + $0xe0] sm:$0xff]
      %v1640 = vld [vmem:[%s1610 + $0xe8] sm:$0xff]
      %v1641 = vld [vmem:[%s1610 + $0xf0] sm:$0xff]
      %v1642 = vld [vmem:[%s1610 + $0xf8] sm:$0xff]
      %v1643 = vld [vmem:[%s1610 + $0x100] sm:$0xff]
      %v1644 = vld [vmem:[%s1610 + $0x108] sm:$0xff]
      %v1645 = vld [vmem:[%s1610 + $0x110] sm:$0xff]
      %v1646 = vld [vmem:[%s1610 + $0x118] sm:$0xff]
      %v1647 = vld [vmem:[%s1610 + $0x120] sm:$0xff]
      %v1648 = vld [vmem:[%s1610 + $0x128] sm:$0xff]
      %v1649 = vld [vmem:[%s1610 + $0x130] sm:$0xff]
      %v1650 = vld [vmem:[%s1610 + $0x138] sm:$0xff]
      %v1651 = vld [vmem:[%s1610 + $0x140] sm:$0xff]
      %v1652 = vld [vmem:[%s1610 + $0x148] sm:$0xff]
      %v1653 = vld [vmem:[%s1610 + $0x150] sm:$0xff]
      %v1654 = vld [vmem:[%s1610 + $0x158] sm:$0xff]
      %v1655 = vld [vmem:[%s1610 + $0x160] sm:$0xff]
      %v1656 = vld [vmem:[%s1610 + $0x168] sm:$0xff]
      %v1657 = vld [vmem:[%s1610 + $0x170] sm:$0xff]
      %v1658 = vld [vmem:[%s1610 + $0x178] sm:$0xff]
      %v1659 = vld [vmem:[%s1610 + $0x180] sm:$0xff]
      %v1660 = vld [vmem:[%s1610 + $0x188] sm:$0xff]
      %v1661 = vld [vmem:[%s1610 + $0x190] sm:$0xff]
      %v1662 = vld [vmem:[%s1610 + $0x198] sm:$0xff]
      %v1663 = vld [vmem:[%s1610 + $0x1a0] sm:$0xff]
      %v1664 = vld [vmem:[%s1610 + $0x1a8] sm:$0xff]
      %v1665 = vld [vmem:[%s1610 + $0x1b0] sm:$0xff]
      %v1666 = vld [vmem:[%s1610 + $0x1b8] sm:$0xff]
      %v1667 = vld [vmem:[%s1610 + $0x1c0] sm:$0xff]
      %v1668 = vld [vmem:[%s1610 + $0x1c8] sm:$0xff]
      %v1669 = vld [vmem:[%s1610 + $0x1d0] sm:$0xff]
      %v1670 = vld [vmem:[%s1610 + $0x1d8] sm:$0xff]
      %v1671 = vld [vmem:[%s1610 + $0x1e0] sm:$0xff]
      %v1672 = vld [vmem:[%s1610 + $0x1e8] sm:$0xff]
      %v1673 = vld [vmem:[%s1610 + $0x1f0] sm:$0xff]
      %v1674 = vld [vmem:[%s1610 + $0x1f8] sm:$0xff]
      %v1675 = vld [vmem:[%s1610 + $0x200] sm:$0xff]
      %v1676 = vld [vmem:[%s1610 + $0x208] sm:$0xff]
      %v1677 = vld [vmem:[%s1610 + $0x210] sm:$0xff]
      %v1678 = vld [vmem:[%s1610 + $0x218] sm:$0xff]
      %v1679 = vld [vmem:[%s1610 + $0x220] sm:$0xff]
      %v1680 = vld [vmem:[%s1610 + $0x228] sm:$0xff]
      %v1681 = vld [vmem:[%s1610 + $0x230] sm:$0xff]
      %v1682 = vld [vmem:[%s1610 + $0x238] sm:$0xff]
      %v1683 = vld [vmem:[%s1610 + $0x240] sm:$0xff]
      %v1684 = vld [vmem:[%s1610 + $0x248] sm:$0xff]
      %v1685 = vld [vmem:[%s1610 + $0x250] sm:$0xff]
      %v1686 = vld [vmem:[%s1610 + $0x258] sm:$0xff]
      %v1687 = vld [vmem:[%s1610 + $0x260] sm:$0xff]
      %v1688 = vld [vmem:[%s1610 + $0x268] sm:$0xff]
      %v1689 = vld [vmem:[%s1610 + $0x270] sm:$0xff]
      %v1690 = vld [vmem:[%s1610 + $0x278] sm:$0xff]
      %v1691 = vld [vmem:[%s1610 + $0x280] sm:$0xff]
      %v1692 = vld [vmem:[%s1610 + $0x288] sm:$0xff]
      %v1693 = vld [vmem:[%s1610 + $0x290] sm:$0xff]
      %v1694 = vld [vmem:[%s1610 + $0x298] sm:$0xff]
      %v1695 = vadd.f32 %v1441, 0.001
      %v1696 = vadd.f32 %v1442, 0.001
      %v1697 = vadd.f32 %v1443, 0.001
      %v1698 = vadd.f32 %v1444, 0.001
      %v1699 = vadd.f32 %v1445, 0.001
      %v1700 = vadd.f32 %v1446, 0.001
      %v1701 = vadd.f32 %v1447, 0.001
      %v1702 = vadd.f32 %v1448, 0.001
      %v1703 = vadd.f32 %v1449, 0.001
      %v1704 = vadd.f32 %v1450, 0.001
      %v1705 = vadd.f32 %v1451, 0.001
      %v1706 = vadd.f32 %v1452, 0.001
      %v1707 = vadd.f32 %v1453, 0.001
      %v1708 = vadd.f32 %v1454, 0.001
      %v1709 = vadd.f32 %v1455, 0.001
      %v1710 = vadd.f32 %v1456, 0.001
      %v1711 = vadd.f32 %v1457, 0.001
      %v1712 = vadd.f32 %v1458, 0.001
      %v1713 = vadd.f32 %v1459, 0.001
      %v1714 = vadd.f32 %v1460, 0.001
      %v1715 = vadd.f32 %v1461, 0.001
      %v1716 = vadd.f32 %v1462, 0.001
      %v1717 = vadd.f32 %v1463, 0.001
      %v1718 = vadd.f32 %v1464, 0.001
      %v1719 = vadd.f32 %v1465, 0.001
      %v1720 = vadd.f32 %v1466, 0.001
      %v1721 = vadd.f32 %v1467, 0.001
      %v1722 = vadd.f32 %v1468, 0.001
      %v1723 = vadd.f32 %v1469, 0.001
      %v1724 = vadd.f32 %v1470, 0.001
      %v1725 = vadd.f32 %v1471, 0.001
      %v1726 = vadd.f32 %v1472, 0.001
      %v1727 = vadd.f32 %v1473, 0.001
      %v1728 = vadd.f32 %v1474, 0.001
      %v1729 = vadd.f32 %v1475, 0.001
      %v1730 = vadd.f32 %v1476, 0.001
      %v1731 = vadd.f32 %v1477, 0.001
      %v1732 = vadd.f32 %v1478, 0.001
      %v1733 = vadd.f32 %v1479, 0.001
      %v1734 = vadd.f32 %v1480, 0.001
      %v1735 = vadd.f32 %v1481, 0.001
      %v1736 = vadd.f32 %v1482, 0.001
      %v1737 = vadd.f32 %v1483, 0.001
      %v1738 = vadd.f32 %v1484, 0.001
      %v1739 = vadd.f32 %v1485, 0.001
      %v1740 = vadd.f32 %v1486, 0.001
      %v1741 = vadd.f32 %v1487, 0.001
      %v1742 = vadd.f32 %v1488, 0.001
      %v1743 = vadd.f32 %v1489, 0.001
      %v1744 = vadd.f32 %v1490, 0.001
      %v1745 = vadd.f32 %v1491, 0.001
      %v1746 = vadd.f32 %v1492, 0.001
      %v1747 = vadd.f32 %v1493, 0.001
      %v1748 = vadd.f32 %v1494, 0.001
      %v1749 = vadd.f32 %v1495, 0.001
      %v1750 = vadd.f32 %v1496, 0.001
      %v1751 = vadd.f32 %v1497, 0.001
      %v1752 = vadd.f32 %v1498, 0.001
      %v1753 = vadd.f32 %v1499, 0.001
      %v1754 = vadd.f32 %v1500, 0.001
      %v1755 = vadd.f32 %v1501, 0.001
      %v1756 = vadd.f32 %v1502, 0.001
      %v1757 = vadd.f32 %v1503, 0.001
      %v1758 = vadd.f32 %v1504, 0.001
      %v1759 = vadd.f32 %v1505, 0.001
      %v1760 = vadd.f32 %v1506, 0.001
      %v1761 = vadd.f32 %v1507, 0.001
      %v1762 = vadd.f32 %v1508, 0.001
      %v1763 = vadd.f32 %v1509, 0.001
      %v1764 = vadd.f32 %v1510, 0.001
      %v1765 = vadd.f32 %v1511, 0.001
      %v1766 = vadd.f32 %v1512, 0.001
      %v1767 = vadd.f32 %v1513, 0.001
      %v1768 = vadd.f32 %v1514, 0.001
      %v1769 = vadd.f32 %v1515, 0.001
      %v1770 = vadd.f32 %v1516, 0.001
      %v1771 = vadd.f32 %v1517, 0.001
      %v1772 = vadd.f32 %v1518, 0.001
      %v1773 = vadd.f32 %v1519, 0.001
      %v1774 = vadd.f32 %v1520, 0.001
      %v1775 = vadd.f32 %v1521, 0.001
      %v1776 = vadd.f32 %v1522, 0.001
      %v1777 = vadd.f32 %v1523, 0.001
      %v1778 = vadd.f32 %v1524, 0.001
      %v1779 = vrsqrt.pop %v1695
      %v1780 = vmul.f32 %v1779, %v1695
      %v1781 = vmul.f32 %v1780, %v1779
      %v1782 = vmul.f32 0.5, %v1781
      %v1783 = vsub.f32 1.5, %v1782
      %v1784 = vmul.f32 %v1779, %v1783
      %vm1785 = vweird.f32 %v1695
      %vm1786 = vweird.f32 %v1779
      %vm1787 = vmor %vm1785, %vm1786
      %v1788 = vsel %vm1787, %v1779, %v1784
      %v1789 = vrsqrt.pop %v1696
      %v1790 = vmul.f32 %v1789, %v1696
      %v1791 = vmul.f32 %v1790, %v1789
      %v1792 = vmul.f32 0.5, %v1791
      %v1793 = vsub.f32 1.5, %v1792
      %v1794 = vmul.f32 %v1789, %v1793
      %vm1795 = vweird.f32 %v1696
      %vm1796 = vweird.f32 %v1789
      %vm1797 = vmor %vm1795, %vm1796
      %v1798 = vsel %vm1797, %v1789, %v1794
      %v1799 = vrsqrt.pop %v1697
      %v1800 = vmul.f32 %v1799, %v1697
      %v1801 = vmul.f32 %v1800, %v1799
      %v1802 = vmul.f32 0.5, %v1801
      %v1803 = vsub.f32 1.5, %v1802
      %v1804 = vmul.f32 %v1799, %v1803
      %vm1805 = vweird.f32 %v1697
      %vm1806 = vweird.f32 %v1799
      %vm1807 = vmor %vm1805, %vm1806
      %v1808 = vsel %vm1807, %v1799, %v1804
      %v1809 = vrsqrt.pop %v1698
      %v1810 = vmul.f32 %v1809, %v1698
      %v1811 = vmul.f32 %v1810, %v1809
      %v1812 = vmul.f32 0.5, %v1811
      %v1813 = vsub.f32 1.5, %v1812
      %v1814 = vmul.f32 %v1809, %v1813
      %vm1815 = vweird.f32 %v1698
      %vm1816 = vweird.f32 %v1809
      %vm1817 = vmor %vm1815, %vm1816
      %v1818 = vsel %vm1817, %v1809, %v1814
      %v1819 = vrsqrt.pop %v1699
      %v1820 = vmul.f32 %v1819, %v1699
      %v1821 = vmul.f32 %v1820, %v1819
      %v1822 = vmul.f32 0.5, %v1821
      %v1823 = vsub.f32 1.5, %v1822
      %v1824 = vmul.f32 %v1819, %v1823
      %vm1825 = vweird.f32 %v1699
      %vm1826 = vweird.f32 %v1819
      %vm1827 = vmor %vm1825, %vm1826
      %v1828 = vsel %vm1827, %v1819, %v1824
      %v1829 = vrsqrt.pop %v1700
      %v1830 = vmul.f32 %v1829, %v1700
      %v1831 = vmul.f32 %v1830, %v1829
      %v1832 = vmul.f32 0.5, %v1831
      %v1833 = vsub.f32 1.5, %v1832
      %v1834 = vmul.f32 %v1829, %v1833
      %vm1835 = vweird.f32 %v1700
      %vm1836 = vweird.f32 %v1829
      %vm1837 = vmor %vm1835, %vm1836
      %v1838 = vsel %vm1837, %v1829, %v1834
      %v1839 = vrsqrt.pop %v1701
      %v1840 = vmul.f32 %v1839, %v1701
      %v1841 = vmul.f32 %v1840, %v1839
      %v1842 = vmul.f32 0.5, %v1841
      %v1843 = vsub.f32 1.5, %v1842
      %v1844 = vmul.f32 %v1839, %v1843
      %vm1845 = vweird.f32 %v1701
      %vm1846 = vweird.f32 %v1839
      %vm1847 = vmor %vm1845, %vm1846
      %v1848 = vsel %vm1847, %v1839, %v1844
      %v1849 = vrsqrt.pop %v1702
      %v1850 = vmul.f32 %v1849, %v1702
      %v1851 = vmul.f32 %v1850, %v1849
      %v1852 = vmul.f32 0.5, %v1851
      %v1853 = vsub.f32 1.5, %v1852
      %v1854 = vmul.f32 %v1849, %v1853
      %vm1855 = vweird.f32 %v1702
      %vm1856 = vweird.f32 %v1849
      %vm1857 = vmor %vm1855, %vm1856
      %v1858 = vsel %vm1857, %v1849, %v1854
      %v1859 = vrsqrt.pop %v1703
      %v1860 = vmul.f32 %v1859, %v1703
      %v1861 = vmul.f32 %v1860, %v1859
      %v1862 = vmul.f32 0.5, %v1861
      %v1863 = vsub.f32 1.5, %v1862
      %v1864 = vmul.f32 %v1859, %v1863
      %vm1865 = vweird.f32 %v1703
      %vm1866 = vweird.f32 %v1859
      %vm1867 = vmor %vm1865, %vm1866
      %v1868 = vsel %vm1867, %v1859, %v1864
      %v1869 = vrsqrt.pop %v1704
      %v1870 = vmul.f32 %v1869, %v1704
      %v1871 = vmul.f32 %v1870, %v1869
      %v1872 = vmul.f32 0.5, %v1871
      %v1873 = vsub.f32 1.5, %v1872
      %v1874 = vmul.f32 %v1869, %v1873
      %vm1875 = vweird.f32 %v1704
      %vm1876 = vweird.f32 %v1869
      %vm1877 = vmor %vm1875, %vm1876
      %v1878 = vsel %vm1877, %v1869, %v1874
      %v1879 = vrsqrt.pop %v1705
      %v1880 = vmul.f32 %v1879, %v1705
      %v1881 = vmul.f32 %v1880, %v1879
      %v1882 = vmul.f32 0.5, %v1881
      %v1883 = vsub.f32 1.5, %v1882
      %v1884 = vmul.f32 %v1879, %v1883
      %vm1885 = vweird.f32 %v1705
      %vm1886 = vweird.f32 %v1879
      %vm1887 = vmor %vm1885, %vm1886
      %v1888 = vsel %vm1887, %v1879, %v1884
      %v1889 = vrsqrt.pop %v1706
      %v1890 = vmul.f32 %v1889, %v1706
      %v1891 = vmul.f32 %v1890, %v1889
      %v1892 = vmul.f32 0.5, %v1891
      %v1893 = vsub.f32 1.5, %v1892
      %v1894 = vmul.f32 %v1889, %v1893
      %vm1895 = vweird.f32 %v1706
      %vm1896 = vweird.f32 %v1889
      %vm1897 = vmor %vm1895, %vm1896
      %v1898 = vsel %vm1897, %v1889, %v1894
      %v1899 = vrsqrt.pop %v1707
      %v1900 = vmul.f32 %v1899, %v1707
      %v1901 = vmul.f32 %v1900, %v1899
      %v1902 = vmul.f32 0.5, %v1901
      %v1903 = vsub.f32 1.5, %v1902
      %v1904 = vmul.f32 %v1899, %v1903
      %vm1905 = vweird.f32 %v1707
      %vm1906 = vweird.f32 %v1899
      %vm1907 = vmor %vm1905, %vm1906
      %v1908 = vsel %vm1907, %v1899, %v1904
      %v1909 = vrsqrt.pop %v1708
      %v1910 = vmul.f32 %v1909, %v1708
      %v1911 = vmul.f32 %v1910, %v1909
      %v1912 = vmul.f32 0.5, %v1911
      %v1913 = vsub.f32 1.5, %v1912
      %v1914 = vmul.f32 %v1909, %v1913
      %vm1915 = vweird.f32 %v1708
      %vm1916 = vweird.f32 %v1909
      %vm1917 = vmor %vm1915, %vm1916
      %v1918 = vsel %vm1917, %v1909, %v1914
      %v1919 = vrsqrt.pop %v1709
      %v1920 = vmul.f32 %v1919, %v1709
      %v1921 = vmul.f32 %v1920, %v1919
      %v1922 = vmul.f32 0.5, %v1921
      %v1923 = vsub.f32 1.5, %v1922
      %v1924 = vmul.f32 %v1919, %v1923
      %vm1925 = vweird.f32 %v1709
      %vm1926 = vweird.f32 %v1919
      %vm1927 = vmor %vm1925, %vm1926
      %v1928 = vsel %vm1927, %v1919, %v1924
      %v1929 = vrsqrt.pop %v1710
      %v1930 = vmul.f32 %v1929, %v1710
      %v1931 = vmul.f32 %v1930, %v1929
      %v1932 = vmul.f32 0.5, %v1931
      %v1933 = vsub.f32 1.5, %v1932
      %v1934 = vmul.f32 %v1929, %v1933
      %vm1935 = vweird.f32 %v1710
      %vm1936 = vweird.f32 %v1929
      %vm1937 = vmor %vm1935, %vm1936
      %v1938 = vsel %vm1937, %v1929, %v1934
      %v1939 = vrsqrt.pop %v1711
      %v1940 = vmul.f32 %v1939, %v1711
      %v1941 = vmul.f32 %v1940, %v1939
      %v1942 = vmul.f32 0.5, %v1941
      %v1943 = vsub.f32 1.5, %v1942
      %v1944 = vmul.f32 %v1939, %v1943
      %vm1945 = vweird.f32 %v1711
      %vm1946 = vweird.f32 %v1939
      %vm1947 = vmor %vm1945, %vm1946
      %v1948 = vsel %vm1947, %v1939, %v1944
      %v1949 = vrsqrt.pop %v1712
      %v1950 = vmul.f32 %v1949, %v1712
      %v1951 = vmul.f32 %v1950, %v1949
      %v1952 = vmul.f32 0.5, %v1951
      %v1953 = vsub.f32 1.5, %v1952
      %v1954 = vmul.f32 %v1949, %v1953
      %vm1955 = vweird.f32 %v1712
      %vm1956 = vweird.f32 %v1949
      %vm1957 = vmor %vm1955, %vm1956
      %v1958 = vsel %vm1957, %v1949, %v1954
      %v1959 = vrsqrt.pop %v1713
      %v1960 = vmul.f32 %v1959, %v1713
      %v1961 = vmul.f32 %v1960, %v1959
      %v1962 = vmul.f32 0.5, %v1961
      %v1963 = vsub.f32 1.5, %v1962
      %v1964 = vmul.f32 %v1959, %v1963
      %vm1965 = vweird.f32 %v1713
      %vm1966 = vweird.f32 %v1959
      %vm1967 = vmor %vm1965, %vm1966
      %v1968 = vsel %vm1967, %v1959, %v1964
      %v1969 = vrsqrt.pop %v1714
      %v1970 = vmul.f32 %v1969, %v1714
      %v1971 = vmul.f32 %v1970, %v1969
      %v1972 = vmul.f32 0.5, %v1971
      %v1973 = vsub.f32 1.5, %v1972
      %v1974 = vmul.f32 %v1969, %v1973
      %vm1975 = vweird.f32 %v1714
      %vm1976 = vweird.f32 %v1969
      %vm1977 = vmor %vm1975, %vm1976
      %v1978 = vsel %vm1977, %v1969, %v1974
      %v1979 = vrsqrt.pop %v1715
      %v1980 = vmul.f32 %v1979, %v1715
      %v1981 = vmul.f32 %v1980, %v1979
      %v1982 = vmul.f32 0.5, %v1981
      %v1983 = vsub.f32 1.5, %v1982
      %v1984 = vmul.f32 %v1979, %v1983
      %vm1985 = vweird.f32 %v1715
      %vm1986 = vweird.f32 %v1979
      %vm1987 = vmor %vm1985, %vm1986
      %v1988 = vsel %vm1987, %v1979, %v1984
      %v1989 = vrsqrt.pop %v1716
      %v1990 = vmul.f32 %v1989, %v1716
      %v1991 = vmul.f32 %v1990, %v1989
      %v1992 = vmul.f32 0.5, %v1991
      %v1993 = vsub.f32 1.5, %v1992
      %v1994 = vmul.f32 %v1989, %v1993
      %vm1995 = vweird.f32 %v1716
      %vm1996 = vweird.f32 %v1989
      %vm1997 = vmor %vm1995, %vm1996
      %v1998 = vsel %vm1997, %v1989, %v1994
      %v1999 = vrsqrt.pop %v1717
      %v2000 = vmul.f32 %v1999, %v1717
      %v2001 = vmul.f32 %v2000, %v1999
      %v2002 = vmul.f32 0.5, %v2001
      %v2003 = vsub.f32 1.5, %v2002
      %v2004 = vmul.f32 %v1999, %v2003
      %vm2005 = vweird.f32 %v1717
      %vm2006 = vweird.f32 %v1999
      %vm2007 = vmor %vm2005, %vm2006
      %v2008 = vsel %vm2007, %v1999, %v2004
      %v2009 = vrsqrt.pop %v1718
      %v2010 = vmul.f32 %v2009, %v1718
      %v2011 = vmul.f32 %v2010, %v2009
      %v2012 = vmul.f32 0.5, %v2011
      %v2013 = vsub.f32 1.5, %v2012
      %v2014 = vmul.f32 %v2009, %v2013
      %vm2015 = vweird.f32 %v1718
      %vm2016 = vweird.f32 %v2009
      %vm2017 = vmor %vm2015, %vm2016
      %v2018 = vsel %vm2017, %v2009, %v2014
      %v2019 = vrsqrt.pop %v1719
      %v2020 = vmul.f32 %v2019, %v1719
      %v2021 = vmul.f32 %v2020, %v2019
      %v2022 = vmul.f32 0.5, %v2021
      %v2023 = vsub.f32 1.5, %v2022
      %v2024 = vmul.f32 %v2019, %v2023
      %vm2025 = vweird.f32 %v1719
      %vm2026 = vweird.f32 %v2019
      %vm2027 = vmor %vm2025, %vm2026
      %v2028 = vsel %vm2027, %v2019, %v2024
      %v2029 = vrsqrt.pop %v1720
      %v2030 = vmul.f32 %v2029, %v1720
      %v2031 = vmul.f32 %v2030, %v2029
      %v2032 = vmul.f32 0.5, %v2031
      %v2033 = vsub.f32 1.5, %v2032
      %v2034 = vmul.f32 %v2029, %v2033
      %vm2035 = vweird.f32 %v1720
      %vm2036 = vweird.f32 %v2029
      %vm2037 = vmor %vm2035, %vm2036
      %v2038 = vsel %vm2037, %v2029, %v2034
      %v2039 = vrsqrt.pop %v1721
      %v2040 = vmul.f32 %v2039, %v1721
      %v2041 = vmul.f32 %v2040, %v2039
      %v2042 = vmul.f32 0.5, %v2041
      %v2043 = vsub.f32 1.5, %v2042
      %v2044 = vmul.f32 %v2039, %v2043
      %vm2045 = vweird.f32 %v1721
      %vm2046 = vweird.f32 %v2039
      %vm2047 = vmor %vm2045, %vm2046
      %v2048 = vsel %vm2047, %v2039, %v2044
      %v2049 = vrsqrt.pop %v1722
      %v2050 = vmul.f32 %v2049, %v1722
      %v2051 = vmul.f32 %v2050, %v2049
      %v2052 = vmul.f32 0.5, %v2051
      %v2053 = vsub.f32 1.5, %v2052
      %v2054 = vmul.f32 %v2049, %v2053
      %vm2055 = vweird.f32 %v1722
      %vm2056 = vweird.f32 %v2049
      %vm2057 = vmor %vm2055, %vm2056
      %v2058 = vsel %vm2057, %v2049, %v2054
      %v2059 = vrsqrt.pop %v1723
      %v2060 = vmul.f32 %v2059, %v1723
      %v2061 = vmul.f32 %v2060, %v2059
      %v2062 = vmul.f32 0.5, %v2061
      %v2063 = vsub.f32 1.5, %v2062
      %v2064 = vmul.f32 %v2059, %v2063
      %vm2065 = vweird.f32 %v1723
      %vm2066 = vweird.f32 %v2059
      %vm2067 = vmor %vm2065, %vm2066
      %v2068 = vsel %vm2067, %v2059, %v2064
      %v2069 = vrsqrt.pop %v1724
      %v2070 = vmul.f32 %v2069, %v1724
      %v2071 = vmul.f32 %v2070, %v2069
      %v2072 = vmul.f32 0.5, %v2071
      %v2073 = vsub.f32 1.5, %v2072
      %v2074 = vmul.f32 %v2069, %v2073
      %vm2075 = vweird.f32 %v1724
      %vm2076 = vweird.f32 %v2069
      %vm2077 = vmor %vm2075, %vm2076
      %v2078 = vsel %vm2077, %v2069, %v2074
      %v2079 = vrsqrt.pop %v1725
      %v2080 = vmul.f32 %v2079, %v1725
      %v2081 = vmul.f32 %v2080, %v2079
      %v2082 = vmul.f32 0.5, %v2081
      %v2083 = vsub.f32 1.5, %v2082
      %v2084 = vmul.f32 %v2079, %v2083
      %vm2085 = vweird.f32 %v1725
      %vm2086 = vweird.f32 %v2079
      %vm2087 = vmor %vm2085, %vm2086
      %v2088 = vsel %vm2087, %v2079, %v2084
      %v2089 = vrsqrt.pop %v1726
      %v2090 = vmul.f32 %v2089, %v1726
      %v2091 = vmul.f32 %v2090, %v2089
      %v2092 = vmul.f32 0.5, %v2091
      %v2093 = vsub.f32 1.5, %v2092
      %v2094 = vmul.f32 %v2089, %v2093
      %vm2095 = vweird.f32 %v1726
      %vm2096 = vweird.f32 %v2089
      %vm2097 = vmor %vm2095, %vm2096
      %v2098 = vsel %vm2097, %v2089, %v2094
      %v2099 = vrsqrt.pop %v1727
      %v2100 = vmul.f32 %v2099, %v1727
      %v2101 = vmul.f32 %v2100, %v2099
      %v2102 = vmul.f32 0.5, %v2101
      %v2103 = vsub.f32 1.5, %v2102
      %v2104 = vmul.f32 %v2099, %v2103
      %vm2105 = vweird.f32 %v1727
      %vm2106 = vweird.f32 %v2099
      %vm2107 = vmor %vm2105, %vm2106
      %v2108 = vsel %vm2107, %v2099, %v2104
      %v2109 = vrsqrt.pop %v1728
      %v2110 = vmul.f32 %v2109, %v1728
      %v2111 = vmul.f32 %v2110, %v2109
      %v2112 = vmul.f32 0.5, %v2111
      %v2113 = vsub.f32 1.5, %v2112
      %v2114 = vmul.f32 %v2109, %v2113
      %vm2115 = vweird.f32 %v1728
      %vm2116 = vweird.f32 %v2109
      %vm2117 = vmor %vm2115, %vm2116
      %v2118 = vsel %vm2117, %v2109, %v2114
      %v2119 = vrsqrt.pop %v1729
      %v2120 = vmul.f32 %v2119, %v1729
      %v2121 = vmul.f32 %v2120, %v2119
      %v2122 = vmul.f32 0.5, %v2121
      %v2123 = vsub.f32 1.5, %v2122
      %v2124 = vmul.f32 %v2119, %v2123
      %vm2125 = vweird.f32 %v1729
      %vm2126 = vweird.f32 %v2119
      %vm2127 = vmor %vm2125, %vm2126
      %v2128 = vsel %vm2127, %v2119, %v2124
      %v2129 = vrsqrt.pop %v1730
      %v2130 = vmul.f32 %v2129, %v1730
      %v2131 = vmul.f32 %v2130, %v2129
      %v2132 = vmul.f32 0.5, %v2131
      %v2133 = vsub.f32 1.5, %v2132
      %v2134 = vmul.f32 %v2129, %v2133
      %vm2135 = vweird.f32 %v1730
      %vm2136 = vweird.f32 %v2129
      %vm2137 = vmor %vm2135, %vm2136
      %v2138 = vsel %vm2137, %v2129, %v2134
      %v2139 = vrsqrt.pop %v1731
      %v2140 = vmul.f32 %v2139, %v1731
      %v2141 = vmul.f32 %v2140, %v2139
      %v2142 = vmul.f32 0.5, %v2141
      %v2143 = vsub.f32 1.5, %v2142
      %v2144 = vmul.f32 %v2139, %v2143
      %vm2145 = vweird.f32 %v1731
      %vm2146 = vweird.f32 %v2139
      %vm2147 = vmor %vm2145, %vm2146
      %v2148 = vsel %vm2147, %v2139, %v2144
      %v2149 = vrsqrt.pop %v1732
      %v2150 = vmul.f32 %v2149, %v1732
      %v2151 = vmul.f32 %v2150, %v2149
      %v2152 = vmul.f32 0.5, %v2151
      %v2153 = vsub.f32 1.5, %v2152
      %v2154 = vmul.f32 %v2149, %v2153
      %vm2155 = vweird.f32 %v1732
      %vm2156 = vweird.f32 %v2149
      %vm2157 = vmor %vm2155, %vm2156
      %v2158 = vsel %vm2157, %v2149, %v2154
      %v2159 = vrsqrt.pop %v1733
      %v2160 = vmul.f32 %v2159, %v1733
      %v2161 = vmul.f32 %v2160, %v2159
      %v2162 = vmul.f32 0.5, %v2161
      %v2163 = vsub.f32 1.5, %v2162
      %v2164 = vmul.f32 %v2159, %v2163
      %vm2165 = vweird.f32 %v1733
      %vm2166 = vweird.f32 %v2159
      %vm2167 = vmor %vm2165, %vm2166
      %v2168 = vsel %vm2167, %v2159, %v2164
      %v2169 = vrsqrt.pop %v1734
      %v2170 = vmul.f32 %v2169, %v1734
      %v2171 = vmul.f32 %v2170, %v2169
      %v2172 = vmul.f32 0.5, %v2171
      %v2173 = vsub.f32 1.5, %v2172
      %v2174 = vmul.f32 %v2169, %v2173
      %vm2175 = vweird.f32 %v1734
      %vm2176 = vweird.f32 %v2169
      %vm2177 = vmor %vm2175, %vm2176
      %v2178 = vsel %vm2177, %v2169, %v2174
      %v2179 = vrsqrt.pop %v1735
      %v2180 = vmul.f32 %v2179, %v1735
      %v2181 = vmul.f32 %v2180, %v2179
      %v2182 = vmul.f32 0.5, %v2181
      %v2183 = vsub.f32 1.5, %v2182
      %v2184 = vmul.f32 %v2179, %v2183
      %vm2185 = vweird.f32 %v1735
      %vm2186 = vweird.f32 %v2179
      %vm2187 = vmor %vm2185, %vm2186
      %v2188 = vsel %vm2187, %v2179, %v2184
      %v2189 = vrsqrt.pop %v1736
      %v2190 = vmul.f32 %v2189, %v1736
      %v2191 = vmul.f32 %v2190, %v2189
      %v2192 = vmul.f32 0.5, %v2191
      %v2193 = vsub.f32 1.5, %v2192
      %v2194 = vmul.f32 %v2189, %v2193
      %vm2195 = vweird.f32 %v1736
      %vm2196 = vweird.f32 %v2189
      %vm2197 = vmor %vm2195, %vm2196
      %v2198 = vsel %vm2197, %v2189, %v2194
      %v2199 = vrsqrt.pop %v1737
      %v2200 = vmul.f32 %v2199, %v1737
      %v2201 = vmul.f32 %v2200, %v2199
      %v2202 = vmul.f32 0.5, %v2201
      %v2203 = vsub.f32 1.5, %v2202
      %v2204 = vmul.f32 %v2199, %v2203
      %vm2205 = vweird.f32 %v1737
      %vm2206 = vweird.f32 %v2199
      %vm2207 = vmor %vm2205, %vm2206
      %v2208 = vsel %vm2207, %v2199, %v2204
      %v2209 = vrsqrt.pop %v1738
      %v2210 = vmul.f32 %v2209, %v1738
      %v2211 = vmul.f32 %v2210, %v2209
      %v2212 = vmul.f32 0.5, %v2211
      %v2213 = vsub.f32 1.5, %v2212
      %v2214 = vmul.f32 %v2209, %v2213
      %vm2215 = vweird.f32 %v1738
      %vm2216 = vweird.f32 %v2209
      %vm2217 = vmor %vm2215, %vm2216
      %v2218 = vsel %vm2217, %v2209, %v2214
      %v2219 = vrsqrt.pop %v1739
      %v2220 = vmul.f32 %v2219, %v1739
      %v2221 = vmul.f32 %v2220, %v2219
      %v2222 = vmul.f32 0.5, %v2221
      %v2223 = vsub.f32 1.5, %v2222
      %v2224 = vmul.f32 %v2219, %v2223
      %vm2225 = vweird.f32 %v1739
      %vm2226 = vweird.f32 %v2219
      %vm2227 = vmor %vm2225, %vm2226
      %v2228 = vsel %vm2227, %v2219, %v2224
      %v2229 = vrsqrt.pop %v1740
      %v2230 = vmul.f32 %v2229, %v1740
      %v2231 = vmul.f32 %v2230, %v2229
      %v2232 = vmul.f32 0.5, %v2231
      %v2233 = vsub.f32 1.5, %v2232
      %v2234 = vmul.f32 %v2229, %v2233
      %vm2235 = vweird.f32 %v1740
      %vm2236 = vweird.f32 %v2229
      %vm2237 = vmor %vm2235, %vm2236
      %v2238 = vsel %vm2237, %v2229, %v2234
      %v2239 = vrsqrt.pop %v1741
      %v2240 = vmul.f32 %v2239, %v1741
      %v2241 = vmul.f32 %v2240, %v2239
      %v2242 = vmul.f32 0.5, %v2241
      %v2243 = vsub.f32 1.5, %v2242
      %v2244 = vmul.f32 %v2239, %v2243
      %vm2245 = vweird.f32 %v1741
      %vm2246 = vweird.f32 %v2239
      %vm2247 = vmor %vm2245, %vm2246
      %v2248 = vsel %vm2247, %v2239, %v2244
      %v2249 = vrsqrt.pop %v1742
      %v2250 = vmul.f32 %v2249, %v1742
      %v2251 = vmul.f32 %v2250, %v2249
      %v2252 = vmul.f32 0.5, %v2251
      %v2253 = vsub.f32 1.5, %v2252
      %v2254 = vmul.f32 %v2249, %v2253
      %vm2255 = vweird.f32 %v1742
      %vm2256 = vweird.f32 %v2249
      %vm2257 = vmor %vm2255, %vm2256
      %v2258 = vsel %vm2257, %v2249, %v2254
      %v2259 = vrsqrt.pop %v1743
      %v2260 = vmul.f32 %v2259, %v1743
      %v2261 = vmul.f32 %v2260, %v2259
      %v2262 = vmul.f32 0.5, %v2261
      %v2263 = vsub.f32 1.5, %v2262
      %v2264 = vmul.f32 %v2259, %v2263
      %vm2265 = vweird.f32 %v1743
      %vm2266 = vweird.f32 %v2259
      %vm2267 = vmor %vm2265, %vm2266
      %v2268 = vsel %vm2267, %v2259, %v2264
      %v2269 = vrsqrt.pop %v1744
      %v2270 = vmul.f32 %v2269, %v1744
      %v2271 = vmul.f32 %v2270, %v2269
      %v2272 = vmul.f32 0.5, %v2271
      %v2273 = vsub.f32 1.5, %v2272
      %v2274 = vmul.f32 %v2269, %v2273
      %vm2275 = vweird.f32 %v1744
      %vm2276 = vweird.f32 %v2269
      %vm2277 = vmor %vm2275, %vm2276
      %v2278 = vsel %vm2277, %v2269, %v2274
      %v2279 = vrsqrt.pop %v1745
      %v2280 = vmul.f32 %v2279, %v1745
      %v2281 = vmul.f32 %v2280, %v2279
      %v2282 = vmul.f32 0.5, %v2281
      %v2283 = vsub.f32 1.5, %v2282
      %v2284 = vmul.f32 %v2279, %v2283
      %vm2285 = vweird.f32 %v1745
      %vm2286 = vweird.f32 %v2279
      %vm2287 = vmor %vm2285, %vm2286
      %v2288 = vsel %vm2287, %v2279, %v2284
      %v2289 = vrsqrt.pop %v1746
      %v2290 = vmul.f32 %v2289, %v1746
      %v2291 = vmul.f32 %v2290, %v2289
      %v2292 = vmul.f32 0.5, %v2291
      %v2293 = vsub.f32 1.5, %v2292
      %v2294 = vmul.f32 %v2289, %v2293
      %vm2295 = vweird.f32 %v1746
      %vm2296 = vweird.f32 %v2289
      %vm2297 = vmor %vm2295, %vm2296
      %v2298 = vsel %vm2297, %v2289, %v2294
      %v2299 = vrsqrt.pop %v1747
      %v2300 = vmul.f32 %v2299, %v1747
      %v2301 = vmul.f32 %v2300, %v2299
      %v2302 = vmul.f32 0.5, %v2301
      %v2303 = vsub.f32 1.5, %v2302
      %v2304 = vmul.f32 %v2299, %v2303
      %vm2305 = vweird.f32 %v1747
      %vm2306 = vweird.f32 %v2299
      %vm2307 = vmor %vm2305, %vm2306
      %v2308 = vsel %vm2307, %v2299, %v2304
      %v2309 = vrsqrt.pop %v1748
      %v2310 = vmul.f32 %v2309, %v1748
      %v2311 = vmul.f32 %v2310, %v2309
      %v2312 = vmul.f32 0.5, %v2311
      %v2313 = vsub.f32 1.5, %v2312
      %v2314 = vmul.f32 %v2309, %v2313
      %vm2315 = vweird.f32 %v1748
      %vm2316 = vweird.f32 %v2309
      %vm2317 = vmor %vm2315, %vm2316
      %v2318 = vsel %vm2317, %v2309, %v2314
      %v2319 = vrsqrt.pop %v1749
      %v2320 = vmul.f32 %v2319, %v1749
      %v2321 = vmul.f32 %v2320, %v2319
      %v2322 = vmul.f32 0.5, %v2321
      %v2323 = vsub.f32 1.5, %v2322
      %v2324 = vmul.f32 %v2319, %v2323
      %vm2325 = vweird.f32 %v1749
      %vm2326 = vweird.f32 %v2319
      %vm2327 = vmor %vm2325, %vm2326
      %v2328 = vsel %vm2327, %v2319, %v2324
      %v2329 = vrsqrt.pop %v1750
      %v2330 = vmul.f32 %v2329, %v1750
      %v2331 = vmul.f32 %v2330, %v2329
      %v2332 = vmul.f32 0.5, %v2331
      %v2333 = vsub.f32 1.5, %v2332
      %v2334 = vmul.f32 %v2329, %v2333
      %vm2335 = vweird.f32 %v1750
      %vm2336 = vweird.f32 %v2329
      %vm2337 = vmor %vm2335, %vm2336
      %v2338 = vsel %vm2337, %v2329, %v2334
      %v2339 = vrsqrt.pop %v1751
      %v2340 = vmul.f32 %v2339, %v1751
      %v2341 = vmul.f32 %v2340, %v2339
      %v2342 = vmul.f32 0.5, %v2341
      %v2343 = vsub.f32 1.5, %v2342
      %v2344 = vmul.f32 %v2339, %v2343
      %vm2345 = vweird.f32 %v1751
      %vm2346 = vweird.f32 %v2339
      %vm2347 = vmor %vm2345, %vm2346
      %v2348 = vsel %vm2347, %v2339, %v2344
      %v2349 = vrsqrt.pop %v1752
      %v2350 = vmul.f32 %v2349, %v1752
      %v2351 = vmul.f32 %v2350, %v2349
      %v2352 = vmul.f32 0.5, %v2351
      %v2353 = vsub.f32 1.5, %v2352
      %v2354 = vmul.f32 %v2349, %v2353
      %vm2355 = vweird.f32 %v1752
      %vm2356 = vweird.f32 %v2349
      %vm2357 = vmor %vm2355, %vm2356
      %v2358 = vsel %vm2357, %v2349, %v2354
      %v2359 = vrsqrt.pop %v1753
      %v2360 = vmul.f32 %v2359, %v1753
      %v2361 = vmul.f32 %v2360, %v2359
      %v2362 = vmul.f32 0.5, %v2361
      %v2363 = vsub.f32 1.5, %v2362
      %v2364 = vmul.f32 %v2359, %v2363
      %vm2365 = vweird.f32 %v1753
      %vm2366 = vweird.f32 %v2359
      %vm2367 = vmor %vm2365, %vm2366
      %v2368 = vsel %vm2367, %v2359, %v2364
      %v2369 = vrsqrt.pop %v1754
      %v2370 = vmul.f32 %v2369, %v1754
      %v2371 = vmul.f32 %v2370, %v2369
      %v2372 = vmul.f32 0.5, %v2371
      %v2373 = vsub.f32 1.5, %v2372
      %v2374 = vmul.f32 %v2369, %v2373
      %vm2375 = vweird.f32 %v1754
      %vm2376 = vweird.f32 %v2369
      %vm2377 = vmor %vm2375, %vm2376
      %v2378 = vsel %vm2377, %v2369, %v2374
      %v2379 = vrsqrt.pop %v1755
      %v2380 = vmul.f32 %v2379, %v1755
      %v2381 = vmul.f32 %v2380, %v2379
      %v2382 = vmul.f32 0.5, %v2381
      %v2383 = vsub.f32 1.5, %v2382
      %v2384 = vmul.f32 %v2379, %v2383
      %vm2385 = vweird.f32 %v1755
      %vm2386 = vweird.f32 %v2379
      %vm2387 = vmor %vm2385, %vm2386
      %v2388 = vsel %vm2387, %v2379, %v2384
      %v2389 = vrsqrt.pop %v1756
      %v2390 = vmul.f32 %v2389, %v1756
      %v2391 = vmul.f32 %v2390, %v2389
      %v2392 = vmul.f32 0.5, %v2391
      %v2393 = vsub.f32 1.5, %v2392
      %v2394 = vmul.f32 %v2389, %v2393
      %vm2395 = vweird.f32 %v1756
      %vm2396 = vweird.f32 %v2389
      %vm2397 = vmor %vm2395, %vm2396
      %v2398 = vsel %vm2397, %v2389, %v2394
      %v2399 = vrsqrt.pop %v1757
      %v2400 = vmul.f32 %v2399, %v1757
      %v2401 = vmul.f32 %v2400, %v2399
      %v2402 = vmul.f32 0.5, %v2401
      %v2403 = vsub.f32 1.5, %v2402
      %v2404 = vmul.f32 %v2399, %v2403
      %vm2405 = vweird.f32 %v1757
      %vm2406 = vweird.f32 %v2399
      %vm2407 = vmor %vm2405, %vm2406
      %v2408 = vsel %vm2407, %v2399, %v2404
      %v2409 = vrsqrt.pop %v1758
      %v2410 = vmul.f32 %v2409, %v1758
      %v2411 = vmul.f32 %v2410, %v2409
      %v2412 = vmul.f32 0.5, %v2411
      %v2413 = vsub.f32 1.5, %v2412
      %v2414 = vmul.f32 %v2409, %v2413
      %vm2415 = vweird.f32 %v1758
      %vm2416 = vweird.f32 %v2409
      %vm2417 = vmor %vm2415, %vm2416
      %v2418 = vsel %vm2417, %v2409, %v2414
      %v2419 = vrsqrt.pop %v1759
      %v2420 = vmul.f32 %v2419, %v1759
      %v2421 = vmul.f32 %v2420, %v2419
      %v2422 = vmul.f32 0.5, %v2421
      %v2423 = vsub.f32 1.5, %v2422
      %v2424 = vmul.f32 %v2419, %v2423
      %vm2425 = vweird.f32 %v1759
      %vm2426 = vweird.f32 %v2419
      %vm2427 = vmor %vm2425, %vm2426
      %v2428 = vsel %vm2427, %v2419, %v2424
      %v2429 = vrsqrt.pop %v1760
      %v2430 = vmul.f32 %v2429, %v1760
      %v2431 = vmul.f32 %v2430, %v2429
      %v2432 = vmul.f32 0.5, %v2431
      %v2433 = vsub.f32 1.5, %v2432
      %v2434 = vmul.f32 %v2429, %v2433
      %vm2435 = vweird.f32 %v1760
      %vm2436 = vweird.f32 %v2429
      %vm2437 = vmor %vm2435, %vm2436
      %v2438 = vsel %vm2437, %v2429, %v2434
      %v2439 = vrsqrt.pop %v1761
      %v2440 = vmul.f32 %v2439, %v1761
      %v2441 = vmul.f32 %v2440, %v2439
      %v2442 = vmul.f32 0.5, %v2441
      %v2443 = vsub.f32 1.5, %v2442
      %v2444 = vmul.f32 %v2439, %v2443
      %vm2445 = vweird.f32 %v1761
      %vm2446 = vweird.f32 %v2439
      %vm2447 = vmor %vm2445, %vm2446
      %v2448 = vsel %vm2447, %v2439, %v2444
      %v2449 = vrsqrt.pop %v1762
      %v2450 = vmul.f32 %v2449, %v1762
      %v2451 = vmul.f32 %v2450, %v2449
      %v2452 = vmul.f32 0.5, %v2451
      %v2453 = vsub.f32 1.5, %v2452
      %v2454 = vmul.f32 %v2449, %v2453
      %vm2455 = vweird.f32 %v1762
      %vm2456 = vweird.f32 %v2449
      %vm2457 = vmor %vm2455, %vm2456
      %v2458 = vsel %vm2457, %v2449, %v2454
      %v2459 = vrsqrt.pop %v1763
      %v2460 = vmul.f32 %v2459, %v1763
      %v2461 = vmul.f32 %v2460, %v2459
      %v2462 = vmul.f32 0.5, %v2461
      %v2463 = vsub.f32 1.5, %v2462
      %v2464 = vmul.f32 %v2459, %v2463
      %vm2465 = vweird.f32 %v1763
      %vm2466 = vweird.f32 %v2459
      %vm2467 = vmor %vm2465, %vm2466
      %v2468 = vsel %vm2467, %v2459, %v2464
      %v2469 = vrsqrt.pop %v1764
      %v2470 = vmul.f32 %v2469, %v1764
      %v2471 = vmul.f32 %v2470, %v2469
      %v2472 = vmul.f32 0.5, %v2471
      %v2473 = vsub.f32 1.5, %v2472
      %v2474 = vmul.f32 %v2469, %v2473
      %vm2475 = vweird.f32 %v1764
      %vm2476 = vweird.f32 %v2469
      %vm2477 = vmor %vm2475, %vm2476
      %v2478 = vsel %vm2477, %v2469, %v2474
      %v2479 = vrsqrt.pop %v1765
      %v2480 = vmul.f32 %v2479, %v1765
      %v2481 = vmul.f32 %v2480, %v2479
      %v2482 = vmul.f32 0.5, %v2481
      %v2483 = vsub.f32 1.5, %v2482
      %v2484 = vmul.f32 %v2479, %v2483
      %vm2485 = vweird.f32 %v1765
      %vm2486 = vweird.f32 %v2479
      %vm2487 = vmor %vm2485, %vm2486
      %v2488 = vsel %vm2487, %v2479, %v2484
      %v2489 = vrsqrt.pop %v1766
      %v2490 = vmul.f32 %v2489, %v1766
      %v2491 = vmul.f32 %v2490, %v2489
      %v2492 = vmul.f32 0.5, %v2491
      %v2493 = vsub.f32 1.5, %v2492
      %v2494 = vmul.f32 %v2489, %v2493
      %vm2495 = vweird.f32 %v1766
      %vm2496 = vweird.f32 %v2489
      %vm2497 = vmor %vm2495, %vm2496
      %v2498 = vsel %vm2497, %v2489, %v2494
      %v2499 = vrsqrt.pop %v1767
      %v2500 = vmul.f32 %v2499, %v1767
      %v2501 = vmul.f32 %v2500, %v2499
      %v2502 = vmul.f32 0.5, %v2501
      %v2503 = vsub.f32 1.5, %v2502
      %v2504 = vmul.f32 %v2499, %v2503
      %vm2505 = vweird.f32 %v1767
      %vm2506 = vweird.f32 %v2499
      %vm2507 = vmor %vm2505, %vm2506
      %v2508 = vsel %vm2507, %v2499, %v2504
      %v2509 = vrsqrt.pop %v1768
      %v2510 = vmul.f32 %v2509, %v1768
      %v2511 = vmul.f32 %v2510, %v2509
      %v2512 = vmul.f32 0.5, %v2511
      %v2513 = vsub.f32 1.5, %v2512
      %v2514 = vmul.f32 %v2509, %v2513
      %vm2515 = vweird.f32 %v1768
      %vm2516 = vweird.f32 %v2509
      %vm2517 = vmor %vm2515, %vm2516
      %v2518 = vsel %vm2517, %v2509, %v2514
      %v2519 = vrsqrt.pop %v1769
      %v2520 = vmul.f32 %v2519, %v1769
      %v2521 = vmul.f32 %v2520, %v2519
      %v2522 = vmul.f32 0.5, %v2521
      %v2523 = vsub.f32 1.5, %v2522
      %v2524 = vmul.f32 %v2519, %v2523
      %vm2525 = vweird.f32 %v1769
      %vm2526 = vweird.f32 %v2519
      %vm2527 = vmor %vm2525, %vm2526
      %v2528 = vsel %vm2527, %v2519, %v2524
      %v2529 = vrsqrt.pop %v1770
      %v2530 = vmul.f32 %v2529, %v1770
      %v2531 = vmul.f32 %v2530, %v2529
      %v2532 = vmul.f32 0.5, %v2531
      %v2533 = vsub.f32 1.5, %v2532
      %v2534 = vmul.f32 %v2529, %v2533
      %vm2535 = vweird.f32 %v1770
      %vm2536 = vweird.f32 %v2529
      %vm2537 = vmor %vm2535, %vm2536
      %v2538 = vsel %vm2537, %v2529, %v2534
      %v2539 = vrsqrt.pop %v1771
      %v2540 = vmul.f32 %v2539, %v1771
      %v2541 = vmul.f32 %v2540, %v2539
      %v2542 = vmul.f32 0.5, %v2541
      %v2543 = vsub.f32 1.5, %v2542
      %v2544 = vmul.f32 %v2539, %v2543
      %vm2545 = vweird.f32 %v1771
      %vm2546 = vweird.f32 %v2539
      %vm2547 = vmor %vm2545, %vm2546
      %v2548 = vsel %vm2547, %v2539, %v2544
      %v2549 = vrsqrt.pop %v1772
      %v2550 = vmul.f32 %v2549, %v1772
      %v2551 = vmul.f32 %v2550, %v2549
      %v2552 = vmul.f32 0.5, %v2551
      %v2553 = vsub.f32 1.5, %v2552
      %v2554 = vmul.f32 %v2549, %v2553
      %vm2555 = vweird.f32 %v1772
      %vm2556 = vweird.f32 %v2549
      %vm2557 = vmor %vm2555, %vm2556
      %v2558 = vsel %vm2557, %v2549, %v2554
      %v2559 = vrsqrt.pop %v1773
      %v2560 = vmul.f32 %v2559, %v1773
      %v2561 = vmul.f32 %v2560, %v2559
      %v2562 = vmul.f32 0.5, %v2561
      %v2563 = vsub.f32 1.5, %v2562
      %v2564 = vmul.f32 %v2559, %v2563
      %vm2565 = vweird.f32 %v1773
      %vm2566 = vweird.f32 %v2559
      %vm2567 = vmor %vm2565, %vm2566
      %v2568 = vsel %vm2567, %v2559, %v2564
      %v2569 = vrsqrt.pop %v1774
      %v2570 = vmul.f32 %v2569, %v1774
      %v2571 = vmul.f32 %v2570, %v2569
      %v2572 = vmul.f32 0.5, %v2571
      %v2573 = vsub.f32 1.5, %v2572
      %v2574 = vmul.f32 %v2569, %v2573
      %vm2575 = vweird.f32 %v1774
      %vm2576 = vweird.f32 %v2569
      %vm2577 = vmor %vm2575, %vm2576
      %v2578 = vsel %vm2577, %v2569, %v2574
      %v2579 = vrsqrt.pop %v1775
      %v2580 = vmul.f32 %v2579, %v1775
      %v2581 = vmul.f32 %v2580, %v2579
      %v2582 = vmul.f32 0.5, %v2581
      %v2583 = vsub.f32 1.5, %v2582
      %v2584 = vmul.f32 %v2579, %v2583
      %vm2585 = vweird.f32 %v1775
      %vm2586 = vweird.f32 %v2579
      %vm2587 = vmor %vm2585, %vm2586
      %v2588 = vsel %vm2587, %v2579, %v2584
      %v2589 = vrsqrt.pop %v1776
      %v2590 = vmul.f32 %v2589, %v1776
      %v2591 = vmul.f32 %v2590, %v2589
      %v2592 = vmul.f32 0.5, %v2591
      %v2593 = vsub.f32 1.5, %v2592
      %v2594 = vmul.f32 %v2589, %v2593
      %vm2595 = vweird.f32 %v1776
      %vm2596 = vweird.f32 %v2589
      %vm2597 = vmor %vm2595, %vm2596
      %v2598 = vsel %vm2597, %v2589, %v2594
      %v2599 = vrsqrt.pop %v1777
      %v2600 = vmul.f32 %v2599, %v1777
      %v2601 = vmul.f32 %v2600, %v2599
      %v2602 = vmul.f32 0.5, %v2601
      %v2603 = vsub.f32 1.5, %v2602
      %v2604 = vmul.f32 %v2599, %v2603
      %vm2605 = vweird.f32 %v1777
      %vm2606 = vweird.f32 %v2599
      %vm2607 = vmor %vm2605, %vm2606
      %v2608 = vsel %vm2607, %v2599, %v2604
      %v2609 = vrsqrt.pop %v1778
      %v2610 = vmul.f32 %v2609, %v1778
      %v2611 = vmul.f32 %v2610, %v2609
      %v2612 = vmul.f32 0.5, %v2611
      %v2613 = vsub.f32 1.5, %v2612
      %v2614 = vmul.f32 %v2609, %v2613
      %vm2615 = vweird.f32 %v1778
      %vm2616 = vweird.f32 %v2609
      %vm2617 = vmor %vm2615, %vm2616
      %v2618 = vsel %vm2617, %v2609, %v2614
      %v2619 = vmul.f32 %v1526, %v1788
      %v2620 = vmul.f32 %v1527, %v1798
      %v2621 = vmul.f32 %v1528, %v1808
      %v2622 = vmul.f32 %v1529, %v1818
      %v2623 = vmul.f32 %v1530, %v1828
      %v2624 = vmul.f32 %v1531, %v1838
      %v2625 = vmul.f32 %v1532, %v1848
      %v2626 = vmul.f32 %v1533, %v1858
      %v2627 = vmul.f32 %v1534, %v1868
      %v2628 = vmul.f32 %v1535, %v1878
      %v2629 = vmul.f32 %v1536, %v1888
      %v2630 = vmul.f32 %v1537, %v1898
      %v2631 = vmul.f32 %v1538, %v1908
      %v2632 = vmul.f32 %v1539, %v1918
      %v2633 = vmul.f32 %v1540, %v1928
      %v2634 = vmul.f32 %v1541, %v1938
      %v2635 = vmul.f32 %v1542, %v1948
      %v2636 = vmul.f32 %v1543, %v1958
      %v2637 = vmul.f32 %v1544, %v1968
      %v2638 = vmul.f32 %v1545, %v1978
      %v2639 = vmul.f32 %v1546, %v1988
      %v2640 = vmul.f32 %v1547, %v1998
      %v2641 = vmul.f32 %v1548, %v2008
      %v2642 = vmul.f32 %v1549, %v2018
      %v2643 = vmul.f32 %v1550, %v2028
      %v2644 = vmul.f32 %v1551, %v2038
      %v2645 = vmul.f32 %v1552, %v2048
      %v2646 = vmul.f32 %v1553, %v2058
      %v2647 = vmul.f32 %v1554, %v2068
      %v2648 = vmul.f32 %v1555, %v2078
      %v2649 = vmul.f32 %v1556, %v2088
      %v2650 = vmul.f32 %v1557, %v2098
      %v2651 = vmul.f32 %v1558, %v2108
      %v2652 = vmul.f32 %v1559, %v2118
      %v2653 = vmul.f32 %v1560, %v2128
      %v2654 = vmul.f32 %v1561, %v2138
      %v2655 = vmul.f32 %v1562, %v2148
      %v2656 = vmul.f32 %v1563, %v2158
      %v2657 = vmul.f32 %v1564, %v2168
      %v2658 = vmul.f32 %v1565, %v2178
      %v2659 = vmul.f32 %v1566, %v2188
      %v2660 = vmul.f32 %v1567, %v2198
      %v2661 = vmul.f32 %v1568, %v2208
      %v2662 = vmul.f32 %v1569, %v2218
      %v2663 = vmul.f32 %v1570, %v2228
      %v2664 = vmul.f32 %v1571, %v2238
      %v2665 = vmul.f32 %v1572, %v2248
      %v2666 = vmul.f32 %v1573, %v2258
      %v2667 = vmul.f32 %v1574, %v2268
      %v2668 = vmul.f32 %v1575, %v2278
      %v2669 = vmul.f32 %v1576, %v2288
      %v2670 = vmul.f32 %v1577, %v2298
      %v2671 = vmul.f32 %v1578, %v2308
      %v2672 = vmul.f32 %v1579, %v2318
      %v2673 = vmul.f32 %v1580, %v2328
      %v2674 = vmul.f32 %v1581, %v2338
      %v2675 = vmul.f32 %v1582, %v2348
      %v2676 = vmul.f32 %v1583, %v2358
      %v2677 = vmul.f32 %v1584, %v2368
      %v2678 = vmul.f32 %v1585, %v2378
      %v2679 = vmul.f32 %v1586, %v2388
      %v2680 = vmul.f32 %v1587, %v2398
      %v2681 = vmul.f32 %v1588, %v2408
      %v2682 = vmul.f32 %v1589, %v2418
      %v2683 = vmul.f32 %v1590, %v2428
      %v2684 = vmul.f32 %v1591, %v2438
      %v2685 = vmul.f32 %v1592, %v2448
      %v2686 = vmul.f32 %v1593, %v2458
      %v2687 = vmul.f32 %v1594, %v2468
      %v2688 = vmul.f32 %v1595, %v2478
      %v2689 = vmul.f32 %v1596, %v2488
      %v2690 = vmul.f32 %v1597, %v2498
      %v2691 = vmul.f32 %v1598, %v2508
      %v2692 = vmul.f32 %v1599, %v2518
      %v2693 = vmul.f32 %v1600, %v2528
      %v2694 = vmul.f32 %v1601, %v2538
      %v2695 = vmul.f32 %v1602, %v2548
      %v2696 = vmul.f32 %v1603, %v2558
      %v2697 = vmul.f32 %v1604, %v2568
      %v2698 = vmul.f32 %v1605, %v2578
      %v2699 = vmul.f32 %v1606, %v2588
      %v2700 = vmul.f32 %v1607, %v2598
      %v2701 = vmul.f32 %v1608, %v2608
      %v2702 = vmul.f32 %v1609, %v2618
      %v2703 = vmul.f32 %v685, %v2619
      %v2704 = vmul.f32 %v686, %v2620
      %v2705 = vmul.f32 %v687, %v2621
      %v2706 = vmul.f32 %v688, %v2622
      %v2707 = vmul.f32 %v689, %v2623
      %v2708 = vmul.f32 %v690, %v2624
      %v2709 = vmul.f32 %v691, %v2625
      %v2710 = vmul.f32 %v692, %v2626
      %v2711 = vmul.f32 %v693, %v2627
      %v2712 = vmul.f32 %v694, %v2628
      %v2713 = vmul.f32 %v695, %v2629
      %v2714 = vmul.f32 %v696, %v2630
      %v2715 = vmul.f32 %v697, %v2631
      %v2716 = vmul.f32 %v698, %v2632
      %v2717 = vmul.f32 %v699, %v2633
      %v2718 = vmul.f32 %v700, %v2634
      %v2719 = vmul.f32 %v701, %v2635
      %v2720 = vmul.f32 %v702, %v2636
      %v2721 = vmul.f32 %v703, %v2637
      %v2722 = vmul.f32 %v704, %v2638
      %v2723 = vmul.f32 %v705, %v2639
      %v2724 = vmul.f32 %v706, %v2640
      %v2725 = vmul.f32 %v707, %v2641
      %v2726 = vmul.f32 %v708, %v2642
      %v2727 = vmul.f32 %v709, %v2643
      %v2728 = vmul.f32 %v710, %v2644
      %v2729 = vmul.f32 %v711, %v2645
      %v2730 = vmul.f32 %v712, %v2646
      %v2731 = vmul.f32 %v713, %v2647
      %v2732 = vmul.f32 %v714, %v2648
      %v2733 = vmul.f32 %v715, %v2649
      %v2734 = vmul.f32 %v716, %v2650
      %v2735 = vmul.f32 %v717, %v2651
      %v2736 = vmul.f32 %v718, %v2652
      %v2737 = vmul.f32 %v719, %v2653
      %v2738 = vmul.f32 %v720, %v2654
      %v2739 = vmul.f32 %v721, %v2655
      %v2740 = vmul.f32 %v722, %v2656
      %v2741 = vmul.f32 %v723, %v2657
      %v2742 = vmul.f32 %v724, %v2658
      %v2743 = vmul.f32 %v725, %v2659
      %v2744 = vmul.f32 %v726, %v2660
      %v2745 = vmul.f32 %v727, %v2661
      %v2746 = vmul.f32 %v728, %v2662
      %v2747 = vmul.f32 %v729, %v2663
      %v2748 = vmul.f32 %v730, %v2664
      %v2749 = vmul.f32 %v731, %v2665
      %v2750 = vmul.f32 %v732, %v2666
      %v2751 = vmul.f32 %v733, %v2667
      %v2752 = vmul.f32 %v734, %v2668
      %v2753 = vmul.f32 %v735, %v2669
      %v2754 = vmul.f32 %v736, %v2670
      %v2755 = vmul.f32 %v737, %v2671
      %v2756 = vmul.f32 %v738, %v2672
      %v2757 = vmul.f32 %v739, %v2673
      %v2758 = vmul.f32 %v740, %v2674
      %v2759 = vmul.f32 %v741, %v2675
      %v2760 = vmul.f32 %v742, %v2676
      %v2761 = vmul.f32 %v743, %v2677
      %v2762 = vmul.f32 %v744, %v2678
      %v2763 = vmul.f32 %v745, %v2679
      %v2764 = vmul.f32 %v746, %v2680
      %v2765 = vmul.f32 %v747, %v2681
      %v2766 = vmul.f32 %v748, %v2682
      %v2767 = vmul.f32 %v749, %v2683
      %v2768 = vmul.f32 %v750, %v2684
      %v2769 = vmul.f32 %v751, %v2685
      %v2770 = vmul.f32 %v752, %v2686
      %v2771 = vmul.f32 %v753, %v2687
      %v2772 = vmul.f32 %v754, %v2688
      %v2773 = vmul.f32 %v755, %v2689
      %v2774 = vmul.f32 %v756, %v2690
      %v2775 = vmul.f32 %v757, %v2691
      %v2776 = vmul.f32 %v758, %v2692
      %v2777 = vmul.f32 %v759, %v2693
      %v2778 = vmul.f32 %v760, %v2694
      %v2779 = vmul.f32 %v761, %v2695
      %v2780 = vmul.f32 %v762, %v2696
      %v2781 = vmul.f32 %v763, %v2697
      %v2782 = vmul.f32 %v764, %v2698
      %v2783 = vmul.f32 %v765, %v2699
      %v2784 = vmul.f32 %v766, %v2700
      %v2785 = vmul.f32 %v767, %v2701
      %v2786 = vmul.f32 %v768, %v2702
      %v2787 = vsub.f32 %v1611, %v2703
      %v2788 = vsub.f32 %v1612, %v2704
      %v2789 = vsub.f32 %v1613, %v2705
      %v2790 = vsub.f32 %v1614, %v2706
      %v2791 = vsub.f32 %v1615, %v2707
      %v2792 = vsub.f32 %v1616, %v2708
      %v2793 = vsub.f32 %v1617, %v2709
      %v2794 = vsub.f32 %v1618, %v2710
      %v2795 = vsub.f32 %v1619, %v2711
      %v2796 = vsub.f32 %v1620, %v2712
      %v2797 = vsub.f32 %v1621, %v2713
      %v2798 = vsub.f32 %v1622, %v2714
      %v2799 = vsub.f32 %v1623, %v2715
      %v2800 = vsub.f32 %v1624, %v2716
      %v2801 = vsub.f32 %v1625, %v2717
      %v2802 = vsub.f32 %v1626, %v2718
      %v2803 = vsub.f32 %v1627, %v2719
      %v2804 = vsub.f32 %v1628, %v2720
      %v2805 = vsub.f32 %v1629, %v2721
      %v2806 = vsub.f32 %v1630, %v2722
      %v2807 = vsub.f32 %v1631, %v2723
      %v2808 = vsub.f32 %v1632, %v2724
      %v2809 = vsub.f32 %v1633, %v2725
      %v2810 = vsub.f32 %v1634, %v2726
      %v2811 = vsub.f32 %v1635, %v2727
      %v2812 = vsub.f32 %v1636, %v2728
      %v2813 = vsub.f32 %v1637, %v2729
      %v2814 = vsub.f32 %v1638, %v2730
      %v2815 = vsub.f32 %v1639, %v2731
      %v2816 = vsub.f32 %v1640, %v2732
      %v2817 = vsub.f32 %v1641, %v2733
      %v2818 = vsub.f32 %v1642, %v2734
      %v2819 = vsub.f32 %v1643, %v2735
      %v2820 = vsub.f32 %v1644, %v2736
      %v2821 = vsub.f32 %v1645, %v2737
      %v2822 = vsub.f32 %v1646, %v2738
      %v2823 = vsub.f32 %v1647, %v2739
      %v2824 = vsub.f32 %v1648, %v2740
      %v2825 = vsub.f32 %v1649, %v2741
      %v2826 = vsub.f32 %v1650, %v2742
      %v2827 = vsub.f32 %v1651, %v2743
      %v2828 = vsub.f32 %v1652, %v2744
      %v2829 = vsub.f32 %v1653, %v2745
      %v2830 = vsub.f32 %v1654, %v2746
      %v2831 = vsub.f32 %v1655, %v2747
      %v2832 = vsub.f32 %v1656, %v2748
      %v2833 = vsub.f32 %v1657, %v2749
      %v2834 = vsub.f32 %v1658, %v2750
      %v2835 = vsub.f32 %v1659, %v2751
      %v2836 = vsub.f32 %v1660, %v2752
      %v2837 = vsub.f32 %v1661, %v2753
      %v2838 = vsub.f32 %v1662, %v2754
      %v2839 = vsub.f32 %v1663, %v2755
      %v2840 = vsub.f32 %v1664, %v2756
      %v2841 = vsub.f32 %v1665, %v2757
      %v2842 = vsub.f32 %v1666, %v2758
      %v2843 = vsub.f32 %v1667, %v2759
      %v2844 = vsub.f32 %v1668, %v2760
      %v2845 = vsub.f32 %v1669, %v2761
      %v2846 = vsub.f32 %v1670, %v2762
      %v2847 = vsub.f32 %v1671, %v2763
      %v2848 = vsub.f32 %v1672, %v2764
      %v2849 = vsub.f32 %v1673, %v2765
      %v2850 = vsub.f32 %v1674, %v2766
      %v2851 = vsub.f32 %v1675, %v2767
      %v2852 = vsub.f32 %v1676, %v2768
      %v2853 = vsub.f32 %v1677, %v2769
      %v2854 = vsub.f32 %v1678, %v2770
      %v2855 = vsub.f32 %v1679, %v2771
      %v2856 = vsub.f32 %v1680, %v2772
      %v2857 = vsub.f32 %v1681, %v2773
      %v2858 = vsub.f32 %v1682, %v2774
      %v2859 = vsub.f32 %v1683, %v2775
      %v2860 = vsub.f32 %v1684, %v2776
      %v2861 = vsub.f32 %v1685, %v2777
      %v2862 = vsub.f32 %v1686, %v2778
      %v2863 = vsub.f32 %v1687, %v2779
      %v2864 = vsub.f32 %v1688, %v2780
      %v2865 = vsub.f32 %v1689, %v2781
      %v2866 = vsub.f32 %v1690, %v2782
      %v2867 = vsub.f32 %v1691, %v2783
      %v2868 = vsub.f32 %v1692, %v2784
      %v2869 = vsub.f32 %v1693, %v2785
      %v2870 = vsub.f32 %v1694, %v2786
      %2872 = vset.pattern.permute.xlu0 0
      %2873 = vperm.xlu0 %2872, %v2619
      %v2874 = vpop.permute.xlu0 %2873
      %2877 = vset.pattern.permute.xlu0 0
      %2878 = vperm.xlu0 %2877, %v2620
      %v2879 = vpop.permute.xlu0 %2878
      %2882 = vset.pattern.permute.xlu0 0
      %2883 = vperm.xlu0 %2882, %v2621
      %v2884 = vpop.permute.xlu0 %2883
      %2887 = vset.pattern.permute.xlu0 0
      %2888 = vperm.xlu0 %2887, %v2622
      %v2889 = vpop.permute.xlu0 %2888
      %2892 = vset.pattern.permute.xlu0 0
      %2893 = vperm.xlu0 %2892, %v2623
      %v2894 = vpop.permute.xlu0 %2893
      %2897 = vset.pattern.permute.xlu0 0
      %2898 = vperm.xlu0 %2897, %v2624
      %v2899 = vpop.permute.xlu0 %2898
      %2902 = vset.pattern.permute.xlu0 0
      %2903 = vperm.xlu0 %2902, %v2625
      %v2904 = vpop.permute.xlu0 %2903
      %2907 = vset.pattern.permute.xlu0 0
      %2908 = vperm.xlu0 %2907, %v2626
      %v2909 = vpop.permute.xlu0 %2908
      %2912 = vset.pattern.permute.xlu0 0
      %2913 = vperm.xlu0 %2912, %v2627
      %v2914 = vpop.permute.xlu0 %2913
      %2917 = vset.pattern.permute.xlu0 0
      %2918 = vperm.xlu0 %2917, %v2628
      %v2919 = vpop.permute.xlu0 %2918
      %2922 = vset.pattern.permute.xlu0 0
      %2923 = vperm.xlu0 %2922, %v2629
      %v2924 = vpop.permute.xlu0 %2923
      %2927 = vset.pattern.permute.xlu0 0
      %2928 = vperm.xlu0 %2927, %v2630
      %v2929 = vpop.permute.xlu0 %2928
      %2932 = vset.pattern.permute.xlu0 0
      %2933 = vperm.xlu0 %2932, %v2631
      %v2934 = vpop.permute.xlu0 %2933
      %2937 = vset.pattern.permute.xlu0 0
      %2938 = vperm.xlu0 %2937, %v2632
      %v2939 = vpop.permute.xlu0 %2938
      %2942 = vset.pattern.permute.xlu0 0
      %2943 = vperm.xlu0 %2942, %v2633
      %v2944 = vpop.permute.xlu0 %2943
      %2947 = vset.pattern.permute.xlu0 0
      %2948 = vperm.xlu0 %2947, %v2634
      %v2949 = vpop.permute.xlu0 %2948
      %2952 = vset.pattern.permute.xlu0 0
      %2953 = vperm.xlu0 %2952, %v2635
      %v2954 = vpop.permute.xlu0 %2953
      %2957 = vset.pattern.permute.xlu0 0
      %2958 = vperm.xlu0 %2957, %v2636
      %v2959 = vpop.permute.xlu0 %2958
      %2962 = vset.pattern.permute.xlu0 0
      %2963 = vperm.xlu0 %2962, %v2637
      %v2964 = vpop.permute.xlu0 %2963
      %2967 = vset.pattern.permute.xlu0 0
      %2968 = vperm.xlu0 %2967, %v2638
      %v2969 = vpop.permute.xlu0 %2968
      %2972 = vset.pattern.permute.xlu0 0
      %2973 = vperm.xlu0 %2972, %v2639
      %v2974 = vpop.permute.xlu0 %2973
      %2977 = vset.pattern.permute.xlu0 0
      %2978 = vperm.xlu0 %2977, %v2640
      %v2979 = vpop.permute.xlu0 %2978
      %2982 = vset.pattern.permute.xlu0 0
      %2983 = vperm.xlu0 %2982, %v2641
      %v2984 = vpop.permute.xlu0 %2983
      %2987 = vset.pattern.permute.xlu0 0
      %2988 = vperm.xlu0 %2987, %v2642
      %v2989 = vpop.permute.xlu0 %2988
      %2992 = vset.pattern.permute.xlu0 0
      %2993 = vperm.xlu0 %2992, %v2643
      %v2994 = vpop.permute.xlu0 %2993
      %2997 = vset.pattern.permute.xlu0 0
      %2998 = vperm.xlu0 %2997, %v2644
      %v2999 = vpop.permute.xlu0 %2998
      %3002 = vset.pattern.permute.xlu0 0
      %3003 = vperm.xlu0 %3002, %v2645
      %v3004 = vpop.permute.xlu0 %3003
      %3007 = vset.pattern.permute.xlu0 0
      %3008 = vperm.xlu0 %3007, %v2646
      %v3009 = vpop.permute.xlu0 %3008
      %3012 = vset.pattern.permute.xlu0 0
      %3013 = vperm.xlu0 %3012, %v2647
      %v3014 = vpop.permute.xlu0 %3013
      %3017 = vset.pattern.permute.xlu0 0
      %3018 = vperm.xlu0 %3017, %v2648
      %v3019 = vpop.permute.xlu0 %3018
      %3022 = vset.pattern.permute.xlu0 0
      %3023 = vperm.xlu0 %3022, %v2649
      %v3024 = vpop.permute.xlu0 %3023
      %3027 = vset.pattern.permute.xlu0 0
      %3028 = vperm.xlu0 %3027, %v2650
      %v3029 = vpop.permute.xlu0 %3028
      %3032 = vset.pattern.permute.xlu0 0
      %3033 = vperm.xlu0 %3032, %v2651
      %v3034 = vpop.permute.xlu0 %3033
      %3037 = vset.pattern.permute.xlu0 0
      %3038 = vperm.xlu0 %3037, %v2652
      %v3039 = vpop.permute.xlu0 %3038
      %3042 = vset.pattern.permute.xlu0 0
      %3043 = vperm.xlu0 %3042, %v2653
      %v3044 = vpop.permute.xlu0 %3043
      %3047 = vset.pattern.permute.xlu0 0
      %3048 = vperm.xlu0 %3047, %v2654
      %v3049 = vpop.permute.xlu0 %3048
      %3052 = vset.pattern.permute.xlu0 0
      %3053 = vperm.xlu0 %3052, %v2655
      %v3054 = vpop.permute.xlu0 %3053
      %3057 = vset.pattern.permute.xlu0 0
      %3058 = vperm.xlu0 %3057, %v2656
      %v3059 = vpop.permute.xlu0 %3058
      %3062 = vset.pattern.permute.xlu0 0
      %3063 = vperm.xlu0 %3062, %v2657
      %v3064 = vpop.permute.xlu0 %3063
      %3067 = vset.pattern.permute.xlu0 0
      %3068 = vperm.xlu0 %3067, %v2658
      %v3069 = vpop.permute.xlu0 %3068
      %3072 = vset.pattern.permute.xlu0 0
      %3073 = vperm.xlu0 %3072, %v2659
      %v3074 = vpop.permute.xlu0 %3073
      %3077 = vset.pattern.permute.xlu0 0
      %3078 = vperm.xlu0 %3077, %v2660
      %v3079 = vpop.permute.xlu0 %3078
      %3082 = vset.pattern.permute.xlu0 0
      %3083 = vperm.xlu0 %3082, %v2661
      %v3084 = vpop.permute.xlu0 %3083
      %3087 = vset.pattern.permute.xlu0 0
      %3088 = vperm.xlu0 %3087, %v2662
      %v3089 = vpop.permute.xlu0 %3088
      %3092 = vset.pattern.permute.xlu0 0
      %3093 = vperm.xlu0 %3092, %v2663
      %v3094 = vpop.permute.xlu0 %3093
      %3097 = vset.pattern.permute.xlu0 0
      %3098 = vperm.xlu0 %3097, %v2664
      %v3099 = vpop.permute.xlu0 %3098
      %3102 = vset.pattern.permute.xlu0 0
      %3103 = vperm.xlu0 %3102, %v2665
      %v3104 = vpop.permute.xlu0 %3103
      %3107 = vset.pattern.permute.xlu0 0
      %3108 = vperm.xlu0 %3107, %v2666
      %v3109 = vpop.permute.xlu0 %3108
      %3112 = vset.pattern.permute.xlu0 0
      %3113 = vperm.xlu0 %3112, %v2667
      %v3114 = vpop.permute.xlu0 %3113
      %3117 = vset.pattern.permute.xlu0 0
      %3118 = vperm.xlu0 %3117, %v2668
      %v3119 = vpop.permute.xlu0 %3118
      %3122 = vset.pattern.permute.xlu0 0
      %3123 = vperm.xlu0 %3122, %v2669
      %v3124 = vpop.permute.xlu0 %3123
      %3127 = vset.pattern.permute.xlu0 0
      %3128 = vperm.xlu0 %3127, %v2670
      %v3129 = vpop.permute.xlu0 %3128
      %3132 = vset.pattern.permute.xlu0 0
      %3133 = vperm.xlu0 %3132, %v2671
      %v3134 = vpop.permute.xlu0 %3133
      %3137 = vset.pattern.permute.xlu0 0
      %3138 = vperm.xlu0 %3137, %v2672
      %v3139 = vpop.permute.xlu0 %3138
      %3142 = vset.pattern.permute.xlu0 0
      %3143 = vperm.xlu0 %3142, %v2673
      %v3144 = vpop.permute.xlu0 %3143
      %3147 = vset.pattern.permute.xlu0 0
      %3148 = vperm.xlu0 %3147, %v2674
      %v3149 = vpop.permute.xlu0 %3148
      %3152 = vset.pattern.permute.xlu0 0
      %3153 = vperm.xlu0 %3152, %v2675
      %v3154 = vpop.permute.xlu0 %3153
      %3157 = vset.pattern.permute.xlu0 0
      %3158 = vperm.xlu0 %3157, %v2676
      %v3159 = vpop.permute.xlu0 %3158
      %3162 = vset.pattern.permute.xlu0 0
      %3163 = vperm.xlu0 %3162, %v2677
      %v3164 = vpop.permute.xlu0 %3163
      %3167 = vset.pattern.permute.xlu0 0
      %3168 = vperm.xlu0 %3167, %v2678
      %v3169 = vpop.permute.xlu0 %3168
      %3172 = vset.pattern.permute.xlu0 0
      %3173 = vperm.xlu0 %3172, %v2679
      %v3174 = vpop.permute.xlu0 %3173
      %3177 = vset.pattern.permute.xlu0 0
      %3178 = vperm.xlu0 %3177, %v2680
      %v3179 = vpop.permute.xlu0 %3178
      %3182 = vset.pattern.permute.xlu0 0
      %3183 = vperm.xlu0 %3182, %v2681
      %v3184 = vpop.permute.xlu0 %3183
      %3187 = vset.pattern.permute.xlu0 0
      %3188 = vperm.xlu0 %3187, %v2682
      %v3189 = vpop.permute.xlu0 %3188
      %3192 = vset.pattern.permute.xlu0 0
      %3193 = vperm.xlu0 %3192, %v2683
      %v3194 = vpop.permute.xlu0 %3193
      %3197 = vset.pattern.permute.xlu0 0
      %3198 = vperm.xlu0 %3197, %v2684
      %v3199 = vpop.permute.xlu0 %3198
      %3202 = vset.pattern.permute.xlu0 0
      %3203 = vperm.xlu0 %3202, %v2685
      %v3204 = vpop.permute.xlu0 %3203
      %3207 = vset.pattern.permute.xlu0 0
      %3208 = vperm.xlu0 %3207, %v2686
      %v3209 = vpop.permute.xlu0 %3208
      %3212 = vset.pattern.permute.xlu0 0
      %3213 = vperm.xlu0 %3212, %v2687
      %v3214 = vpop.permute.xlu0 %3213
      %3217 = vset.pattern.permute.xlu0 0
      %3218 = vperm.xlu0 %3217, %v2688
      %v3219 = vpop.permute.xlu0 %3218
      %3222 = vset.pattern.permute.xlu0 0
      %3223 = vperm.xlu0 %3222, %v2689
      %v3224 = vpop.permute.xlu0 %3223
      %3227 = vset.pattern.permute.xlu0 0
      %3228 = vperm.xlu0 %3227, %v2690
      %v3229 = vpop.permute.xlu0 %3228
      %3232 = vset.pattern.permute.xlu0 0
      %3233 = vperm.xlu0 %3232, %v2691
      %v3234 = vpop.permute.xlu0 %3233
      %3237 = vset.pattern.permute.xlu0 0
      %3238 = vperm.xlu0 %3237, %v2692
      %v3239 = vpop.permute.xlu0 %3238
      %3242 = vset.pattern.permute.xlu0 0
      %3243 = vperm.xlu0 %3242, %v2693
      %v3244 = vpop.permute.xlu0 %3243
      %3247 = vset.pattern.permute.xlu0 0
      %3248 = vperm.xlu0 %3247, %v2694
      %v3249 = vpop.permute.xlu0 %3248
      %3252 = vset.pattern.permute.xlu0 0
      %3253 = vperm.xlu0 %3252, %v2695
      %v3254 = vpop.permute.xlu0 %3253
      %3257 = vset.pattern.permute.xlu0 0
      %3258 = vperm.xlu0 %3257, %v2696
      %v3259 = vpop.permute.xlu0 %3258
      %3262 = vset.pattern.permute.xlu0 0
      %3263 = vperm.xlu0 %3262, %v2697
      %v3264 = vpop.permute.xlu0 %3263
      %3267 = vset.pattern.permute.xlu0 0
      %3268 = vperm.xlu0 %3267, %v2698
      %v3269 = vpop.permute.xlu0 %3268
      %3272 = vset.pattern.permute.xlu0 0
      %3273 = vperm.xlu0 %3272, %v2699
      %v3274 = vpop.permute.xlu0 %3273
      %3277 = vset.pattern.permute.xlu0 0
      %3278 = vperm.xlu0 %3277, %v2700
      %v3279 = vpop.permute.xlu0 %3278
      %3282 = vset.pattern.permute.xlu0 0
      %3283 = vperm.xlu0 %3282, %v2701
      %v3284 = vpop.permute.xlu0 %3283
      %3287 = vset.pattern.permute.xlu0 0
      %3288 = vperm.xlu0 %3287, %v2702
      %v3289 = vpop.permute.xlu0 %3288
      %v3291 = vmul.f32 %v180, %v2874
      %v3292 = vmul.f32 %v181, %v2874
      %v3293 = vmul.f32 %v182, %v2879
      %v3294 = vmul.f32 %v183, %v2879
      %v3295 = vmul.f32 %v184, %v2884
      %v3296 = vmul.f32 %v185, %v2884
      %v3297 = vmul.f32 %v186, %v2889
      %v3298 = vmul.f32 %v187, %v2889
      %v3299 = vmul.f32 %v188, %v2894
      %v3300 = vmul.f32 %v189, %v2894
      %v3301 = vmul.f32 %v190, %v2899
      %v3302 = vmul.f32 %v191, %v2899
      %v3303 = vmul.f32 %v192, %v2904
      %v3304 = vmul.f32 %v193, %v2904
      %v3305 = vmul.f32 %v194, %v2909
      %v3306 = vmul.f32 %v195, %v2909
      %v3307 = vmul.f32 %v196, %v2914
      %v3308 = vmul.f32 %v197, %v2914
      %v3309 = vmul.f32 %v198, %v2919
      %v3310 = vmul.f32 %v199, %v2919
      %v3311 = vmul.f32 %v200, %v2924
      %v3312 = vmul.f32 %v201, %v2924
      %v3313 = vmul.f32 %v202, %v2929
      %v3314 = vmul.f32 %v203, %v2929
      %v3315 = vmul.f32 %v204, %v2934
      %v3316 = vmul.f32 %v205, %v2934
      %v3317 = vmul.f32 %v206, %v2939
      %v3318 = vmul.f32 %v207, %v2939
      %v3319 = vmul.f32 %v208, %v2944
      %v3320 = vmul.f32 %v209, %v2944
      %v3321 = vmul.f32 %v210, %v2949
      %v3322 = vmul.f32 %v211, %v2949
      %v3323 = vmul.f32 %v212, %v2954
      %v3324 = vmul.f32 %v213, %v2954
      %v3325 = vmul.f32 %v214, %v2959
      %v3326 = vmul.f32 %v215, %v2959
      %v3327 = vmul.f32 %v216, %v2964
      %v3328 = vmul.f32 %v217, %v2964
      %v3329 = vmul.f32 %v218, %v2969
      %v3330 = vmul.f32 %v219, %v2969
      %v3331 = vmul.f32 %v220, %v2974
      %v3332 = vmul.f32 %v221, %v2974
      %v3333 = vmul.f32 %v222, %v2979
      %v3334 = vmul.f32 %v223, %v2979
      %v3335 = vmul.f32 %v224, %v2984
      %v3336 = vmul.f32 %v225, %v2984
      %v3337 = vmul.f32 %v226, %v2989
      %v3338 = vmul.f32 %v227, %v2989
      %v3339 = vmul.f32 %v228, %v2994
      %v3340 = vmul.f32 %v229, %v2994
      %v3341 = vmul.f32 %v230, %v2999
      %v3342 = vmul.f32 %v231, %v2999
      %v3343 = vmul.f32 %v232, %v3004
      %v3344 = vmul.f32 %v233, %v3004
      %v3345 = vmul.f32 %v234, %v3009
      %v3346 = vmul.f32 %v235, %v3009
      %v3347 = vmul.f32 %v236, %v3014
      %v3348 = vmul.f32 %v237, %v3014
      %v3349 = vmul.f32 %v238, %v3019
      %v3350 = vmul.f32 %v239, %v3019
      %v3351 = vmul.f32 %v240, %v3024
      %v3352 = vmul.f32 %v241, %v3024
      %v3353 = vmul.f32 %v242, %v3029
      %v3354 = vmul.f32 %v243, %v3029
      %v3355 = vmul.f32 %v244, %v3034
      %v3356 = vmul.f32 %v245, %v3034
      %v3357 = vmul.f32 %v246, %v3039
      %v3358 = vmul.f32 %v247, %v3039
      %v3359 = vmul.f32 %v248, %v3044
      %v3360 = vmul.f32 %v249, %v3044
      %v3361 = vmul.f32 %v250, %v3049
      %v3362 = vmul.f32 %v251, %v3049
      %v3363 = vmul.f32 %v252, %v3054
      %v3364 = vmul.f32 %v253, %v3054
      %v3365 = vmul.f32 %v254, %v3059
      %v3366 = vmul.f32 %v255, %v3059
      %v3367 = vmul.f32 %v256, %v3064
      %v3368 = vmul.f32 %v257, %v3064
      %v3369 = vmul.f32 %v258, %v3069
      %v3370 = vmul.f32 %v259, %v3069
      %v3371 = vmul.f32 %v260, %v3074
      %v3372 = vmul.f32 %v261, %v3074
      %v3373 = vmul.f32 %v262, %v3079
      %v3374 = vmul.f32 %v263, %v3079
      %v3375 = vmul.f32 %v264, %v3084
      %v3376 = vmul.f32 %v265, %v3084
      %v3377 = vmul.f32 %v266, %v3089
      %v3378 = vmul.f32 %v267, %v3089
      %v3379 = vmul.f32 %v268, %v3094
      %v3380 = vmul.f32 %v269, %v3094
      %v3381 = vmul.f32 %v270, %v3099
      %v3382 = vmul.f32 %v271, %v3099
      %v3383 = vmul.f32 %v272, %v3104
      %v3384 = vmul.f32 %v273, %v3104
      %v3385 = vmul.f32 %v274, %v3109
      %v3386 = vmul.f32 %v275, %v3109
      %v3387 = vmul.f32 %v276, %v3114
      %v3388 = vmul.f32 %v277, %v3114
      %v3389 = vmul.f32 %v278, %v3119
      %v3390 = vmul.f32 %v279, %v3119
      %v3391 = vmul.f32 %v280, %v3124
      %v3392 = vmul.f32 %v281, %v3124
      %v3393 = vmul.f32 %v282, %v3129
      %v3394 = vmul.f32 %v283, %v3129
      %v3395 = vmul.f32 %v284, %v3134
      %v3396 = vmul.f32 %v285, %v3134
      %v3397 = vmul.f32 %v286, %v3139
      %v3398 = vmul.f32 %v287, %v3139
      %v3399 = vmul.f32 %v288, %v3144
      %v3400 = vmul.f32 %v289, %v3144
      %v3401 = vmul.f32 %v290, %v3149
      %v3402 = vmul.f32 %v291, %v3149
      %v3403 = vmul.f32 %v292, %v3154
      %v3404 = vmul.f32 %v293, %v3154
      %v3405 = vmul.f32 %v294, %v3159
      %v3406 = vmul.f32 %v295, %v3159
      %v3407 = vmul.f32 %v296, %v3164
      %v3408 = vmul.f32 %v297, %v3164
      %v3409 = vmul.f32 %v298, %v3169
      %v3410 = vmul.f32 %v299, %v3169
      %v3411 = vmul.f32 %v300, %v3174
      %v3412 = vmul.f32 %v301, %v3174
      %v3413 = vmul.f32 %v302, %v3179
      %v3414 = vmul.f32 %v303, %v3179
      %v3415 = vmul.f32 %v304, %v3184
      %v3416 = vmul.f32 %v305, %v3184
      %v3417 = vmul.f32 %v306, %v3189
      %v3418 = vmul.f32 %v307, %v3189
      %v3419 = vmul.f32 %v308, %v3194
      %v3420 = vmul.f32 %v309, %v3194
      %v3421 = vmul.f32 %v310, %v3199
      %v3422 = vmul.f32 %v311, %v3199
      %v3423 = vmul.f32 %v312, %v3204
      %v3424 = vmul.f32 %v313, %v3204
      %v3425 = vmul.f32 %v314, %v3209
      %v3426 = vmul.f32 %v315, %v3209
      %v3427 = vmul.f32 %v316, %v3214
      %v3428 = vmul.f32 %v317, %v3214
      %v3429 = vmul.f32 %v318, %v3219
      %v3430 = vmul.f32 %v319, %v3219
      %v3431 = vmul.f32 %v320, %v3224
      %v3432 = vmul.f32 %v321, %v3224
      %v3433 = vmul.f32 %v322, %v3229
      %v3434 = vmul.f32 %v323, %v3229
      %v3435 = vmul.f32 %v324, %v3234
      %v3436 = vmul.f32 %v325, %v3234
      %v3437 = vmul.f32 %v326, %v3239
      %v3438 = vmul.f32 %v327, %v3239
      %v3439 = vmul.f32 %v328, %v3244
      %v3440 = vmul.f32 %v329, %v3244
      %v3441 = vmul.f32 %v330, %v3249
      %v3442 = vmul.f32 %v331, %v3249
      %v3443 = vmul.f32 %v332, %v3254
      %v3444 = vmul.f32 %v333, %v3254
      %v3445 = vmul.f32 %v334, %v3259
      %v3446 = vmul.f32 %v335, %v3259
      %v3447 = vmul.f32 %v336, %v3264
      %v3448 = vmul.f32 %v337, %v3264
      %v3449 = vmul.f32 %v338, %v3269
      %v3450 = vmul.f32 %v339, %v3269
      %v3451 = vmul.f32 %v340, %v3274
      %v3452 = vmul.f32 %v341, %v3274
      %v3453 = vmul.f32 %v342, %v3279
      %v3454 = vmul.f32 %v343, %v3279
      %v3455 = vmul.f32 %v344, %v3284
      %v3456 = vmul.f32 %v345, %v3284
      %v3457 = vmul.f32 %v346, %v3289
      %v3458 = vmul.f32 %v347, %v3289
      %3460 = vset.pattern.permute.xlu0 0
      %3461 = vperm.xlu0 %3460, %v2787
      %v3462 = vpop.permute.xlu0 %3461
      %3465 = vset.pattern.permute.xlu0 0
      %3466 = vperm.xlu0 %3465, %v2788
      %v3467 = vpop.permute.xlu0 %3466
      %3470 = vset.pattern.permute.xlu0 0
      %3471 = vperm.xlu0 %3470, %v2789
      %v3472 = vpop.permute.xlu0 %3471
      %3475 = vset.pattern.permute.xlu0 0
      %3476 = vperm.xlu0 %3475, %v2790
      %v3477 = vpop.permute.xlu0 %3476
      %3480 = vset.pattern.permute.xlu0 0
      %3481 = vperm.xlu0 %3480, %v2791
      %v3482 = vpop.permute.xlu0 %3481
      %3485 = vset.pattern.permute.xlu0 0
      %3486 = vperm.xlu0 %3485, %v2792
      %v3487 = vpop.permute.xlu0 %3486
      %3490 = vset.pattern.permute.xlu0 0
      %3491 = vperm.xlu0 %3490, %v2793
      %v3492 = vpop.permute.xlu0 %3491
      %3495 = vset.pattern.permute.xlu0 0
      %3496 = vperm.xlu0 %3495, %v2794
      %v3497 = vpop.permute.xlu0 %3496
      %3500 = vset.pattern.permute.xlu0 0
      %3501 = vperm.xlu0 %3500, %v2795
      %v3502 = vpop.permute.xlu0 %3501
      %3505 = vset.pattern.permute.xlu0 0
      %3506 = vperm.xlu0 %3505, %v2796
      %v3507 = vpop.permute.xlu0 %3506
      %3510 = vset.pattern.permute.xlu0 0
      %3511 = vperm.xlu0 %3510, %v2797
      %v3512 = vpop.permute.xlu0 %3511
      %3515 = vset.pattern.permute.xlu0 0
      %3516 = vperm.xlu0 %3515, %v2798
      %v3517 = vpop.permute.xlu0 %3516
      %3520 = vset.pattern.permute.xlu0 0
      %3521 = vperm.xlu0 %3520, %v2799
      %v3522 = vpop.permute.xlu0 %3521
      %3525 = vset.pattern.permute.xlu0 0
      %3526 = vperm.xlu0 %3525, %v2800
      %v3527 = vpop.permute.xlu0 %3526
      %3530 = vset.pattern.permute.xlu0 0
      %3531 = vperm.xlu0 %3530, %v2801
      %v3532 = vpop.permute.xlu0 %3531
      %3535 = vset.pattern.permute.xlu0 0
      %3536 = vperm.xlu0 %3535, %v2802
      %v3537 = vpop.permute.xlu0 %3536
      %3540 = vset.pattern.permute.xlu0 0
      %3541 = vperm.xlu0 %3540, %v2803
      %v3542 = vpop.permute.xlu0 %3541
      %3545 = vset.pattern.permute.xlu0 0
      %3546 = vperm.xlu0 %3545, %v2804
      %v3547 = vpop.permute.xlu0 %3546
      %3550 = vset.pattern.permute.xlu0 0
      %3551 = vperm.xlu0 %3550, %v2805
      %v3552 = vpop.permute.xlu0 %3551
      %3555 = vset.pattern.permute.xlu0 0
      %3556 = vperm.xlu0 %3555, %v2806
      %v3557 = vpop.permute.xlu0 %3556
      %3560 = vset.pattern.permute.xlu0 0
      %3561 = vperm.xlu0 %3560, %v2807
      %v3562 = vpop.permute.xlu0 %3561
      %3565 = vset.pattern.permute.xlu0 0
      %3566 = vperm.xlu0 %3565, %v2808
      %v3567 = vpop.permute.xlu0 %3566
      %3570 = vset.pattern.permute.xlu0 0
      %3571 = vperm.xlu0 %3570, %v2809
      %v3572 = vpop.permute.xlu0 %3571
      %3575 = vset.pattern.permute.xlu0 0
      %3576 = vperm.xlu0 %3575, %v2810
      %v3577 = vpop.permute.xlu0 %3576
      %3580 = vset.pattern.permute.xlu0 0
      %3581 = vperm.xlu0 %3580, %v2811
      %v3582 = vpop.permute.xlu0 %3581
      %3585 = vset.pattern.permute.xlu0 0
      %3586 = vperm.xlu0 %3585, %v2812
      %v3587 = vpop.permute.xlu0 %3586
      %3590 = vset.pattern.permute.xlu0 0
      %3591 = vperm.xlu0 %3590, %v2813
      %v3592 = vpop.permute.xlu0 %3591
      %3595 = vset.pattern.permute.xlu0 0
      %3596 = vperm.xlu0 %3595, %v2814
      %v3597 = vpop.permute.xlu0 %3596
      %3600 = vset.pattern.permute.xlu0 0
      %3601 = vperm.xlu0 %3600, %v2815
      %v3602 = vpop.permute.xlu0 %3601
      %3605 = vset.pattern.permute.xlu0 0
      %3606 = vperm.xlu0 %3605, %v2816
      %v3607 = vpop.permute.xlu0 %3606
      %3610 = vset.pattern.permute.xlu0 0
      %3611 = vperm.xlu0 %3610, %v2817
      %v3612 = vpop.permute.xlu0 %3611
      %3615 = vset.pattern.permute.xlu0 0
      %3616 = vperm.xlu0 %3615, %v2818
      %v3617 = vpop.permute.xlu0 %3616
      %3620 = vset.pattern.permute.xlu0 0
      %3621 = vperm.xlu0 %3620, %v2819
      %v3622 = vpop.permute.xlu0 %3621
      %3625 = vset.pattern.permute.xlu0 0
      %3626 = vperm.xlu0 %3625, %v2820
      %v3627 = vpop.permute.xlu0 %3626
      %3630 = vset.pattern.permute.xlu0 0
      %3631 = vperm.xlu0 %3630, %v2821
      %v3632 = vpop.permute.xlu0 %3631
      %3635 = vset.pattern.permute.xlu0 0
      %3636 = vperm.xlu0 %3635, %v2822
      %v3637 = vpop.permute.xlu0 %3636
      %3640 = vset.pattern.permute.xlu0 0
      %3641 = vperm.xlu0 %3640, %v2823
      %v3642 = vpop.permute.xlu0 %3641
      %3645 = vset.pattern.permute.xlu0 0
      %3646 = vperm.xlu0 %3645, %v2824
      %v3647 = vpop.permute.xlu0 %3646
      %3650 = vset.pattern.permute.xlu0 0
      %3651 = vperm.xlu0 %3650, %v2825
      %v3652 = vpop.permute.xlu0 %3651
      %3655 = vset.pattern.permute.xlu0 0
      %3656 = vperm.xlu0 %3655, %v2826
      %v3657 = vpop.permute.xlu0 %3656
      %3660 = vset.pattern.permute.xlu0 0
      %3661 = vperm.xlu0 %3660, %v2827
      %v3662 = vpop.permute.xlu0 %3661
      %3665 = vset.pattern.permute.xlu0 0
      %3666 = vperm.xlu0 %3665, %v2828
      %v3667 = vpop.permute.xlu0 %3666
      %3670 = vset.pattern.permute.xlu0 0
      %3671 = vperm.xlu0 %3670, %v2829
      %v3672 = vpop.permute.xlu0 %3671
      %3675 = vset.pattern.permute.xlu0 0
      %3676 = vperm.xlu0 %3675, %v2830
      %v3677 = vpop.permute.xlu0 %3676
      %3680 = vset.pattern.permute.xlu0 0
      %3681 = vperm.xlu0 %3680, %v2831
      %v3682 = vpop.permute.xlu0 %3681
      %3685 = vset.pattern.permute.xlu0 0
      %3686 = vperm.xlu0 %3685, %v2832
      %v3687 = vpop.permute.xlu0 %3686
      %3690 = vset.pattern.permute.xlu0 0
      %3691 = vperm.xlu0 %3690, %v2833
      %v3692 = vpop.permute.xlu0 %3691
      %3695 = vset.pattern.permute.xlu0 0
      %3696 = vperm.xlu0 %3695, %v2834
      %v3697 = vpop.permute.xlu0 %3696
      %3700 = vset.pattern.permute.xlu0 0
      %3701 = vperm.xlu0 %3700, %v2835
      %v3702 = vpop.permute.xlu0 %3701
      %3705 = vset.pattern.permute.xlu0 0
      %3706 = vperm.xlu0 %3705, %v2836
      %v3707 = vpop.permute.xlu0 %3706
      %3710 = vset.pattern.permute.xlu0 0
      %3711 = vperm.xlu0 %3710, %v2837
      %v3712 = vpop.permute.xlu0 %3711
      %3715 = vset.pattern.permute.xlu0 0
      %3716 = vperm.xlu0 %3715, %v2838
      %v3717 = vpop.permute.xlu0 %3716
      %3720 = vset.pattern.permute.xlu0 0
      %3721 = vperm.xlu0 %3720, %v2839
      %v3722 = vpop.permute.xlu0 %3721
      %3725 = vset.pattern.permute.xlu0 0
      %3726 = vperm.xlu0 %3725, %v2840
      %v3727 = vpop.permute.xlu0 %3726
      %3730 = vset.pattern.permute.xlu0 0
      %3731 = vperm.xlu0 %3730, %v2841
      %v3732 = vpop.permute.xlu0 %3731
      %3735 = vset.pattern.permute.xlu0 0
      %3736 = vperm.xlu0 %3735, %v2842
      %v3737 = vpop.permute.xlu0 %3736
      %3740 = vset.pattern.permute.xlu0 0
      %3741 = vperm.xlu0 %3740, %v2843
      %v3742 = vpop.permute.xlu0 %3741
      %3745 = vset.pattern.permute.xlu0 0
      %3746 = vperm.xlu0 %3745, %v2844
      %v3747 = vpop.permute.xlu0 %3746
      %3750 = vset.pattern.permute.xlu0 0
      %3751 = vperm.xlu0 %3750, %v2845
      %v3752 = vpop.permute.xlu0 %3751
      %3755 = vset.pattern.permute.xlu0 0
      %3756 = vperm.xlu0 %3755, %v2846
      %v3757 = vpop.permute.xlu0 %3756
      %3760 = vset.pattern.permute.xlu0 0
      %3761 = vperm.xlu0 %3760, %v2847
      %v3762 = vpop.permute.xlu0 %3761
      %3765 = vset.pattern.permute.xlu0 0
      %3766 = vperm.xlu0 %3765, %v2848
      %v3767 = vpop.permute.xlu0 %3766
      %3770 = vset.pattern.permute.xlu0 0
      %3771 = vperm.xlu0 %3770, %v2849
      %v3772 = vpop.permute.xlu0 %3771
      %3775 = vset.pattern.permute.xlu0 0
      %3776 = vperm.xlu0 %3775, %v2850
      %v3777 = vpop.permute.xlu0 %3776
      %3780 = vset.pattern.permute.xlu0 0
      %3781 = vperm.xlu0 %3780, %v2851
      %v3782 = vpop.permute.xlu0 %3781
      %3785 = vset.pattern.permute.xlu0 0
      %3786 = vperm.xlu0 %3785, %v2852
      %v3787 = vpop.permute.xlu0 %3786
      %3790 = vset.pattern.permute.xlu0 0
      %3791 = vperm.xlu0 %3790, %v2853
      %v3792 = vpop.permute.xlu0 %3791
      %3795 = vset.pattern.permute.xlu0 0
      %3796 = vperm.xlu0 %3795, %v2854
      %v3797 = vpop.permute.xlu0 %3796
      %3800 = vset.pattern.permute.xlu0 0
      %3801 = vperm.xlu0 %3800, %v2855
      %v3802 = vpop.permute.xlu0 %3801
      %3805 = vset.pattern.permute.xlu0 0
      %3806 = vperm.xlu0 %3805, %v2856
      %v3807 = vpop.permute.xlu0 %3806
      %3810 = vset.pattern.permute.xlu0 0
      %3811 = vperm.xlu0 %3810, %v2857
      %v3812 = vpop.permute.xlu0 %3811
      %3815 = vset.pattern.permute.xlu0 0
      %3816 = vperm.xlu0 %3815, %v2858
      %v3817 = vpop.permute.xlu0 %3816
      %3820 = vset.pattern.permute.xlu0 0
      %3821 = vperm.xlu0 %3820, %v2859
      %v3822 = vpop.permute.xlu0 %3821
      %3825 = vset.pattern.permute.xlu0 0
      %3826 = vperm.xlu0 %3825, %v2860
      %v3827 = vpop.permute.xlu0 %3826
      %3830 = vset.pattern.permute.xlu0 0
      %3831 = vperm.xlu0 %3830, %v2861
      %v3832 = vpop.permute.xlu0 %3831
      %3835 = vset.pattern.permute.xlu0 0
      %3836 = vperm.xlu0 %3835, %v2862
      %v3837 = vpop.permute.xlu0 %3836
      %3840 = vset.pattern.permute.xlu0 0
      %3841 = vperm.xlu0 %3840, %v2863
      %v3842 = vpop.permute.xlu0 %3841
      %3845 = vset.pattern.permute.xlu0 0
      %3846 = vperm.xlu0 %3845, %v2864
      %v3847 = vpop.permute.xlu0 %3846
      %3850 = vset.pattern.permute.xlu0 0
      %3851 = vperm.xlu0 %3850, %v2865
      %v3852 = vpop.permute.xlu0 %3851
      %3855 = vset.pattern.permute.xlu0 0
      %3856 = vperm.xlu0 %3855, %v2866
      %v3857 = vpop.permute.xlu0 %3856
      %3860 = vset.pattern.permute.xlu0 0
      %3861 = vperm.xlu0 %3860, %v2867
      %v3862 = vpop.permute.xlu0 %3861
      %3865 = vset.pattern.permute.xlu0 0
      %3866 = vperm.xlu0 %3865, %v2868
      %v3867 = vpop.permute.xlu0 %3866
      %3870 = vset.pattern.permute.xlu0 0
      %3871 = vperm.xlu0 %3870, %v2869
      %v3872 = vpop.permute.xlu0 %3871
      %3875 = vset.pattern.permute.xlu0 0
      %3876 = vperm.xlu0 %3875, %v2870
      %v3877 = vpop.permute.xlu0 %3876
      %v3879 = vadd.f32 %v3291, %v3462
      %v3880 = vadd.f32 %v3292, %v3462
      %v3881 = vadd.f32 %v3293, %v3467
      %v3882 = vadd.f32 %v3294, %v3467
      %v3883 = vadd.f32 %v3295, %v3472
      %v3884 = vadd.f32 %v3296, %v3472
      %v3885 = vadd.f32 %v3297, %v3477
      %v3886 = vadd.f32 %v3298, %v3477
      %v3887 = vadd.f32 %v3299, %v3482
      %v3888 = vadd.f32 %v3300, %v3482
      %v3889 = vadd.f32 %v3301, %v3487
      %v3890 = vadd.f32 %v3302, %v3487
      %v3891 = vadd.f32 %v3303, %v3492
      %v3892 = vadd.f32 %v3304, %v3492
      %v3893 = vadd.f32 %v3305, %v3497
      %v3894 = vadd.f32 %v3306, %v3497
      %v3895 = vadd.f32 %v3307, %v3502
      %v3896 = vadd.f32 %v3308, %v3502
      %v3897 = vadd.f32 %v3309, %v3507
      %v3898 = vadd.f32 %v3310, %v3507
      %v3899 = vadd.f32 %v3311, %v3512
      %v3900 = vadd.f32 %v3312, %v3512
      %v3901 = vadd.f32 %v3313, %v3517
      %v3902 = vadd.f32 %v3314, %v3517
      %v3903 = vadd.f32 %v3315, %v3522
      %v3904 = vadd.f32 %v3316, %v3522
      %v3905 = vadd.f32 %v3317, %v3527
      %v3906 = vadd.f32 %v3318, %v3527
      %v3907 = vadd.f32 %v3319, %v3532
      %v3908 = vadd.f32 %v3320, %v3532
      %v3909 = vadd.f32 %v3321, %v3537
      %v3910 = vadd.f32 %v3322, %v3537
      %v3911 = vadd.f32 %v3323, %v3542
      %v3912 = vadd.f32 %v3324, %v3542
      %v3913 = vadd.f32 %v3325, %v3547
      %v3914 = vadd.f32 %v3326, %v3547
      %v3915 = vadd.f32 %v3327, %v3552
      %v3916 = vadd.f32 %v3328, %v3552
      %v3917 = vadd.f32 %v3329, %v3557
      %v3918 = vadd.f32 %v3330, %v3557
      %v3919 = vadd.f32 %v3331, %v3562
      %v3920 = vadd.f32 %v3332, %v3562
      %v3921 = vadd.f32 %v3333, %v3567
      %v3922 = vadd.f32 %v3334, %v3567
      %v3923 = vadd.f32 %v3335, %v3572
      %v3924 = vadd.f32 %v3336, %v3572
      %v3925 = vadd.f32 %v3337, %v3577
      %v3926 = vadd.f32 %v3338, %v3577
      %v3927 = vadd.f32 %v3339, %v3582
      %v3928 = vadd.f32 %v3340, %v3582
      %v3929 = vadd.f32 %v3341, %v3587
      %v3930 = vadd.f32 %v3342, %v3587
      %v3931 = vadd.f32 %v3343, %v3592
      %v3932 = vadd.f32 %v3344, %v3592
      %v3933 = vadd.f32 %v3345, %v3597
      %v3934 = vadd.f32 %v3346, %v3597
      %v3935 = vadd.f32 %v3347, %v3602
      %v3936 = vadd.f32 %v3348, %v3602
      %v3937 = vadd.f32 %v3349, %v3607
      %v3938 = vadd.f32 %v3350, %v3607
      %v3939 = vadd.f32 %v3351, %v3612
      %v3940 = vadd.f32 %v3352, %v3612
      %v3941 = vadd.f32 %v3353, %v3617
      %v3942 = vadd.f32 %v3354, %v3617
      %v3943 = vadd.f32 %v3355, %v3622
      %v3944 = vadd.f32 %v3356, %v3622
      %v3945 = vadd.f32 %v3357, %v3627
      %v3946 = vadd.f32 %v3358, %v3627
      %v3947 = vadd.f32 %v3359, %v3632
      %v3948 = vadd.f32 %v3360, %v3632
      %v3949 = vadd.f32 %v3361, %v3637
      %v3950 = vadd.f32 %v3362, %v3637
      %v3951 = vadd.f32 %v3363, %v3642
      %v3952 = vadd.f32 %v3364, %v3642
      %v3953 = vadd.f32 %v3365, %v3647
      %v3954 = vadd.f32 %v3366, %v3647
      %v3955 = vadd.f32 %v3367, %v3652
      %v3956 = vadd.f32 %v3368, %v3652
      %v3957 = vadd.f32 %v3369, %v3657
      %v3958 = vadd.f32 %v3370, %v3657
      %v3959 = vadd.f32 %v3371, %v3662
      %v3960 = vadd.f32 %v3372, %v3662
      %v3961 = vadd.f32 %v3373, %v3667
      %v3962 = vadd.f32 %v3374, %v3667
      %v3963 = vadd.f32 %v3375, %v3672
      %v3964 = vadd.f32 %v3376, %v3672
      %v3965 = vadd.f32 %v3377, %v3677
      %v3966 = vadd.f32 %v3378, %v3677
      %v3967 = vadd.f32 %v3379, %v3682
      %v3968 = vadd.f32 %v3380, %v3682
      %v3969 = vadd.f32 %v3381, %v3687
      %v3970 = vadd.f32 %v3382, %v3687
      %v3971 = vadd.f32 %v3383, %v3692
      %v3972 = vadd.f32 %v3384, %v3692
      %v3973 = vadd.f32 %v3385, %v3697
      %v3974 = vadd.f32 %v3386, %v3697
      %v3975 = vadd.f32 %v3387, %v3702
      %v3976 = vadd.f32 %v3388, %v3702
      %v3977 = vadd.f32 %v3389, %v3707
      %v3978 = vadd.f32 %v3390, %v3707
      %v3979 = vadd.f32 %v3391, %v3712
      %v3980 = vadd.f32 %v3392, %v3712
      %v3981 = vadd.f32 %v3393, %v3717
      %v3982 = vadd.f32 %v3394, %v3717
      %v3983 = vadd.f32 %v3395, %v3722
      %v3984 = vadd.f32 %v3396, %v3722
      %v3985 = vadd.f32 %v3397, %v3727
      %v3986 = vadd.f32 %v3398, %v3727
      %v3987 = vadd.f32 %v3399, %v3732
      %v3988 = vadd.f32 %v3400, %v3732
      %v3989 = vadd.f32 %v3401, %v3737
      %v3990 = vadd.f32 %v3402, %v3737
      %v3991 = vadd.f32 %v3403, %v3742
      %v3992 = vadd.f32 %v3404, %v3742
      %v3993 = vadd.f32 %v3405, %v3747
      %v3994 = vadd.f32 %v3406, %v3747
      %v3995 = vadd.f32 %v3407, %v3752
      %v3996 = vadd.f32 %v3408, %v3752
      %v3997 = vadd.f32 %v3409, %v3757
      %v3998 = vadd.f32 %v3410, %v3757
      %v3999 = vadd.f32 %v3411, %v3762
      %v4000 = vadd.f32 %v3412, %v3762
      %v4001 = vadd.f32 %v3413, %v3767
      %v4002 = vadd.f32 %v3414, %v3767
      %v4003 = vadd.f32 %v3415, %v3772
      %v4004 = vadd.f32 %v3416, %v3772
      %v4005 = vadd.f32 %v3417, %v3777
      %v4006 = vadd.f32 %v3418, %v3777
      %v4007 = vadd.f32 %v3419, %v3782
      %v4008 = vadd.f32 %v3420, %v3782
      %v4009 = vadd.f32 %v3421, %v3787
      %v4010 = vadd.f32 %v3422, %v3787
      %v4011 = vadd.f32 %v3423, %v3792
      %v4012 = vadd.f32 %v3424, %v3792
      %v4013 = vadd.f32 %v3425, %v3797
      %v4014 = vadd.f32 %v3426, %v3797
      %v4015 = vadd.f32 %v3427, %v3802
      %v4016 = vadd.f32 %v3428, %v3802
      %v4017 = vadd.f32 %v3429, %v3807
      %v4018 = vadd.f32 %v3430, %v3807
      %v4019 = vadd.f32 %v3431, %v3812
      %v4020 = vadd.f32 %v3432, %v3812
      %v4021 = vadd.f32 %v3433, %v3817
      %v4022 = vadd.f32 %v3434, %v3817
      %v4023 = vadd.f32 %v3435, %v3822
      %v4024 = vadd.f32 %v3436, %v3822
      %v4025 = vadd.f32 %v3437, %v3827
      %v4026 = vadd.f32 %v3438, %v3827
      %v4027 = vadd.f32 %v3439, %v3832
      %v4028 = vadd.f32 %v3440, %v3832
      %v4029 = vadd.f32 %v3441, %v3837
      %v4030 = vadd.f32 %v3442, %v3837
      %v4031 = vadd.f32 %v3443, %v3842
      %v4032 = vadd.f32 %v3444, %v3842
      %v4033 = vadd.f32 %v3445, %v3847
      %v4034 = vadd.f32 %v3446, %v3847
      %v4035 = vadd.f32 %v3447, %v3852
      %v4036 = vadd.f32 %v3448, %v3852
      %v4037 = vadd.f32 %v3449, %v3857
      %v4038 = vadd.f32 %v3450, %v3857
      %v4039 = vadd.f32 %v3451, %v3862
      %v4040 = vadd.f32 %v3452, %v3862
      %v4041 = vadd.f32 %v3453, %v3867
      %v4042 = vadd.f32 %v3454, %v3867
      %v4043 = vadd.f32 %v3455, %v3872
      %v4044 = vadd.f32 %v3456, %v3872
      %v4045 = vadd.f32 %v3457, %v3877
      %v4046 = vadd.f32 %v3458, %v3877
      %4047 = vst [vmem:[%s177] sm:$0xff] %v3879
      %4048 = vst.msk [vmem:[%s177 + $0x8] sm:$0xff] %vm348, %v3880
      %4049 = vst [vmem:[%s177 + $0x10] sm:$0xff] %v3881
      %4050 = vst.msk [vmem:[%s177 + $0x18] sm:$0xff] %vm348, %v3882
      %4051 = vst [vmem:[%s177 + $0x20] sm:$0xff] %v3883
      %4052 = vst.msk [vmem:[%s177 + $0x28] sm:$0xff] %vm348, %v3884
      %4053 = vst [vmem:[%s177 + $0x30] sm:$0xff] %v3885
      %4054 = vst.msk [vmem:[%s177 + $0x38] sm:$0xff] %vm348, %v3886
      %4055 = vst [vmem:[%s177 + $0x40] sm:$0xff] %v3887
      %4056 = vst.msk [vmem:[%s177 + $0x48] sm:$0xff] %vm348, %v3888
      %4057 = vst [vmem:[%s177 + $0x50] sm:$0xff] %v3889
      %4058 = vst.msk [vmem:[%s177 + $0x58] sm:$0xff] %vm348, %v3890
      %4059 = vst [vmem:[%s177 + $0x60] sm:$0xff] %v3891
      %4060 = vst.msk [vmem:[%s177 + $0x68] sm:$0xff] %vm348, %v3892
      %4061 = vst [vmem:[%s177 + $0x70] sm:$0xff] %v3893
      %4062 = vst.msk [vmem:[%s177 + $0x78] sm:$0xff] %vm348, %v3894
      %4063 = vst [vmem:[%s177 + $0x80] sm:$0xff] %v3895
      %4064 = vst.msk [vmem:[%s177 + $0x88] sm:$0xff] %vm348, %v3896
      %4065 = vst [vmem:[%s177 + $0x90] sm:$0xff] %v3897
      %4066 = vst.msk [vmem:[%s177 + $0x98] sm:$0xff] %vm348, %v3898
      %4067 = vst [vmem:[%s177 + $0xa0] sm:$0xff] %v3899
      %4068 = vst.msk [vmem:[%s177 + $0xa8] sm:$0xff] %vm348, %v3900
      %4069 = vst [vmem:[%s177 + $0xb0] sm:$0xff] %v3901
      %4070 = vst.msk [vmem:[%s177 + $0xb8] sm:$0xff] %vm348, %v3902
      %4071 = vst [vmem:[%s177 + $0xc0] sm:$0xff] %v3903
      %4072 = vst.msk [vmem:[%s177 + $0xc8] sm:$0xff] %vm348, %v3904
      %4073 = vst [vmem:[%s177 + $0xd0] sm:$0xff] %v3905
      %4074 = vst.msk [vmem:[%s177 + $0xd8] sm:$0xff] %vm348, %v3906
      %4075 = vst [vmem:[%s177 + $0xe0] sm:$0xff] %v3907
      %4076 = vst.msk [vmem:[%s177 + $0xe8] sm:$0xff] %vm348, %v3908
      %4077 = vst [vmem:[%s177 + $0xf0] sm:$0xff] %v3909
      %4078 = vst.msk [vmem:[%s177 + $0xf8] sm:$0xff] %vm348, %v3910
      %4079 = vst [vmem:[%s177 + $0x100] sm:$0xff] %v3911
      %4080 = vst.msk [vmem:[%s177 + $0x108] sm:$0xff] %vm348, %v3912
      %4081 = vst [vmem:[%s177 + $0x110] sm:$0xff] %v3913
      %4082 = vst.msk [vmem:[%s177 + $0x118] sm:$0xff] %vm348, %v3914
      %4083 = vst [vmem:[%s177 + $0x120] sm:$0xff] %v3915
      %4084 = vst.msk [vmem:[%s177 + $0x128] sm:$0xff] %vm348, %v3916
      %4085 = vst [vmem:[%s177 + $0x130] sm:$0xff] %v3917
      %4086 = vst.msk [vmem:[%s177 + $0x138] sm:$0xff] %vm348, %v3918
      %4087 = vst [vmem:[%s177 + $0x140] sm:$0xff] %v3919
      %4088 = vst.msk [vmem:[%s177 + $0x148] sm:$0xff] %vm348, %v3920
      %4089 = vst [vmem:[%s177 + $0x150] sm:$0xff] %v3921
      %4090 = vst.msk [vmem:[%s177 + $0x158] sm:$0xff] %vm348, %v3922
      %4091 = vst [vmem:[%s177 + $0x160] sm:$0xff] %v3923
      %4092 = vst.msk [vmem:[%s177 + $0x168] sm:$0xff] %vm348, %v3924
      %4093 = vst [vmem:[%s177 + $0x170] sm:$0xff] %v3925
      %4094 = vst.msk [vmem:[%s177 + $0x178] sm:$0xff] %vm348, %v3926
      %4095 = vst [vmem:[%s177 + $0x180] sm:$0xff] %v3927
      %4096 = vst.msk [vmem:[%s177 + $0x188] sm:$0xff] %vm348, %v3928
      %4097 = vst [vmem:[%s177 + $0x190] sm:$0xff] %v3929
      %4098 = vst.msk [vmem:[%s177 + $0x198] sm:$0xff] %vm348, %v3930
      %4099 = vst [vmem:[%s177 + $0x1a0] sm:$0xff] %v3931
      %4100 = vst.msk [vmem:[%s177 + $0x1a8] sm:$0xff] %vm348, %v3932
      %4101 = vst [vmem:[%s177 + $0x1b0] sm:$0xff] %v3933
      %4102 = vst.msk [vmem:[%s177 + $0x1b8] sm:$0xff] %vm348, %v3934
      %4103 = vst [vmem:[%s177 + $0x1c0] sm:$0xff] %v3935
      %4104 = vst.msk [vmem:[%s177 + $0x1c8] sm:$0xff] %vm348, %v3936
      %4105 = vst [vmem:[%s177 + $0x1d0] sm:$0xff] %v3937
      %4106 = vst.msk [vmem:[%s177 + $0x1d8] sm:$0xff] %vm348, %v3938
      %4107 = vst [vmem:[%s177 + $0x1e0] sm:$0xff] %v3939
      %4108 = vst.msk [vmem:[%s177 + $0x1e8] sm:$0xff] %vm348, %v3940
      %4109 = vst [vmem:[%s177 + $0x1f0] sm:$0xff] %v3941
      %4110 = vst.msk [vmem:[%s177 + $0x1f8] sm:$0xff] %vm348, %v3942
      %4111 = vst [vmem:[%s177 + $0x200] sm:$0xff] %v3943
      %4112 = vst.msk [vmem:[%s177 + $0x208] sm:$0xff] %vm348, %v3944
      %4113 = vst [vmem:[%s177 + $0x210] sm:$0xff] %v3945
      %4114 = vst.msk [vmem:[%s177 + $0x218] sm:$0xff] %vm348, %v3946
      %4115 = vst [vmem:[%s177 + $0x220] sm:$0xff] %v3947
      %4116 = vst.msk [vmem:[%s177 + $0x228] sm:$0xff] %vm348, %v3948
      %4117 = vst [vmem:[%s177 + $0x230] sm:$0xff] %v3949
      %4118 = vst.msk [vmem:[%s177 + $0x238] sm:$0xff] %vm348, %v3950
      %4119 = vst [vmem:[%s177 + $0x240] sm:$0xff] %v3951
      %4120 = vst.msk [vmem:[%s177 + $0x248] sm:$0xff] %vm348, %v3952
      %4121 = vst [vmem:[%s177 + $0x250] sm:$0xff] %v3953
      %4122 = vst.msk [vmem:[%s177 + $0x258] sm:$0xff] %vm348, %v3954
      %4123 = vst [vmem:[%s177 + $0x260] sm:$0xff] %v3955
      %4124 = vst.msk [vmem:[%s177 + $0x268] sm:$0xff] %vm348, %v3956
      %4125 = vst [vmem:[%s177 + $0x270] sm:$0xff] %v3957
      %4126 = vst.msk [vmem:[%s177 + $0x278] sm:$0xff] %vm348, %v3958
      %4127 = vst [vmem:[%s177 + $0x280] sm:$0xff] %v3959
      %4128 = vst.msk [vmem:[%s177 + $0x288] sm:$0xff] %vm348, %v3960
      %4129 = vst [vmem:[%s177 + $0x290] sm:$0xff] %v3961
      %4130 = vst.msk [vmem:[%s177 + $0x298] sm:$0xff] %vm348, %v3962
      %4131 = vst [vmem:[%s177 + $0x2a0] sm:$0xff] %v3963
      %4132 = vst.msk [vmem:[%s177 + $0x2a8] sm:$0xff] %vm348, %v3964
      %4133 = vst [vmem:[%s177 + $0x2b0] sm:$0xff] %v3965
      %4134 = vst.msk [vmem:[%s177 + $0x2b8] sm:$0xff] %vm348, %v3966
      %4135 = vst [vmem:[%s177 + $0x2c0] sm:$0xff] %v3967
      %4136 = vst.msk [vmem:[%s177 + $0x2c8] sm:$0xff] %vm348, %v3968
      %4137 = vst [vmem:[%s177 + $0x2d0] sm:$0xff] %v3969
      %4138 = vst.msk [vmem:[%s177 + $0x2d8] sm:$0xff] %vm348, %v3970
      %4139 = vst [vmem:[%s177 + $0x2e0] sm:$0xff] %v3971
      %4140 = vst.msk [vmem:[%s177 + $0x2e8] sm:$0xff] %vm348, %v3972
      %4141 = vst [vmem:[%s177 + $0x2f0] sm:$0xff] %v3973
      %4142 = vst.msk [vmem:[%s177 + $0x2f8] sm:$0xff] %vm348, %v3974
      %4143 = vst [vmem:[%s177 + $0x300] sm:$0xff] %v3975
      %4144 = vst.msk [vmem:[%s177 + $0x308] sm:$0xff] %vm348, %v3976
      %4145 = vst [vmem:[%s177 + $0x310] sm:$0xff] %v3977
      %4146 = vst.msk [vmem:[%s177 + $0x318] sm:$0xff] %vm348, %v3978
      %4147 = vst [vmem:[%s177 + $0x320] sm:$0xff] %v3979
      %4148 = vst.msk [vmem:[%s177 + $0x328] sm:$0xff] %vm348, %v3980
      %4149 = vst [vmem:[%s177 + $0x330] sm:$0xff] %v3981
      %4150 = vst.msk [vmem:[%s177 + $0x338] sm:$0xff] %vm348, %v3982
      %4151 = vst [vmem:[%s177 + $0x340] sm:$0xff] %v3983
      %4152 = vst.msk [vmem:[%s177 + $0x348] sm:$0xff] %vm348, %v3984
      %4153 = vst [vmem:[%s177 + $0x350] sm:$0xff] %v3985
      %4154 = vst.msk [vmem:[%s177 + $0x358] sm:$0xff] %vm348, %v3986
      %4155 = vst [vmem:[%s177 + $0x360] sm:$0xff] %v3987
      %4156 = vst.msk [vmem:[%s177 + $0x368] sm:$0xff] %vm348, %v3988
      %4157 = vst [vmem:[%s177 + $0x370] sm:$0xff] %v3989
      %4158 = vst.msk [vmem:[%s177 + $0x378] sm:$0xff] %vm348, %v3990
      %4159 = vst [vmem:[%s177 + $0x380] sm:$0xff] %v3991
      %4160 = vst.msk [vmem:[%s177 + $0x388] sm:$0xff] %vm348, %v3992
      %4161 = vst [vmem:[%s177 + $0x390] sm:$0xff] %v3993
      %4162 = vst.msk [vmem:[%s177 + $0x398] sm:$0xff] %vm348, %v3994
      %4163 = vst [vmem:[%s177 + $0x3a0] sm:$0xff] %v3995
      %4164 = vst.msk [vmem:[%s177 + $0x3a8] sm:$0xff] %vm348, %v3996
      %4165 = vst [vmem:[%s177 + $0x3b0] sm:$0xff] %v3997
      %4166 = vst.msk [vmem:[%s177 + $0x3b8] sm:$0xff] %vm348, %v3998
      %4167 = vst [vmem:[%s177 + $0x3c0] sm:$0xff] %v3999
      %4168 = vst.msk [vmem:[%s177 + $0x3c8] sm:$0xff] %vm348, %v4000
      %4169 = vst [vmem:[%s177 + $0x3d0] sm:$0xff] %v4001
      %4170 = vst.msk [vmem:[%s177 + $0x3d8] sm:$0xff] %vm348, %v4002
      %4171 = vst [vmem:[%s177 + $0x3e0] sm:$0xff] %v4003
      %4172 = vst.msk [vmem:[%s177 + $0x3e8] sm:$0xff] %vm348, %v4004
      %4173 = vst [vmem:[%s177 + $0x3f0] sm:$0xff] %v4005
      %4174 = vst.msk [vmem:[%s177 + $0x3f8] sm:$0xff] %vm348, %v4006
      %4175 = vst [vmem:[%s177 + $0x400] sm:$0xff] %v4007
      %4176 = vst.msk [vmem:[%s177 + $0x408] sm:$0xff] %vm348, %v4008
      %4177 = vst [vmem:[%s177 + $0x410] sm:$0xff] %v4009
      %4178 = vst.msk [vmem:[%s177 + $0x418] sm:$0xff] %vm348, %v4010
      %4179 = vst [vmem:[%s177 + $0x420] sm:$0xff] %v4011
      %4180 = vst.msk [vmem:[%s177 + $0x428] sm:$0xff] %vm348, %v4012
      %4181 = vst [vmem:[%s177 + $0x430] sm:$0xff] %v4013
      %4182 = vst.msk [vmem:[%s177 + $0x438] sm:$0xff] %vm348, %v4014
      %4183 = vst [vmem:[%s177 + $0x440] sm:$0xff] %v4015
      %4184 = vst.msk [vmem:[%s177 + $0x448] sm:$0xff] %vm348, %v4016
      %4185 = vst [vmem:[%s177 + $0x450] sm:$0xff] %v4017
      %4186 = vst.msk [vmem:[%s177 + $0x458] sm:$0xff] %vm348, %v4018
      %4187 = vst [vmem:[%s177 + $0x460] sm:$0xff] %v4019
      %4188 = vst.msk [vmem:[%s177 + $0x468] sm:$0xff] %vm348, %v4020
      %4189 = vst [vmem:[%s177 + $0x470] sm:$0xff] %v4021
      %4190 = vst.msk [vmem:[%s177 + $0x478] sm:$0xff] %vm348, %v4022
      %4191 = vst [vmem:[%s177 + $0x480] sm:$0xff] %v4023
      %4192 = vst.msk [vmem:[%s177 + $0x488] sm:$0xff] %vm348, %v4024
      %4193 = vst [vmem:[%s177 + $0x490] sm:$0xff] %v4025
      %4194 = vst.msk [vmem:[%s177 + $0x498] sm:$0xff] %vm348, %v4026
      %4195 = vst [vmem:[%s177 + $0x4a0] sm:$0xff] %v4027
      %4196 = vst.msk [vmem:[%s177 + $0x4a8] sm:$0xff] %vm348, %v4028
      %4197 = vst [vmem:[%s177 + $0x4b0] sm:$0xff] %v4029
      %4198 = vst.msk [vmem:[%s177 + $0x4b8] sm:$0xff] %vm348, %v4030
      %4199 = vst [vmem:[%s177 + $0x4c0] sm:$0xff] %v4031
      %4200 = vst.msk [vmem:[%s177 + $0x4c8] sm:$0xff] %vm348, %v4032
      %4201 = vst [vmem:[%s177 + $0x4d0] sm:$0xff] %v4033
      %4202 = vst.msk [vmem:[%s177 + $0x4d8] sm:$0xff] %vm348, %v4034
      %4203 = vst [vmem:[%s177 + $0x4e0] sm:$0xff] %v4035
      %4204 = vst.msk [vmem:[%s177 + $0x4e8] sm:$0xff] %vm348, %v4036
      %4205 = vst [vmem:[%s177 + $0x4f0] sm:$0xff] %v4037
      %4206 = vst.msk [vmem:[%s177 + $0x4f8] sm:$0xff] %vm348, %v4038
      %4207 = vst [vmem:[%s177 + $0x500] sm:$0xff] %v4039
      %4208 = vst.msk [vmem:[%s177 + $0x508] sm:$0xff] %vm348, %v4040
      %4209 = vst [vmem:[%s177 + $0x510] sm:$0xff] %v4041
      %4210 = vst.msk [vmem:[%s177 + $0x518] sm:$0xff] %vm348, %v4042
      %4211 = vst [vmem:[%s177 + $0x520] sm:$0xff] %v4043
      %4212 = vst.msk [vmem:[%s177 + $0x528] sm:$0xff] %vm348, %v4044
      %4213 = vst [vmem:[%s177 + $0x530] sm:$0xff] %v4045
      %4214 = vst.msk [vmem:[%s177 + $0x538] sm:$0xff] %vm348, %v4046
      %s4215 = smul.u32 84, %s14
      %p4216 = scmp.lt.s32.totalorder %s4215, 167
      %s4217 = scalar_select %p4216, %s4215, 167
      %s4218 = smul.addr %s4217, 2
      %s4219 = smul.addr %s4218, 8
      %s4220 = scalar_lea.vmem %s3, %s4219
      // Predicated region
      $region33: #{tpu_custom_call.1} parent=31 // pred_check
        %p4221 = pneg %p100
      $region34: #{tpu_custom_call.1} parent=31 // pred_check_branch
        %4223 = sbr.rel (%p4221) target = $region36
      $region35: #{tpu_custom_call.1} parent=31 // pred_region
        %s4224 = smul.u32 84, %s14
      $region36: #{tpu_custom_call.1} parent=31 // pred_fallthru
        _
    $region32: #{tpu_custom_call.1} parent=5 // pred_fallthru
      _
    %p4225 = scmp.le.s32.totalorder 2, %s9
    // Predicated region
    $region37: #{tpu_custom_call.1} parent=5 // pred_check
      %p4226 = pneg %p4225
    $region38: #{tpu_custom_call.1} parent=5 // pred_check_branch
      %4228 = sbr.rel (%p4226) target = $region40
    $region39: #{tpu_custom_call.1} parent=5 // pred_region
      %s4229 = ssub.s32 %s9, 2
      // Predicated region
      $region41: #{tpu_custom_call.1} parent=39 // pred_check
        %p4230 = pneg %p106
      $region42: #{tpu_custom_call.1} parent=39 // pred_check_branch
        %4232 = sbr.rel (%p4230) target = $region44
      $region43: #{tpu_custom_call.1} parent=39 // pred_region
        %s4233 = smul.u32 84, %s15
        %p4234 = scmp.lt.s32.totalorder %s4233, 167
        %s4235 = scalar_select %p4234, %s4233, 167
        %s4236 = smul.addr %s4235, 2
        %s4237 = smul.addr %s4236, 8
        %s4238 = scalar_lea.vmem %s3, %s4237
      $region44: #{tpu_custom_call.1} parent=39 // pred_fallthru
        _
    $region40: #{tpu_custom_call.1} parent=5 // pred_fallthru
      _
  $region6: #{tpu_custom_call.1} parent=0 // loop_footer
    %s13 = sadd.s32 1, %s9
  $region7: #{tpu_custom_call.1} parent=0 // loop_footer_branch
    %8 = sbr.rel target = $region3
  $region8: #{tpu_custom_call.1} parent=0 // loop_exit
    _

</llo_original>
